<compile_context>
chip_gen: v7x
topology: tpu7x:2x2x1
jax: 0.10.0
libtpu: 0.0.40
codegen_flags: <defaults>
</compile_context>

<pallas_src>
import functools

import jax
import jax.numpy as jnp
from jax.experimental import pallas as pl
from jax.experimental.pallas import tpu as pltpu


def sae_kernel(x_ref, w_enc_ref, b_enc_ref, w_dec_ref,
               recon_ref, acts_ref, loss_ref, l1_ref, l0_ref,
               recon_acc, mse_acc, l1_acc, l0_acc,
               *, l1_coef, inv_ba, inv_bd):
    i = pl.program_id(0)          # batch tile
    j = pl.program_id(1)          # dict tile (reduction axis for decode)
    ni = pl.num_programs(0)
    nj = pl.num_programs(1)

    # Zero the global loss accumulators once, on the very first grid step.
    @pl.when((i == 0) & (j == 0))
    def _():
        mse_acc[...] = jnp.zeros_like(mse_acc)
        l1_acc[...] = jnp.zeros_like(l1_acc)
        l0_acc[...] = jnp.zeros_like(l0_acc)

    # Zero the recon accumulator at the start of every dict (j) sweep.
    @pl.when(j == 0)
    def _():
        recon_acc[...] = jnp.zeros_like(recon_acc)

    x = x_ref[...]                                     # [TB, A], resident over j

    # encode tile: Linear(A -> D) + ReLU.  MXU matmul, f32 accumulation.
    acts = jnp.dot(x, w_enc_ref[...], preferred_element_type=jnp.float32)
    acts = acts + b_enc_ref[...].astype(jnp.float32)   # broadcast [1, TD]
    acts = jnp.maximum(acts, 0.0)                      # relu mode

    acts_ref[...] = acts.astype(acts_ref.dtype)        # [TB, TD] written each step

    # decode partial product, accumulated across dict tiles.
    recon_acc[...] += jnp.dot(acts.astype(w_dec_ref.dtype), w_dec_ref[...],
                              preferred_element_type=jnp.float32)

    # loss partial sums (cheap XLU reductions; finalized once at the end).
    l1_acc[...] += jnp.sum(acts).reshape(1, 1)
    l0_acc[...] += jnp.sum((acts != 0.0).astype(jnp.float32)).reshape(1, 1)

    # End of the dict sweep for this batch tile: emit recon + MSE contribution.
    @pl.when(j == nj - 1)
    def _():
        recon = recon_acc[...]
        recon_ref[...] = recon.astype(recon_ref.dtype)
        diff = x.astype(jnp.float32) - recon
        mse_acc[...] += jnp.sum(diff * diff).reshape(1, 1)

    # Very last grid step: finalize the scalar losses.
    @pl.when((i == ni - 1) & (j == nj - 1))
    def _():
        mse = mse_acc[...] * inv_ba
        l1 = l1_acc[...] * inv_bd
        l0 = l0_acc[...] * inv_bd
        loss_ref[...] = mse + l1_coef * l1             # relu mode adds the l1 term
        l1_ref[...] = l1
        l0_ref[...] = l0


def _pick_tile(dim, candidates):
    for c in candidates:
        if dim >= c and dim % c == 0:
            return c
    return dim  # fall back to the full (untiled) dimension


def sae_forward(x, w_enc_t, b_enc, w_dec_t, *, l1_coef=1.0, tb=None, td=None):
    """x: [B, A]; w_enc_t: [A, D]; b_enc: [D]; w_dec_t: [D, A]. mode == 'relu'."""
    B, A = x.shape
    D = w_enc_t.shape[1]
    assert w_enc_t.shape == (A, D)
    assert w_dec_t.shape == (D, A)
    assert b_enc.shape == (D,)

    # MXU/DMA-friendly tiles: batch tile a multiple of 128/256 when possible,
    # dict tile the largest 128-multiple that divides D (and fits VMEM).
    TB = tb if tb is not None else _pick_tile(B, (512, 256, 128, 64, 32, 16, 8))
    TD = td if td is not None else _pick_tile(D, (2048, 1024, 512, 256, 128))
    assert B % TB == 0 and D % TD == 0
    nb, nd = B // TB, D // TD

    kernel = functools.partial(
        sae_kernel,
        l1_coef=float(l1_coef),
        inv_ba=1.0 / float(B * A),
        inv_bd=1.0 / float(B * D),
    )

    out_shape = (
        jax.ShapeDtypeStruct((B, A), x.dtype),        # recon_input
        jax.ShapeDtypeStruct((B, D), x.dtype),        # activation
        jax.ShapeDtypeStruct((1, 1), jnp.float32),    # loss
        jax.ShapeDtypeStruct((1, 1), jnp.float32),    # l1_loss
        jax.ShapeDtypeStruct((1, 1), jnp.float32),    # l0_loss
    )

    scalar_out = pl.BlockSpec((1, 1), lambda i, j: (0, 0))

    grid_spec = pltpu.PrefetchScalarGridSpec(
        num_scalar_prefetch=0,
        grid=(nb, nd),
        in_specs=[
            pl.BlockSpec((TB, A), lambda i, j: (i, 0)),   # x (resident across j)
            pl.BlockSpec((A, TD), lambda i, j: (0, j)),   # w_enc tile
            pl.BlockSpec((1, TD), lambda i, j: (0, j)),   # b_enc tile
            pl.BlockSpec((TD, A), lambda i, j: (j, 0)),   # w_dec tile
        ],
        out_specs=(
            pl.BlockSpec((TB, A), lambda i, j: (i, 0)),   # recon (written at j==last)
            pl.BlockSpec((TB, TD), lambda i, j: (i, j)),  # acts (written every step)
            scalar_out, scalar_out, scalar_out,           # loss, l1, l0
        ),
        scratch_shapes=[
            pltpu.VMEM((TB, A), jnp.float32),   # recon accumulator
            pltpu.VMEM((1, 1), jnp.float32),    # mse running sum
            pltpu.VMEM((1, 1), jnp.float32),    # l1 running sum
            pltpu.VMEM((1, 1), jnp.float32),    # l0 running sum
        ],
    )

    recon, acts, loss, l1, l0 = pl.pallas_call(
        kernel,
        out_shape=out_shape,
        grid_spec=grid_spec,
        compiler_params=pltpu.CompilerParams(
            # Batch axis is NOT 'parallel': the scalar-loss accumulators are
            # carried sequentially across batch tiles (megacore-sharding i
            # would split the reduction).  Dict axis is the reduction axis.
            dimension_semantics=("arbitrary", "arbitrary"),
            # 48 MiB scoped VMEM: above the 16/32 MiB defaults, with headroom
            # below the 64 MiB physical VMEM of v7x (128 MiB on v5e/v6e).
            vmem_limit_bytes=48 * 1024 * 1024,
        ),
    )(x, w_enc_t, b_enc.reshape(1, D), w_dec_t)

    return {
        "recon_input": recon,
        "input": x,
        "activation": acts,
        "loss": loss[0, 0],
        "l1_loss": l1[0, 0],
        "l0_loss": l0[0, 0],
    }


if __name__ == "__main__":
    # Small but MXU-aligned shapes so the 2x2 grid (batch tiles x dict tiles)
    # and the cross-tile recon/loss accumulators are actually exercised.
    B, ACTS_SIZE, DICT_SIZE = 512, 128, 1024
    L1_COEF = 1.0

    key = jax.random.PRNGKey(0)
    kx, kwe, kbe, kwd = jax.random.split(key, 4)

    x = jax.random.normal(kx, (B, ACTS_SIZE), dtype=jnp.float32)

    # Deterministic parameter init (uniform, PyTorch-Linear-like scale).
    bound_enc = 1.0 / (ACTS_SIZE ** 0.5)
    bound_dec = 1.0 / (DICT_SIZE ** 0.5)
    # stored already transposed: [acts_size, dict_size]
    w_enc_t = jax.random.uniform(kwe, (ACTS_SIZE, DICT_SIZE),
                                 minval=-bound_enc, maxval=bound_enc,
                                 dtype=jnp.float32)
    b_enc = jax.random.uniform(kbe, (DICT_SIZE,),
                               minval=-bound_enc, maxval=bound_enc,
                               dtype=jnp.float32)
    # stored already transposed: [dict_size, acts_size]
    w_dec_t = jax.random.uniform(kwd, (DICT_SIZE, ACTS_SIZE),
                                 minval=-bound_dec, maxval=bound_dec,
                                 dtype=jnp.float32)

    out = sae_forward(x, w_enc_t, b_enc, w_dec_t, l1_coef=L1_COEF,
                      tb=256, td=512)  # -> grid (2, 2)
    jax.block_until_ready(out)

    # Pure-JAX reference check (relu mode), highest-precision matmuls.
    hi = jax.lax.Precision.HIGHEST
    acts_ref = jnp.maximum(jnp.dot(x, w_enc_t, precision=hi) + b_enc[None, :], 0.0)
    recon_ref = jnp.dot(acts_ref, w_dec_t, precision=hi)
    mse_ref = jnp.mean((x - recon_ref) ** 2)
    l1_ref = jnp.mean(acts_ref)
    l0_ref = jnp.mean((acts_ref != 0).astype(jnp.float32))
    loss_ref = mse_ref + L1_COEF * l1_ref

    assert jnp.allclose(out["recon_input"], recon_ref, atol=2e-3, rtol=2e-3)
    assert jnp.allclose(out["activation"], acts_ref, atol=2e-3, rtol=2e-3)
    assert jnp.allclose(out["loss"], loss_ref, atol=2e-3, rtol=2e-3)
    assert jnp.allclose(out["l1_loss"], l1_ref, atol=2e-3, rtol=2e-3)
    assert jnp.allclose(out["l0_loss"], l0_ref, atol=2e-3, rtol=2e-3)

    # TODO(synk): 'topk' mode (torch.topk + scatter mask) not implemented; only 'relu' mode.
    print("KERNEL_OK")
</pallas_src>

<mosaic_0001>
module attributes {stable_mosaic.version = 11 : i64} {
  func.func @sae_kernel(%arg0: i32, %arg1: i32, %arg2: memref<256x128xf32, #tpu.memory_space<vmem>>, %arg3: memref<128x512xf32, #tpu.memory_space<vmem>>, %arg4: memref<1x512xf32, #tpu.memory_space<vmem>>, %arg5: memref<512x128xf32, #tpu.memory_space<vmem>>, %arg6: memref<256x128xf32, #tpu.memory_space<vmem>>, %arg7: memref<256x512xf32, #tpu.memory_space<vmem>>, %arg8: memref<1x1xf32, #tpu.memory_space<vmem>>, %arg9: memref<1x1xf32, #tpu.memory_space<vmem>>, %arg10: memref<1x1xf32, #tpu.memory_space<vmem>>, %arg11: memref<256x128xf32, #tpu.memory_space<vmem>>, %arg12: memref<1x1xf32, #tpu.memory_space<vmem>>, %arg13: memref<1x1xf32, #tpu.memory_space<vmem>>, %arg14: memref<1x1xf32, #tpu.memory_space<vmem>>) attributes {dimension_semantics = [#tpu.dimension_semantics<arbitrary>, #tpu.dimension_semantics<arbitrary>], iteration_bounds = array<i64: 2, 2>, scalar_prefetch = 0 : i64, scratch_operands = 4 : i64, tpu.core_type = #tpu.core_type<tc>, window_params = [{transform_indices = @transform_0, window_bounds = array<i64: 256, 128>}, {transform_indices = @transform_1, window_bounds = array<i64: 128, 512>}, {transform_indices = @transform_2, window_bounds = array<i64: 1, 512>}, {transform_indices = @transform_3, window_bounds = array<i64: 512, 128>}, {transform_indices = @transform_4, window_bounds = array<i64: 256, 128>}, {transform_indices = @transform_5, window_bounds = array<i64: 256, 512>}, {pipeline_mode = #tpu.pipeline_mode<synchronous>, transform_indices = @transform_6, window_bounds = array<i64: 1, 1>}, {pipeline_mode = #tpu.pipeline_mode<synchronous>, transform_indices = @transform_7, window_bounds = array<i64: 1, 1>}, {pipeline_mode = #tpu.pipeline_mode<synchronous>, transform_indices = @transform_8, window_bounds = array<i64: 1, 1>}]} {
    %c0_i32 = arith.constant 0 : i32
    %0 = arith.cmpi eq, %arg0, %c0_i32 : i32
    %c0_i32_0 = arith.constant 0 : i32
    %1 = arith.cmpi eq, %arg1, %c0_i32_0 : i32
    %2 = arith.andi %0, %1 : i1
    %3 = arith.extui %2 : i1 to i32
    %c0_i32_1 = arith.constant 0 : i32
    %4 = arith.cmpi ne, %3, %c0_i32_1 : i32
    scf.if %4 {
      %cst_34 = arith.constant 0.000000e+00 : f32
      %50 = vector.broadcast %cst_34 : f32 to vector<1x1xf32>
      %c0_35 = arith.constant 0 : index
      %c0_36 = arith.constant 0 : index
      %51 = vector.load %arg12[%c0_35, %c0_36] : memref<1x1xf32, #tpu.memory_space<vmem>>, vector<1x1xf32>
      tpu.vector_store %arg12[%c0_35, %c0_36], %50 {strides = array<i32>} : memref<1x1xf32, #tpu.memory_space<vmem>>, vector<1x1xf32>,
      %cst_37 = arith.constant 0.000000e+00 : f32
      %52 = vector.broadcast %cst_37 : f32 to vector<1x1xf32>
      %c0_38 = arith.constant 0 : index
      %c0_39 = arith.constant 0 : index
      %53 = vector.load %arg13[%c0_38, %c0_39] : memref<1x1xf32, #tpu.memory_space<vmem>>, vector<1x1xf32>
      tpu.vector_store %arg13[%c0_38, %c0_39], %52 {strides = array<i32>} : memref<1x1xf32, #tpu.memory_space<vmem>>, vector<1x1xf32>,
      %cst_40 = arith.constant 0.000000e+00 : f32
      %54 = vector.broadcast %cst_40 : f32 to vector<1x1xf32>
      %c0_41 = arith.constant 0 : index
      %c0_42 = arith.constant 0 : index
      %55 = vector.load %arg14[%c0_41, %c0_42] : memref<1x1xf32, #tpu.memory_space<vmem>>, vector<1x1xf32>
      tpu.vector_store %arg14[%c0_41, %c0_42], %54 {strides = array<i32>} : memref<1x1xf32, #tpu.memory_space<vmem>>, vector<1x1xf32>,
    } else {
    }
    %c0_i32_2 = arith.constant 0 : i32
    %5 = arith.cmpi eq, %arg1, %c0_i32_2 : i32
    %6 = arith.extui %5 : i1 to i32
    %c0_i32_3 = arith.constant 0 : i32
    %7 = arith.cmpi ne, %6, %c0_i32_3 : i32
    scf.if %7 {
      %cst_34 = arith.constant 0.000000e+00 : f32
      %50 = vector.broadcast %cst_34 : f32 to vector<256x128xf32>
      %c0_35 = arith.constant 0 : index
      %c0_36 = arith.constant 0 : index
      %51 = vector.load %arg11[%c0_35, %c0_36] : memref<256x128xf32, #tpu.memory_space<vmem>>, vector<256x128xf32>
      tpu.vector_store %arg11[%c0_35, %c0_36], %50 {strides = array<i32>} : memref<256x128xf32, #tpu.memory_space<vmem>>, vector<256x128xf32>,
    } else {
    }
    %c0 = arith.constant 0 : index
    %c0_4 = arith.constant 0 : index
    %8 = vector.load %arg2[%c0, %c0_4] : memref<256x128xf32, #tpu.memory_space<vmem>>, vector<256x128xf32>
    %c0_5 = arith.constant 0 : index
    %c0_6 = arith.constant 0 : index
    %9 = vector.load %arg3[%c0_5, %c0_6] : memref<128x512xf32, #tpu.memory_space<vmem>>, vector<128x512xf32>
    %cst = arith.constant dense<0.000000e+00> : vector<256x512xf32>
    %10 = tpu.matmul %8, %9, %cst {dimension_numbers = #tpu.dot_dimension_numbers<[1], [0], [0], [1], [0, 0, 1, 1], [], []>} : vector<256x128xf32>, vector<128x512xf32>, vector<256x512xf32> -> vector<256x512xf32>
    %c0_7 = arith.constant 0 : index
    %c0_8 = arith.constant 0 : index
    %11 = vector.load %arg4[%c0_7, %c0_8] : memref<1x512xf32, #tpu.memory_space<vmem>>, vector<1x512xf32>
    %12 = vector.broadcast %11 : vector<1x512xf32> to vector<256x512xf32>
    %13 = arith.addf %10, %12 : vector<256x512xf32>
    %cst_9 = arith.constant 0.000000e+00 : f32
    %14 = vector.broadcast %cst_9 : f32 to vector<256x512xf32>
    %15 = arith.maximumf %13, %14 : vector<256x512xf32>
    %c0_10 = arith.constant 0 : index
    %c0_11 = arith.constant 0 : index
    %16 = vector.load %arg7[%c0_10, %c0_11] : memref<256x512xf32, #tpu.memory_space<vmem>>, vector<256x512xf32>
    tpu.vector_store %arg7[%c0_10, %c0_11], %15 {strides = array<i32>} : memref<256x512xf32, #tpu.memory_space<vmem>>, vector<256x512xf32>,
    %c0_12 = arith.constant 0 : index
    %c0_13 = arith.constant 0 : index
    %17 = vector.load %arg11[%c0_12, %c0_13] : memref<256x128xf32, #tpu.memory_space<vmem>>, vector<256x128xf32>
    %c0_14 = arith.constant 0 : index
    %c0_15 = arith.constant 0 : index
    %18 = vector.load %arg5[%c0_14, %c0_15] : memref<512x128xf32, #tpu.memory_space<vmem>>, vector<512x128xf32>
    %cst_16 = arith.constant dense<0.000000e+00> : vector<256x128xf32>
    %19 = tpu.matmul %15, %18, %cst_16 {dimension_numbers = #tpu.dot_dimension_numbers<[1], [0], [0], [1], [0, 0, 1, 1], [], []>} : vector<256x512xf32>, vector<512x128xf32>, vector<256x128xf32> -> vector<256x128xf32>
    %20 = arith.addf %17, %19 : vector<256x128xf32>
    %c0_17 = arith.constant 0 : index
    %c0_18 = arith.constant 0 : index
    %21 = vector.load %arg11[%c0_17, %c0_18] : memref<256x128xf32, #tpu.memory_space<vmem>>, vector<256x128xf32>
    tpu.vector_store %arg11[%c0_17, %c0_18], %20 {strides = array<i32>} : memref<256x128xf32, #tpu.memory_space<vmem>>, vector<256x128xf32>,
    %c0_19 = arith.constant 0 : index
    %c0_20 = arith.constant 0 : index
    %22 = vector.load %arg13[%c0_19, %c0_20] : memref<1x1xf32, #tpu.memory_space<vmem>>, vector<1x1xf32>
    %23 = vector.shape_cast %15 : vector<256x512xf32> to vector<1x256x512xf32>
    %cst_21 = arith.constant dense<0.000000e+00> : vector<1xf32>
    %24 = vector.multi_reduction <add>, %23, %cst_21 [1, 2] : vector<1x256x512xf32> to vector<1xf32>
    %25 = vector.shape_cast %24 : vector<1xf32> to vector<1x1x1xf32>
    %26 = vector.extract %25[0, 0, 0] : f32 from vector<1x1x1xf32>
    %27 = vector.broadcast %26 : f32 to vector<1x1xf32>
    %28 = arith.addf %22, %27 : vector<1x1xf32>
    %c0_22 = arith.constant 0 : index
    %c0_23 = arith.constant 0 : index
    %29 = vector.load %arg13[%c0_22, %c0_23] : memref<1x1xf32, #tpu.memory_space<vmem>>, vector<1x1xf32>
    tpu.vector_store %arg13[%c0_22, %c0_23], %28 {strides = array<i32>} : memref<1x1xf32, #tpu.memory_space<vmem>>, vector<1x1xf32>,
    %c0_24 = arith.constant 0 : index
    %c0_25 = arith.constant 0 : index
    %30 = vector.load %arg14[%c0_24, %c0_25] : memref<1x1xf32, #tpu.memory_space<vmem>>, vector<1x1xf32>
    %cst_26 = arith.constant 0.000000e+00 : f32
    %31 = vector.broadcast %cst_26 : f32 to vector<256x512xf32>
    %32 = arith.cmpf one, %15, %31 : vector<256x512xf32>
    %33 = arith.extui %32 : vector<256x512xi1> to vector<256x512xi32>
    %34 = arith.sitofp %33 : vector<256x512xi32> to vector<256x512xf32>
    %35 = vector.shape_cast %34 : vector<256x512xf32> to vector<1x256x512xf32>
    %cst_27 = arith.constant dense<0.000000e+00> : vector<1xf32>
    %36 = vector.multi_reduction <add>, %35, %cst_27 [1, 2] : vector<1x256x512xf32> to vector<1xf32>
    %37 = vector.shape_cast %36 : vector<1xf32> to vector<1x1x1xf32>
    %38 = vector.extract %37[0, 0, 0] : f32 from vector<1x1x1xf32>
    %39 = vector.broadcast %38 : f32 to vector<1x1xf32>
    %40 = arith.addf %30, %39 : vector<1x1xf32>
    %c0_28 = arith.constant 0 : index
    %c0_29 = arith.constant 0 : index
    %41 = vector.load %arg14[%c0_28, %c0_29] : memref<1x1xf32, #tpu.memory_space<vmem>>, vector<1x1xf32>
    tpu.vector_store %arg14[%c0_28, %c0_29], %40 {strides = array<i32>} : memref<1x1xf32, #tpu.memory_space<vmem>>, vector<1x1xf32>,
    %c1_i32 = arith.constant 1 : i32
    %42 = arith.cmpi eq, %arg1, %c1_i32 : i32
    %43 = arith.extui %42 : i1 to i32
    %c0_i32_30 = arith.constant 0 : i32
    %44 = arith.cmpi ne, %43, %c0_i32_30 : i32
    scf.if %44 {
      %c0_34 = arith.constant 0 : index
      %c0_35 = arith.constant 0 : index
      %50 = vector.load %arg11[%c0_34, %c0_35] : memref<256x128xf32, #tpu.memory_space<vmem>>, vector<256x128xf32>
      %c0_36 = arith.constant 0 : index
      %c0_37 = arith.constant 0 : index
      %51 = vector.load %arg6[%c0_36, %c0_37] : memref<256x128xf32, #tpu.memory_space<vmem>>, vector<256x128xf32>
      tpu.vector_store %arg6[%c0_36, %c0_37], %50 {strides = array<i32>} : memref<256x128xf32, #tpu.memory_space<vmem>>, vector<256x128xf32>,
      %52 = arith.subf %8, %50 : vector<256x128xf32>
      %c0_38 = arith.constant 0 : index
      %c0_39 = arith.constant 0 : index
      %53 = vector.load %arg12[%c0_38, %c0_39] : memref<1x1xf32, #tpu.memory_space<vmem>>, vector<1x1xf32>
      %54 = arith.mulf %52, %52 : vector<256x128xf32>
      %55 = vector.shape_cast %54 : vector<256x128xf32> to vector<1x256x128xf32>
      %cst_40 = arith.constant dense<0.000000e+00> : vector<1xf32>
      %56 = vector.multi_reduction <add>, %55, %cst_40 [1, 2] : vector<1x256x128xf32> to vector<1xf32>
      %57 = vector.shape_cast %56 : vector<1xf32> to vector<1x1x1xf32>
      %58 = vector.extract %57[0, 0, 0] : f32 from vector<1x1x1xf32>
      %59 = vector.broadcast %58 : f32 to vector<1x1xf32>
      %60 = arith.addf %53, %59 : vector<1x1xf32>
      %c0_41 = arith.constant 0 : index
      %c0_42 = arith.constant 0 : index
      %61 = vector.load %arg12[%c0_41, %c0_42] : memref<1x1xf32, #tpu.memory_space<vmem>>, vector<1x1xf32>
      tpu.vector_store %arg12[%c0_41, %c0_42], %60 {strides = array<i32>} : memref<1x1xf32, #tpu.memory_space<vmem>>, vector<1x1xf32>,
    } else {
    }
    %c1_i32_31 = arith.constant 1 : i32
    %45 = arith.cmpi eq, %arg0, %c1_i32_31 : i32
    %c1_i32_32 = arith.constant 1 : i32
    %46 = arith.cmpi eq, %arg1, %c1_i32_32 : i32
    %47 = arith.andi %45, %46 : i1
    %48 = arith.extui %47 : i1 to i32
    %c0_i32_33 = arith.constant 0 : i32
    %49 = arith.cmpi ne, %48, %c0_i32_33 : i32
    scf.if %49 {
      %c0_34 = arith.constant 0 : index
      %c0_35 = arith.constant 0 : index
      %50 = vector.load %arg12[%c0_34, %c0_35] : memref<1x1xf32, #tpu.memory_space<vmem>>, vector<1x1xf32>
      %cst_36 = arith.constant 1.52587891E-5 : f32
      %51 = vector.broadcast %cst_36 : f32 to vector<1x1xf32>
      %52 = arith.mulf %50, %51 : vector<1x1xf32>
      %c0_37 = arith.constant 0 : index
      %c0_38 = arith.constant 0 : index
      %53 = vector.load %arg13[%c0_37, %c0_38] : memref<1x1xf32, #tpu.memory_space<vmem>>, vector<1x1xf32>
      %cst_39 = arith.constant 1.90734863E-6 : f32
      %54 = vector.broadcast %cst_39 : f32 to vector<1x1xf32>
      %55 = arith.mulf %53, %54 : vector<1x1xf32>
      %c0_40 = arith.constant 0 : index
      %c0_41 = arith.constant 0 : index
      %56 = vector.load %arg14[%c0_40, %c0_41] : memref<1x1xf32, #tpu.memory_space<vmem>>, vector<1x1xf32>
      %cst_42 = arith.constant 1.90734863E-6 : f32
      %57 = vector.broadcast %cst_42 : f32 to vector<1x1xf32>
      %58 = arith.mulf %56, %57 : vector<1x1xf32>
      %cst_43 = arith.constant 1.000000e+00 : f32
      %59 = vector.broadcast %cst_43 : f32 to vector<1x1xf32>
      %60 = arith.mulf %59, %55 : vector<1x1xf32>
      %61 = arith.addf %52, %60 : vector<1x1xf32>
      %c0_44 = arith.constant 0 : index
      %c0_45 = arith.constant 0 : index
      %62 = vector.load %arg8[%c0_44, %c0_45] : memref<1x1xf32, #tpu.memory_space<vmem>>, vector<1x1xf32>
      tpu.vector_store %arg8[%c0_44, %c0_45], %61 {strides = array<i32>} : memref<1x1xf32, #tpu.memory_space<vmem>>, vector<1x1xf32>,
      %c0_46 = arith.constant 0 : index
      %c0_47 = arith.constant 0 : index
      %63 = vector.load %arg9[%c0_46, %c0_47] : memref<1x1xf32, #tpu.memory_space<vmem>>, vector<1x1xf32>
      tpu.vector_store %arg9[%c0_46, %c0_47], %55 {strides = array<i32>} : memref<1x1xf32, #tpu.memory_space<vmem>>, vector<1x1xf32>,
      %c0_48 = arith.constant 0 : index
      %c0_49 = arith.constant 0 : index
      %64 = vector.load %arg10[%c0_48, %c0_49] : memref<1x1xf32, #tpu.memory_space<vmem>>, vector<1x1xf32>
      tpu.vector_store %arg10[%c0_48, %c0_49], %58 {strides = array<i32>} : memref<1x1xf32, #tpu.memory_space<vmem>>, vector<1x1xf32>,
    } else {
    }
    return
  }
  func.func @transform_0(%arg0: i32, %arg1: i32) -> (i32, i32) {
    %c0_i32 = arith.constant 0 : i32
    %c0_i32_0 = arith.constant 0 : i32
    return %arg0, %c0_i32 : i32, i32
  }
  func.func @transform_1(%arg0: i32, %arg1: i32) -> (i32, i32) {
    %c0_i32 = arith.constant 0 : i32
    %c0_i32_0 = arith.constant 0 : i32
    return %c0_i32, %arg1 : i32, i32
  }
  func.func @transform_2(%arg0: i32, %arg1: i32) -> (i32, i32) {
    %c0_i32 = arith.constant 0 : i32
    %c0_i32_0 = arith.constant 0 : i32
    return %c0_i32, %arg1 : i32, i32
  }
  func.func @transform_3(%arg0: i32, %arg1: i32) -> (i32, i32) {
    %c0_i32 = arith.constant 0 : i32
    %c0_i32_0 = arith.constant 0 : i32
    return %arg1, %c0_i32 : i32, i32
  }
  func.func @transform_4(%arg0: i32, %arg1: i32) -> (i32, i32) {
    %c0_i32 = arith.constant 0 : i32
    %c0_i32_0 = arith.constant 0 : i32
    return %arg0, %c0_i32 : i32, i32
  }
  func.func @transform_5(%arg0: i32, %arg1: i32) -> (i32, i32) {
    %c0_i32 = arith.constant 0 : i32
    return %arg0, %arg1 : i32, i32
  }
  func.func @transform_6(%arg0: i32, %arg1: i32) -> (i32, i32) {
    %c0_i32 = arith.constant 0 : i32
    %c0_i32_0 = arith.constant 0 : i32
    %c0_i32_1 = arith.constant 0 : i32
    return %c0_i32, %c0_i32_0 : i32, i32
  }
  func.func @transform_7(%arg0: i32, %arg1: i32) -> (i32, i32) {
    %c0_i32 = arith.constant 0 : i32
    %c0_i32_0 = arith.constant 0 : i32
    %c0_i32_1 = arith.constant 0 : i32
    return %c0_i32, %c0_i32_0 : i32, i32
  }
  func.func @transform_8(%arg0: i32, %arg1: i32) -> (i32, i32) {
    %c0_i32 = arith.constant 0 : i32
    %c0_i32_0 = arith.constant 0 : i32
    %c0_i32_1 = arith.constant 0 : i32
    return %c0_i32, %c0_i32_0 : i32, i32
  }
}

</mosaic_0001>

<llo_original>
// kernel: tpu_custom_call.1
$region0: #{tpu_custom_call.1}
  #allocation0 [shape = 'u32[]', space=smem, size = 0x4, offset = 0x4, fixed_abs, tag = 'smem constant byte address 0x4 - core index']
  #allocation1 [shape = 'u32[144,128]{1,0:T(1,128)}', space=vmem, size = 0x12000, scoped, tag = 'internal scratch']
  #allocation2 [shape = 'f32[256,128]{1,0:T(8,128)}', space=vmem, size = 0x20000, scoped, tag = 'scratch operand']
  #allocation3 [shape = 'f32[1,1]{1,0:T(1,128)}', space=vmem, size = 0x200, scoped, tag = 'scratch operand']
  #allocation4 [shape = 'f32[1,1]{1,0:T(1,128)}', space=vmem, size = 0x200, scoped, tag = 'scratch operand']
  #allocation5 [shape = 'f32[1,1]{1,0:T(1,128)}', space=vmem, size = 0x200, scoped, tag = 'scratch operand']
  %s0 = inlined_call_operand.hbm [shape: f32[512,128], index: 0, kind: input, shape index: {}]
  %s1 = inlined_call_operand.hbm [shape: f32[128,1024], index: 1, kind: input, shape index: {}]
  %s2 = inlined_call_operand.hbm [shape: f32[1,1024], index: 2, kind: input, shape index: {}]
  %s3 = inlined_call_operand.hbm [shape: f32[1024,128], index: 3, kind: input, shape index: {}]
  %s4 = inlined_call_operand.hbm [shape: f32[512,128], index: 4, kind: output, shape index: {0}]
  %s5 = inlined_call_operand.hbm [shape: f32[512,1024], index: 5, kind: output, shape index: {1}]
  %s6 = inlined_call_operand.hbm [shape: f32[1,1], index: 6, kind: output, shape index: {2}]
  %s7 = inlined_call_operand.hbm [shape: f32[1,1], index: 7, kind: output, shape index: {3}]
  %s8 = inlined_call_operand.hbm [shape: f32[1,1], index: 8, kind: output, shape index: {4}]
  %9 = xla_tuple %s4, %s5, %s6, %s7, %s8
  %s10 = sld [smem:[#allocation0]]
  $region113: #{tpu_custom_call.1} parent=0
    _
  %s12 = ssub.s32 1, %s10
  %s13 = scalar_select 0, %s12, %s10
  $region1: #{tpu_custom_call.1} parent=0
    #allocation6 [shape = 'u8[262144]{0}', space=vmem, size = 0x40000, scoped, tag = 'input window, operand 0']
    #allocation7 [shape = 's32[2]{0}', space=sflag, size = 0x8, scoped, tag = 'scoped memory for tpu_custom_call.1']
    #allocation8 [shape = 's32[2]{0}', space=sflag, size = 0x8, scoped, tag = 'scoped memory for tpu_custom_call.1']
    #allocation9 [shape = 'u8[524288]{0}', space=vmem, size = 0x80000, scoped, tag = 'input window, operand 1']
    #allocation10 [shape = 's32[2]{0}', space=sflag, size = 0x8, scoped, tag = 'scoped memory for tpu_custom_call.1']
    #allocation11 [shape = 'u8[4096]{0}', space=vmem, size = 0x1000, scoped, tag = 'input window, operand 2']
    #allocation12 [shape = 'u8[524288]{0}', space=vmem, size = 0x80000, scoped, tag = 'input window, operand 3']
    #allocation13 [shape = 's32[2]{0}', space=sflag, size = 0x8, scoped, tag = 'scoped memory for tpu_custom_call.1']
    #allocation14 [shape = 'u8[262144]{0}', space=vmem, size = 0x40000, scoped, tag = 'output window, operand 0']
    #allocation15 [shape = 'u8[1048576]{0}', space=vmem, size = 0x100000, scoped, tag = 'output window, operand 1']
    #allocation16 [shape = 's32[2]{0}', space=sflag, size = 0x8, scoped, tag = 'scoped memory for tpu_custom_call.1']
    #allocation17 [shape = 'u8[512]{0}', space=vmem, size = 0x400, scoped, tag = 'output window, operand 2, single buffered']
    #allocation18 [shape = 'u8[512]{0}', space=vmem, size = 0x400, scoped, tag = 'output window, operand 3, single buffered']
    #allocation19 [shape = 's32[1]{0}', space=sflag, size = 0x4, scoped, tag = 'scoped memory for tpu_custom_call.1']
    #allocation20 [shape = 'u8[512]{0}', space=vmem, size = 0x400, scoped, tag = 'output window, operand 4, single buffered']
    %14 = vsyncpa [#allocation7], 0
    %s15 = scalar_lea.sflag [#allocation7], 1
    %16 = vsyncpa %s15, 0
    %17 = vsyncpa [#allocation10], 0
    %s18 = scalar_lea.sflag [#allocation10], 1
    %19 = vsyncpa %s18, 0
    %20 = vsyncpa [#allocation13], 0
    %s21 = scalar_lea.sflag [#allocation13], 1
    %22 = vsyncpa %s21, 0
    %23 = vsyncpa [#allocation8], 0
    %s24 = scalar_lea.sflag [#allocation8], 1
    %25 = vsyncpa %s24, 0
    %26 = vsyncpa [#allocation16], 0
    %s27 = scalar_lea.sflag [#allocation16], 1
    %28 = vsyncpa %s27, 0
    %29 = vsyncpa [#allocation19], 0
    loop: start=0, step=1, limit=6
    $region2: #{tpu_custom_call.1} parent=1 // loop_pre_header
      _
    $region3: #{tpu_custom_call.1} parent=1 // loop_header
      %s31 = sphi 0, %s35
      %p32 = scmp.ge.s32.totalorder %s31, 6
      %s38 = sphi 0, %s50
      %s39 = sphi 0, %s46
      %s40 = sphi 0, %s38
      %s41 = sphi 0, %s39
      %s42 = sphi 0, %s40
      %s43 = sphi 0, %s41
      %s53 = sphi 0, %s55
      %s56 = sphi 0, %s53
      %s57 = sphi 0, %s56
      %s73 = sphi 0, %s57
      %s79 = sphi 0, %s81
      %s82 = sphi 0, %s79
      %s83 = sphi 0, %s82
      %s99 = sphi 0, %s83
      %s105 = sphi 0, %s107
      %s108 = sphi 0, %s105
      %s109 = sphi 0, %s108
      %s125 = sphi 0, %s109
      %s131 = sphi 0, %s133
      %s134 = sphi 0, %s131
      %s135 = sphi 0, %s134
      %s151 = sphi 0, %s135
      %s157 = sphi 0, %s159
      %s160 = sphi 0, %s157
      %s161 = sphi 0, %s160
      %s177 = sphi 0, %s161
      %s185 = sphi 0, %s187
      %s188 = sphi 0, %s185
      %s189 = sphi 0, %s188
      %s205 = sphi 0, %s189
      %s209 = sphi 0, %s209
      %s211 = sphi 0, %s209
      %s212 = sphi 0, %s211
      %s226 = sphi 0, %s212
      %s230 = sphi 0, %s230
      %s232 = sphi 0, %s230
      %s233 = sphi 0, %s232
      %s247 = sphi 0, %s233
      %s251 = sphi 0, %s251
      %s253 = sphi 0, %s251
      %s254 = sphi 0, %s253
      %s268 = sphi 0, %s254
    $region4: #{tpu_custom_call.1} parent=1 // loop_header_branch
      %34 = sbr.rel (%p32) target = $region8
    $region5: #{tpu_custom_call.1} parent=1 // loop_body
      %s36 = ssub.s32 %s31, 1
      %s37 = ssub.s32 %s31, 2
      %s44 = sadd.s32 1, %s39
      %p45 = scmp.ge.s32.totalorder %s44, 2
      %s46 = scalar_select %p45, 0, %s44
      %s47 = sadd.s32 1, %s38
      %s48 = scalar_select %p45, %s47, %s38
      %p49 = scmp.ge.s32.totalorder %s48, 2
      %s50 = scalar_select %p49, 0, %s48
      %s51 = ssub.s32 %s38, %s50
      %p52 = scmp.eq.s32.totalorder %s51, 0
      %s54 = sadd.s32 %s53, 1
      %s55 = scalar_select %p52, %s53, %s54
      %p58 = pneg %p52
      %p59 = scmp.eq.s32.totalorder %s31, 3
      %p60 = por %p58, %p59
      %p61 = scmp.ne.s32.totalorder %s53, %s56
      %p62 = scmp.eq.s32.totalorder %s31, 0
      %p63 = por %p61, %p62
      %p64 = scmp.ne.s32.totalorder %s53, %s56
      %p65 = scmp.eq.s32.totalorder %s36, 3
      %p66 = por %p64, %p65
      %p67 = scmp.ne.s32.totalorder %s56, %s57
      %p68 = scmp.eq.s32.totalorder %s36, 0
      %p69 = por %p67, %p68
      %p70 = scmp.ne.s32.totalorder %s56, %s57
      %p71 = scmp.eq.s32.totalorder %s37, 3
      %p72 = por %p70, %p71
      %p74 = scmp.ne.s32.totalorder %s57, %s73
      %p75 = scmp.eq.s32.totalorder %s37, 0
      %p76 = por %p74, %p75
      %s77 = ssub.s32 %s39, %s46
      %p78 = scmp.eq.s32.totalorder %s77, 0
      %s80 = sadd.s32 %s79, 1
      %s81 = scalar_select %p78, %s79, %s80
      %p84 = pneg %p78
      %p85 = scmp.eq.s32.totalorder %s31, 3
      %p86 = por %p84, %p85
      %p87 = scmp.ne.s32.totalorder %s79, %s82
      %p88 = scmp.eq.s32.totalorder %s31, 0
      %p89 = por %p87, %p88
      %p90 = scmp.ne.s32.totalorder %s79, %s82
      %p91 = scmp.eq.s32.totalorder %s36, 3
      %p92 = por %p90, %p91
      %p93 = scmp.ne.s32.totalorder %s82, %s83
      %p94 = scmp.eq.s32.totalorder %s36, 0
      %p95 = por %p93, %p94
      %p96 = scmp.ne.s32.totalorder %s82, %s83
      %p97 = scmp.eq.s32.totalorder %s37, 3
      %p98 = por %p96, %p97
      %p100 = scmp.ne.s32.totalorder %s83, %s99
      %p101 = scmp.eq.s32.totalorder %s37, 0
      %p102 = por %p100, %p101
      %s103 = ssub.s32 %s39, %s46
      %p104 = scmp.eq.s32.totalorder %s103, 0
      %s106 = sadd.s32 %s105, 1
      %s107 = scalar_select %p104, %s105, %s106
      %p110 = pneg %p104
      %p111 = scmp.eq.s32.totalorder %s31, 3
      %p112 = por %p110, %p111
      %p113 = scmp.ne.s32.totalorder %s105, %s108
      %p114 = scmp.eq.s32.totalorder %s31, 0
      %p115 = por %p113, %p114
      %p116 = scmp.ne.s32.totalorder %s105, %s108
      %p117 = scmp.eq.s32.totalorder %s36, 3
      %p118 = por %p116, %p117
      %p119 = scmp.ne.s32.totalorder %s108, %s109
      %p120 = scmp.eq.s32.totalorder %s36, 0
      %p121 = por %p119, %p120
      %p122 = scmp.ne.s32.totalorder %s108, %s109
      %p123 = scmp.eq.s32.totalorder %s37, 3
      %p124 = por %p122, %p123
      %p126 = scmp.ne.s32.totalorder %s109, %s125
      %p127 = scmp.eq.s32.totalorder %s37, 0
      %p128 = por %p126, %p127
      %s129 = ssub.s32 %s39, %s46
      %p130 = scmp.eq.s32.totalorder %s129, 0
      %s132 = sadd.s32 %s131, 1
      %s133 = scalar_select %p130, %s131, %s132
      %p136 = pneg %p130
      %p137 = scmp.eq.s32.totalorder %s31, 3
      %p138 = por %p136, %p137
      %p139 = scmp.ne.s32.totalorder %s131, %s134
      %p140 = scmp.eq.s32.totalorder %s31, 0
      %p141 = por %p139, %p140
      %p142 = scmp.ne.s32.totalorder %s131, %s134
      %p143 = scmp.eq.s32.totalorder %s36, 3
      %p144 = por %p142, %p143
      %p145 = scmp.ne.s32.totalorder %s134, %s135
      %p146 = scmp.eq.s32.totalorder %s36, 0
      %p147 = por %p145, %p146
      %p148 = scmp.ne.s32.totalorder %s134, %s135
      %p149 = scmp.eq.s32.totalorder %s37, 3
      %p150 = por %p148, %p149
      %p152 = scmp.ne.s32.totalorder %s135, %s151
      %p153 = scmp.eq.s32.totalorder %s37, 0
      %p154 = por %p152, %p153
      %s155 = ssub.s32 %s38, %s50
      %p156 = scmp.eq.s32.totalorder %s155, 0
      %s158 = sadd.s32 %s157, 1
      %s159 = scalar_select %p156, %s157, %s158
      %p162 = pneg %p156
      %p163 = scmp.eq.s32.totalorder %s31, 3
      %p164 = por %p162, %p163
      %p165 = scmp.ne.s32.totalorder %s157, %s160
      %p166 = scmp.eq.s32.totalorder %s31, 0
      %p167 = por %p165, %p166
      %p168 = scmp.ne.s32.totalorder %s157, %s160
      %p169 = scmp.eq.s32.totalorder %s36, 3
      %p170 = por %p168, %p169
      %p171 = scmp.ne.s32.totalorder %s160, %s161
      %p172 = scmp.eq.s32.totalorder %s36, 0
      %p173 = por %p171, %p172
      %p174 = scmp.ne.s32.totalorder %s160, %s161
      %p175 = scmp.eq.s32.totalorder %s37, 3
      %p176 = por %p174, %p175
      %p178 = scmp.ne.s32.totalorder %s161, %s177
      %p179 = scmp.eq.s32.totalorder %s37, 0
      %p180 = por %p178, %p179
      %s181 = ssub.s32 %s38, %s50
      %s182 = ssub.s32 %s39, %s46
      %s183 = sor.u32 %s181, %s182
      %p184 = scmp.eq.s32.totalorder %s183, 0
      %s186 = sadd.s32 %s185, 1
      %s187 = scalar_select %p184, %s185, %s186
      %p190 = pneg %p184
      %p191 = scmp.eq.s32.totalorder %s31, 3
      %p192 = por %p190, %p191
      %p193 = scmp.ne.s32.totalorder %s185, %s188
      %p194 = scmp.eq.s32.totalorder %s31, 0
      %p195 = por %p193, %p194
      %p196 = scmp.ne.s32.totalorder %s185, %s188
      %p197 = scmp.eq.s32.totalorder %s36, 3
      %p198 = por %p196, %p197
      %p199 = scmp.ne.s32.totalorder %s188, %s189
      %p200 = scmp.eq.s32.totalorder %s36, 0
      %p201 = por %p199, %p200
      %p202 = scmp.ne.s32.totalorder %s188, %s189
      %p203 = scmp.eq.s32.totalorder %s37, 3
      %p204 = por %p202, %p203
      %p206 = scmp.ne.s32.totalorder %s189, %s205
      %p207 = scmp.eq.s32.totalorder %s37, 0
      %p208 = por %p206, %p207
      %s210 = sadd.s32 %s209, 1
      %p213 = scmp.eq.s32.totalorder %s31, 3
      %p214 = scmp.ne.s32.totalorder %s209, %s211
      %p215 = scmp.eq.s32.totalorder %s31, 0
      %p216 = por %p214, %p215
      %p217 = scmp.ne.s32.totalorder %s209, %s211
      %p218 = scmp.eq.s32.totalorder %s36, 3
      %p219 = por %p217, %p218
      %p220 = scmp.ne.s32.totalorder %s211, %s212
      %p221 = scmp.eq.s32.totalorder %s36, 0
      %p222 = por %p220, %p221
      %p223 = scmp.ne.s32.totalorder %s211, %s212
      %p224 = scmp.eq.s32.totalorder %s37, 3
      %p225 = por %p223, %p224
      %p227 = scmp.ne.s32.totalorder %s212, %s226
      %p228 = scmp.eq.s32.totalorder %s37, 0
      %p229 = por %p227, %p228
      %s231 = sadd.s32 %s230, 1
      %p234 = scmp.eq.s32.totalorder %s31, 3
      %p235 = scmp.ne.s32.totalorder %s230, %s232
      %p236 = scmp.eq.s32.totalorder %s31, 0
      %p237 = por %p235, %p236
      %p238 = scmp.ne.s32.totalorder %s230, %s232
      %p239 = scmp.eq.s32.totalorder %s36, 3
      %p240 = por %p238, %p239
      %p241 = scmp.ne.s32.totalorder %s232, %s233
      %p242 = scmp.eq.s32.totalorder %s36, 0
      %p243 = por %p241, %p242
      %p244 = scmp.ne.s32.totalorder %s232, %s233
      %p245 = scmp.eq.s32.totalorder %s37, 3
      %p246 = por %p244, %p245
      %p248 = scmp.ne.s32.totalorder %s233, %s247
      %p249 = scmp.eq.s32.totalorder %s37, 0
      %p250 = por %p248, %p249
      %s252 = sadd.s32 %s251, 1
      %p255 = scmp.eq.s32.totalorder %s31, 3
      %p256 = scmp.ne.s32.totalorder %s251, %s253
      %p257 = scmp.eq.s32.totalorder %s31, 0
      %p258 = por %p256, %p257
      %p259 = scmp.ne.s32.totalorder %s251, %s253
      %p260 = scmp.eq.s32.totalorder %s36, 3
      %p261 = por %p259, %p260
      %p262 = scmp.ne.s32.totalorder %s253, %s254
      %p263 = scmp.eq.s32.totalorder %s36, 0
      %p264 = por %p262, %p263
      %p265 = scmp.ne.s32.totalorder %s253, %s254
      %p266 = scmp.eq.s32.totalorder %s37, 3
      %p267 = por %p265, %p266
      %p269 = scmp.ne.s32.totalorder %s254, %s268
      %p270 = scmp.eq.s32.totalorder %s37, 0
      %p271 = por %p269, %p270
      %p272 = scmp.le.s32.totalorder 1, %s31
      %p273 = scmp.lt.s32.totalorder %s31, 5
      %p274 = pnand %p272, %p273
      %p275 = pneg %p274
      // Predicated region
      $region9: #{tpu_custom_call.1} parent=5 // pred_check
        _
      $region10: #{tpu_custom_call.1} parent=5 // pred_check_branch
        %277 = sbr.rel (%p274) target = $region12
      $region11: #{tpu_custom_call.1} parent=5 // pred_region
        %s278 = ssub.s32 %s31, 1
      $region12: #{tpu_custom_call.1} parent=5 // pred_fallthru
        _
      %p279 = scmp.lt.s32.totalorder %s31, 4
      // Predicated region
      $region13: #{tpu_custom_call.1} parent=5 // pred_check
        %p280 = pneg %p279
      $region14: #{tpu_custom_call.1} parent=5 // pred_check_branch
        %282 = sbr.rel (%p280) target = $region16
      $region15: #{tpu_custom_call.1} parent=5 // pred_region
        // Predicated region
        $region17: #{tpu_custom_call.1} parent=15 // pred_check
          %p283 = pneg %p63
        $region18: #{tpu_custom_call.1} parent=15 // pred_check_branch
          %285 = sbr.rel (%p283) target = $region20
        $region19: #{tpu_custom_call.1} parent=15 // pred_region
          %s286 = sand.u32 %s53, 1
          %s287 = scalar_lea.sflag [#allocation7], %s286
          %s288 = sand.u32 %s53, 1
          %s289 = smul.addr %s288, 256
          %s290 = scalar_lea.vmem [#allocation6], %s289
          %s291 = smul.u32 32, %s38
          %s293 = ssub.s32 4096, 4096
          %294 = vsyncadd %s287, %s293
          %s295 = smul.addr %s291, 128
          %s296 = scalar_lea.hbm %s0, %s295
          %s297 = sshll.u32 %s290, 4
          %s298 = int_to_ptr.vmem [resolvable:$true] %s297
          %303 = dma.hbm_to_vmem [thread:$0]  %s296, 4096, %s298, %s287, 128, 128, 8
        $region20: #{tpu_custom_call.1} parent=15 // pred_fallthru
          _
        // Predicated region
        $region21: #{tpu_custom_call.1} parent=15 // pred_check
          %p304 = pneg %p89
        $region22: #{tpu_custom_call.1} parent=15 // pred_check_branch
          %306 = sbr.rel (%p304) target = $region24
        $region23: #{tpu_custom_call.1} parent=15 // pred_region
          %s307 = sand.u32 %s31, 1
          %s308 = scalar_lea.sflag [#allocation10], %s307
          %s309 = sand.u32 %s79, 1
          %s310 = smul.addr %s309, 512
          %s311 = scalar_lea.vmem [#allocation9], %s310
          %s312 = smul.u32 4, %s39
          %s314 = ssub.s32 8192, 8192
          %315 = vsyncadd %s308, %s314
          %s316 = smul.addr %s312, 128
          %s317 = scalar_lea.hbm %s1, %s316
          %s318 = sshll.u32 %s311, 4
          %s319 = int_to_ptr.vmem [resolvable:$true] %s318
          %324 = dma.hbm_to_vmem [thread:$0]  %s317, 8192, %s319, %s308, 1024, 512, 32
        $region24: #{tpu_custom_call.1} parent=15 // pred_fallthru
          _
        // Predicated region
        $region25: #{tpu_custom_call.1} parent=15 // pred_check
          %p325 = pneg %p115
        $region26: #{tpu_custom_call.1} parent=15 // pred_check_branch
          %327 = sbr.rel (%p325) target = $region28
        $region27: #{tpu_custom_call.1} parent=15 // pred_region
          %s328 = sand.u32 %s31, 1
          %s329 = scalar_lea.sflag [#allocation10], %s328
          %s330 = sand.u32 %s105, 1
          %s331 = smul.addr %s330, 4
          %s332 = scalar_lea.vmem [#allocation11], %s331
          %s333 = smul.u32 4, %s39
          %s335 = ssub.s32 64, 64
          %336 = vsyncadd %s329, %s335
          %s337 = smul.addr %s333, 16
          %s338 = scalar_lea.hbm %s2, %s337
          %s340 = sshll.u32 %s332, 4
          %s341 = int_to_ptr.vmem [resolvable:$true] %s340
          %343 = dma.hbm_to_vmem [thread:$0]  %s338, 64, %s341, %s329
        $region28: #{tpu_custom_call.1} parent=15 // pred_fallthru
          _
        // Predicated region
        $region29: #{tpu_custom_call.1} parent=15 // pred_check
          %p344 = pneg %p141
        $region30: #{tpu_custom_call.1} parent=15 // pred_check_branch
          %346 = sbr.rel (%p344) target = $region32
        $region31: #{tpu_custom_call.1} parent=15 // pred_region
          %s347 = sand.u32 %s131, 1
          %s348 = scalar_lea.sflag [#allocation13], %s347
          %s349 = sand.u32 %s131, 1
          %s350 = smul.addr %s349, 512
          %s351 = scalar_lea.vmem [#allocation12], %s350
          %s352 = smul.u32 64, %s39
          %s354 = ssub.s32 8192, 8192
          %355 = vsyncadd %s348, %s354
          %s356 = smul.addr %s352, 128
          %s357 = scalar_lea.hbm %s3, %s356
          %s358 = sshll.u32 %s351, 4
          %s359 = int_to_ptr.vmem [resolvable:$true] %s358
          %364 = dma.hbm_to_vmem [thread:$0]  %s357, 8192, %s359, %s348, 128, 128, 8
        $region32: #{tpu_custom_call.1} parent=15 // pred_fallthru
          _
      $region16: #{tpu_custom_call.1} parent=5 // pred_fallthru
        _
      %p365 = scmp.le.s32.totalorder 1, %s31
      %p366 = scmp.lt.s32.totalorder %s31, 5
      %p367 = pnand %p365, %p366
      %p368 = pneg %p367
      // Predicated region
      $region33: #{tpu_custom_call.1} parent=5 // pred_check
        _
      $region34: #{tpu_custom_call.1} parent=5 // pred_check_branch
        %370 = sbr.rel (%p367) target = $region36
      $region35: #{tpu_custom_call.1} parent=5 // pred_region
        %s371 = ssub.s32 %s31, 1
        %s372 = sand.u32 %s56, 1
        %s373 = scalar_lea.sflag [#allocation7], %s372
        %s374 = sand.u32 %s56, 1
        %s375 = smul.addr %s374, 256
        %s376 = scalar_lea.vmem [#allocation6], %s375
        // Predicated region
        $region37: #{tpu_custom_call.1} parent=35 // pred_check
          %p377 = pneg %p69
        $region38: #{tpu_custom_call.1} parent=35 // pred_check_branch
          %379 = sbr.rel (%p377) target = $region40
        $region39: #{tpu_custom_call.1} parent=35 // pred_region
          %380 = dma.done %s373, 4096
        $region40: #{tpu_custom_call.1} parent=35 // pred_fallthru
          _
        %s381 = sand.u32 %s36, 1
        %s382 = scalar_lea.sflag [#allocation10], %s381
        %s383 = sand.u32 %s82, 1
        %s384 = smul.addr %s383, 512
        %s385 = scalar_lea.vmem [#allocation9], %s384
        // Predicated region
        $region41: #{tpu_custom_call.1} parent=35 // pred_check
          %p386 = pneg %p95
        $region42: #{tpu_custom_call.1} parent=35 // pred_check_branch
          %388 = sbr.rel (%p386) target = $region44
        $region43: #{tpu_custom_call.1} parent=35 // pred_region
          %389 = dma.done %s382, 8192
        $region44: #{tpu_custom_call.1} parent=35 // pred_fallthru
          _
        %s390 = sand.u32 %s36, 1
        %s391 = scalar_lea.sflag [#allocation10], %s390
        %s392 = sand.u32 %s108, 1
        %s393 = smul.addr %s392, 4
        %s394 = scalar_lea.vmem [#allocation11], %s393
        // Predicated region
        $region45: #{tpu_custom_call.1} parent=35 // pred_check
          %p395 = pneg %p121
        $region46: #{tpu_custom_call.1} parent=35 // pred_check_branch
          %397 = sbr.rel (%p395) target = $region48
        $region47: #{tpu_custom_call.1} parent=35 // pred_region
          %398 = dma.done %s391, 64
        $region48: #{tpu_custom_call.1} parent=35 // pred_fallthru
          _
        %s399 = sand.u32 %s134, 1
        %s400 = scalar_lea.sflag [#allocation13], %s399
        %s401 = sand.u32 %s134, 1
        %s402 = smul.addr %s401, 512
        %s403 = scalar_lea.vmem [#allocation12], %s402
        // Predicated region
        $region49: #{tpu_custom_call.1} parent=35 // pred_check
          %p404 = pneg %p147
        $region50: #{tpu_custom_call.1} parent=35 // pred_check_branch
          %406 = sbr.rel (%p404) target = $region52
        $region51: #{tpu_custom_call.1} parent=35 // pred_region
          %407 = dma.done %s400, 8192
        $region52: #{tpu_custom_call.1} parent=35 // pred_fallthru
          _
        %s408 = sand.u32 %s56, 1
        %s409 = scalar_lea.sflag [#allocation7], %s408
        %s410 = sand.u32 %s56, 1
        %s411 = smul.addr %s410, 256
        %s412 = scalar_lea.vmem [#allocation6], %s411
        %p413 = pneg %p69
        %p414 = pneg %p66
        %s415 = sand.u32 %s36, 1
        %s416 = scalar_lea.sflag [#allocation10], %s415
        %s417 = sand.u32 %s82, 1
        %s418 = smul.addr %s417, 512
        %s419 = scalar_lea.vmem [#allocation9], %s418
        %p420 = pneg %p95
        %p421 = pneg %p92
        %s422 = sand.u32 %s36, 1
        %s423 = scalar_lea.sflag [#allocation10], %s422
        %s424 = sand.u32 %s108, 1
        %s425 = smul.addr %s424, 4
        %s426 = scalar_lea.vmem [#allocation11], %s425
        %p427 = pneg %p121
        %p428 = pneg %p118
        %s429 = sand.u32 %s134, 1
        %s430 = scalar_lea.sflag [#allocation13], %s429
        %s431 = sand.u32 %s134, 1
        %s432 = smul.addr %s431, 512
        %s433 = scalar_lea.vmem [#allocation12], %s432
        %p434 = pneg %p147
        %p435 = pneg %p144
        %p436 = pneg %p173
        %p437 = pneg %p170
        %s438 = sand.u32 %s160, 1
        %s439 = scalar_lea.sflag [#allocation8], %s438
        %s440 = sand.u32 %s160, 1
        %s441 = smul.addr %s440, 256
        %s442 = scalar_lea.vmem [#allocation14], %s441
        %p443 = pneg %p201
        %p444 = pneg %p198
        %s445 = sand.u32 %s36, 1
        %s446 = scalar_lea.sflag [#allocation16], %s445
        %s447 = sand.u32 %s188, 1
        %s448 = smul.addr %s447, 1024
        %s449 = scalar_lea.vmem [#allocation15], %s448
        %p450 = pneg %p222
        %p451 = pneg %p219
        %p452 = pneg %p243
        %p453 = pneg %p240
        %p454 = pneg %p264
        %p455 = pneg %p261
        %s456 = smul.u32 32, %s40
        %s457 = smul.u32 4, %s41
        %s458 = smul.u32 4, %s41
        %s459 = smul.u32 64, %s41
        %s460 = smul.u32 32, %s40
        %s461 = smul.u32 32, %s40
        %s462 = smul.u32 4, %s41
        %p463 = scmp.eq.s32.totalorder %s40, 0
        %p464 = scmp.eq.s32.totalorder %s41, 0
        %p465 = pnand %p463, %p464
        %p466 = pneg %p465
        // Predicated region
        $region53: #{tpu_custom_call.1} parent=35 // pred_check
          _
        $region54: #{tpu_custom_call.1} parent=35 // pred_check_branch
          %468 = sbr.rel (%p465) target = $region56
        $region55: #{tpu_custom_call.1} parent=35 // pred_region
          %vm469 = vcmask 0
          %470 = vst.msk [vmem:[#allocation3] sm:$0x1] %vm469, 0.0
          %471 = vst.msk [vmem:[#allocation4] sm:$0x1] %vm469, 0.0
          %472 = vst.msk [vmem:[#allocation5] sm:$0x1] %vm469, 0.0
        $region56: #{tpu_custom_call.1} parent=35 // pred_fallthru
          _
        // Predicated region
        $region57: #{tpu_custom_call.1} parent=35 // pred_check
          %p473 = pneg %p464
        $region58: #{tpu_custom_call.1} parent=35 // pred_check_branch
          %475 = sbr.rel (%p473) target = $region60
        $region59: #{tpu_custom_call.1} parent=35 // pred_region
          %476 = vst [vmem:[#allocation2] sm:$0xff] 0.0
          %477 = vst [vmem:[#allocation2 + $0x8] sm:$0xff] 0.0
          %478 = vst [vmem:[#allocation2 + $0x10] sm:$0xff] 0.0
          %479 = vst [vmem:[#allocation2 + $0x18] sm:$0xff] 0.0
          %480 = vst [vmem:[#allocation2 + $0x20] sm:$0xff] 0.0
          %481 = vst [vmem:[#allocation2 + $0x28] sm:$0xff] 0.0
          %482 = vst [vmem:[#allocation2 + $0x30] sm:$0xff] 0.0
          %483 = vst [vmem:[#allocation2 + $0x38] sm:$0xff] 0.0
          %484 = vst [vmem:[#allocation2 + $0x40] sm:$0xff] 0.0
          %485 = vst [vmem:[#allocation2 + $0x48] sm:$0xff] 0.0
          %486 = vst [vmem:[#allocation2 + $0x50] sm:$0xff] 0.0
          %487 = vst [vmem:[#allocation2 + $0x58] sm:$0xff] 0.0
          %488 = vst [vmem:[#allocation2 + $0x60] sm:$0xff] 0.0
          %489 = vst [vmem:[#allocation2 + $0x68] sm:$0xff] 0.0
          %490 = vst [vmem:[#allocation2 + $0x70] sm:$0xff] 0.0
          %491 = vst [vmem:[#allocation2 + $0x78] sm:$0xff] 0.0
          %492 = vst [vmem:[#allocation2 + $0x80] sm:$0xff] 0.0
          %493 = vst [vmem:[#allocation2 + $0x88] sm:$0xff] 0.0
          %494 = vst [vmem:[#allocation2 + $0x90] sm:$0xff] 0.0
          %495 = vst [vmem:[#allocation2 + $0x98] sm:$0xff] 0.0
          %496 = vst [vmem:[#allocation2 + $0xa0] sm:$0xff] 0.0
          %497 = vst [vmem:[#allocation2 + $0xa8] sm:$0xff] 0.0
          %498 = vst [vmem:[#allocation2 + $0xb0] sm:$0xff] 0.0
          %499 = vst [vmem:[#allocation2 + $0xb8] sm:$0xff] 0.0
          %500 = vst [vmem:[#allocation2 + $0xc0] sm:$0xff] 0.0
          %501 = vst [vmem:[#allocation2 + $0xc8] sm:$0xff] 0.0
          %502 = vst [vmem:[#allocation2 + $0xd0] sm:$0xff] 0.0
          %503 = vst [vmem:[#allocation2 + $0xd8] sm:$0xff] 0.0
          %504 = vst [vmem:[#allocation2 + $0xe0] sm:$0xff] 0.0
          %505 = vst [vmem:[#allocation2 + $0xe8] sm:$0xff] 0.0
          %506 = vst [vmem:[#allocation2 + $0xf0] sm:$0xff] 0.0
          %507 = vst [vmem:[#allocation2 + $0xf8] sm:$0xff] 0.0
        $region60: #{tpu_custom_call.1} parent=35 // pred_fallthru
          _
        %v508 = vld [vmem:[%s376] sm:$0xff]
        %v509 = vld [vmem:[%s376 + $0x8] sm:$0xff]
        %v510 = vld [vmem:[%s376 + $0x10] sm:$0xff]
        %v511 = vld [vmem:[%s376 + $0x18] sm:$0xff]
        %v512 = vld [vmem:[%s376 + $0x20] sm:$0xff]
        %v513 = vld [vmem:[%s376 + $0x28] sm:$0xff]
        %v514 = vld [vmem:[%s376 + $0x30] sm:$0xff]
        %v515 = vld [vmem:[%s376 + $0x38] sm:$0xff]
        %v516 = vld [vmem:[%s376 + $0x40] sm:$0xff]
        %v517 = vld [vmem:[%s376 + $0x48] sm:$0xff]
        %v518 = vld [vmem:[%s376 + $0x50] sm:$0xff]
        %v519 = vld [vmem:[%s376 + $0x58] sm:$0xff]
        %v520 = vld [vmem:[%s376 + $0x60] sm:$0xff]
        %v521 = vld [vmem:[%s376 + $0x68] sm:$0xff]
        %v522 = vld [vmem:[%s376 + $0x70] sm:$0xff]
        %v523 = vld [vmem:[%s376 + $0x78] sm:$0xff]
        %v524 = vld [vmem:[%s376 + $0x80] sm:$0xff]
        %v525 = vld [vmem:[%s376 + $0x88] sm:$0xff]
        %v526 = vld [vmem:[%s376 + $0x90] sm:$0xff]
        %v527 = vld [vmem:[%s376 + $0x98] sm:$0xff]
        %v528 = vld [vmem:[%s376 + $0xa0] sm:$0xff]
        %v529 = vld [vmem:[%s376 + $0xa8] sm:$0xff]
        %v530 = vld [vmem:[%s376 + $0xb0] sm:$0xff]
        %v531 = vld [vmem:[%s376 + $0xb8] sm:$0xff]
        %v532 = vld [vmem:[%s376 + $0xc0] sm:$0xff]
        %v533 = vld [vmem:[%s376 + $0xc8] sm:$0xff]
        %v534 = vld [vmem:[%s376 + $0xd0] sm:$0xff]
        %v535 = vld [vmem:[%s376 + $0xd8] sm:$0xff]
        %v536 = vld [vmem:[%s376 + $0xe0] sm:$0xff]
        %v537 = vld [vmem:[%s376 + $0xe8] sm:$0xff]
        %v538 = vld [vmem:[%s376 + $0xf0] sm:$0xff]
        %v539 = vld [vmem:[%s376 + $0xf8] sm:$0xff]
        %v540 = vld [vmem:[%s385] sm:$0xff]
        %v541 = vld [vmem:[%s385 + $0x8] sm:$0xff]
        %v542 = vld [vmem:[%s385 + $0x10] sm:$0xff]
        %v543 = vld [vmem:[%s385 + $0x18] sm:$0xff]
        %v544 = vld [vmem:[%s385 + $0x20] sm:$0xff]
        %v545 = vld [vmem:[%s385 + $0x28] sm:$0xff]
        %v546 = vld [vmem:[%s385 + $0x30] sm:$0xff]
        %v547 = vld [vmem:[%s385 + $0x38] sm:$0xff]
        %v548 = vld [vmem:[%s385 + $0x40] sm:$0xff]
        %v549 = vld [vmem:[%s385 + $0x48] sm:$0xff]
        %v550 = vld [vmem:[%s385 + $0x50] sm:$0xff]
        %v551 = vld [vmem:[%s385 + $0x58] sm:$0xff]
        %v552 = vld [vmem:[%s385 + $0x60] sm:$0xff]
        %v553 = vld [vmem:[%s385 + $0x68] sm:$0xff]
        %v554 = vld [vmem:[%s385 + $0x70] sm:$0xff]
        %v555 = vld [vmem:[%s385 + $0x78] sm:$0xff]
        %v556 = vld [vmem:[%s385 + $0x80] sm:$0xff]
        %v557 = vld [vmem:[%s385 + $0x88] sm:$0xff]
        %v558 = vld [vmem:[%s385 + $0x90] sm:$0xff]
        %v559 = vld [vmem:[%s385 + $0x98] sm:$0xff]
        %v560 = vld [vmem:[%s385 + $0xa0] sm:$0xff]
        %v561 = vld [vmem:[%s385 + $0xa8] sm:$0xff]
        %v562 = vld [vmem:[%s385 + $0xb0] sm:$0xff]
        %v563 = vld [vmem:[%s385 + $0xb8] sm:$0xff]
        %v564 = vld [vmem:[%s385 + $0xc0] sm:$0xff]
        %v565 = vld [vmem:[%s385 + $0xc8] sm:$0xff]
        %v566 = vld [vmem:[%s385 + $0xd0] sm:$0xff]
        %v567 = vld [vmem:[%s385 + $0xd8] sm:$0xff]
        %v568 = vld [vmem:[%s385 + $0xe0] sm:$0xff]
        %v569 = vld [vmem:[%s385 + $0xe8] sm:$0xff]
        %v570 = vld [vmem:[%s385 + $0xf0] sm:$0xff]
        %v571 = vld [vmem:[%s385 + $0xf8] sm:$0xff]
        %v572 = vld [vmem:[%s385 + $0x100] sm:$0xff]
        %v573 = vld [vmem:[%s385 + $0x108] sm:$0xff]
        %v574 = vld [vmem:[%s385 + $0x110] sm:$0xff]
        %v575 = vld [vmem:[%s385 + $0x118] sm:$0xff]
        %v576 = vld [vmem:[%s385 + $0x120] sm:$0xff]
        %v577 = vld [vmem:[%s385 + $0x128] sm:$0xff]
        %v578 = vld [vmem:[%s385 + $0x130] sm:$0xff]
        %v579 = vld [vmem:[%s385 + $0x138] sm:$0xff]
        %v580 = vld [vmem:[%s385 + $0x140] sm:$0xff]
        %v581 = vld [vmem:[%s385 + $0x148] sm:$0xff]
        %v582 = vld [vmem:[%s385 + $0x150] sm:$0xff]
        %v583 = vld [vmem:[%s385 + $0x158] sm:$0xff]
        %v584 = vld [vmem:[%s385 + $0x160] sm:$0xff]
        %v585 = vld [vmem:[%s385 + $0x168] sm:$0xff]
        %v586 = vld [vmem:[%s385 + $0x170] sm:$0xff]
        %v587 = vld [vmem:[%s385 + $0x178] sm:$0xff]
        %v588 = vld [vmem:[%s385 + $0x180] sm:$0xff]
        %v589 = vld [vmem:[%s385 + $0x188] sm:$0xff]
        %v590 = vld [vmem:[%s385 + $0x190] sm:$0xff]
        %v591 = vld [vmem:[%s385 + $0x198] sm:$0xff]
        %v592 = vld [vmem:[%s385 + $0x1a0] sm:$0xff]
        %v593 = vld [vmem:[%s385 + $0x1a8] sm:$0xff]
        %v594 = vld [vmem:[%s385 + $0x1b0] sm:$0xff]
        %v595 = vld [vmem:[%s385 + $0x1b8] sm:$0xff]
        %v596 = vld [vmem:[%s385 + $0x1c0] sm:$0xff]
        %v597 = vld [vmem:[%s385 + $0x1c8] sm:$0xff]
        %v598 = vld [vmem:[%s385 + $0x1d0] sm:$0xff]
        %v599 = vld [vmem:[%s385 + $0x1d8] sm:$0xff]
        %v600 = vld [vmem:[%s385 + $0x1e0] sm:$0xff]
        %v601 = vld [vmem:[%s385 + $0x1e8] sm:$0xff]
        %v602 = vld [vmem:[%s385 + $0x1f0] sm:$0xff]
        %v603 = vld [vmem:[%s385 + $0x1f8] sm:$0xff]
        %v604 = vld [vmem:[%s394] sm:$0xf]
        %v606 = vlaneseq
        %v607 = vshrl.u32 %v606, 7
        %v608 = vsub.s32 0, %v607
        %v609 = vrot.slane %v604, %v608
        %v610 = vlaneseq
        %v611 = vshrl.u32 %v610, 7
        %v612 = vsub.s32 1, %v611
        %v613 = vrot.slane %v604, %v612
        %v614 = vlaneseq
        %v615 = vshrl.u32 %v614, 7
        %v616 = vsub.s32 2, %v615
        %v617 = vrot.slane %v604, %v616
        %v618 = vlaneseq
        %v619 = vshrl.u32 %v618, 7
        %v620 = vsub.s32 3, %v619
        %v621 = vrot.slane %v604, %v620
        %626 = vmatprep.subr.mxu0 %v541
        %627 = vmatpush1.msra.mxu0 %v540
        %628 = vmatprep.subr.mxu0 %v545
        %629 = vmatpush1.msra.mxu0 %v544
        %630 = vmatprep.subr.mxu0 %v549
        %631 = vmatpush1.msra.mxu0 %v548
        %632 = vmatprep.subr.mxu0 %v553
        %633 = vmatpush1.msra.mxu0 %v552
        %634 = vmatprep.subr.mxu0 %v557
        %635 = vmatpush1.msra.mxu0 %v556
        %636 = vmatprep.subr.mxu0 %v561
        %637 = vmatpush1.msra.mxu0 %v560
        %638 = vmatprep.subr.mxu0 %v565
        %639 = vmatpush1.msra.mxu0 %v564
        %640 = vmatprep.subr.mxu0 %v569
        %641 = vmatpush1.msra.mxu0 %v568
        %642 = vmatprep.subr.mxu0 %v573
        %643 = vmatpush1.msra.mxu0 %v572
        %644 = vmatprep.subr.mxu0 %v577
        %645 = vmatpush1.msra.mxu0 %v576
        %646 = vmatprep.subr.mxu0 %v581
        %647 = vmatpush1.msra.mxu0 %v580
        %648 = vmatprep.subr.mxu0 %v585
        %649 = vmatpush1.msra.mxu0 %v584
        %650 = vmatprep.subr.mxu0 %v589
        %651 = vmatpush1.msra.mxu0 %v588
        %652 = vmatprep.subr.mxu0 %v593
        %653 = vmatpush1.msra.mxu0 %v592
        %654 = vmatprep.subr.mxu0 %v597
        %655 = vmatpush1.msra.mxu0 %v596
        %656 = vmatprep.subr.mxu0 %v601
        %657 = vmatpush1.msra.mxu0 %v600
        %658 = vmatprep.subr.mxu0 0.0
        %659 = vmatpush1.msra.mxu0 0.0
        %660 = vmatprep.subr.mxu0 0.0
        %661 = vmatpush1.msra.mxu0 0.0
        %662 = vmatprep.subr.mxu0 0.0
        %663 = vmatpush1.msra.mxu0 0.0
        %664 = vmatprep.subr.mxu0 0.0
        %665 = vmatpush1.msra.mxu0 0.0
        %666 = vmatprep.subr.mxu0 0.0
        %667 = vmatpush1.msra.mxu0 0.0
        %668 = vmatprep.subr.mxu0 0.0
        %669 = vmatpush1.msra.mxu0 0.0
        %670 = vmatprep.subr.mxu0 0.0
        %671 = vmatpush1.msra.mxu0 0.0
        %672 = vmatprep.subr.mxu0 0.0
        %673 = vmatpush1.msra.mxu0 0.0
        %674 = vmatprep.subr.mxu0 0.0
        %675 = vmatpush1.msra.mxu0 0.0
        %676 = vmatprep.subr.mxu0 0.0
        %677 = vmatpush1.msra.mxu0 0.0
        %678 = vmatprep.subr.mxu0 0.0
        %679 = vmatpush1.msra.mxu0 0.0
        %680 = vmatprep.subr.mxu0 0.0
        %681 = vmatpush1.msra.mxu0 0.0
        %682 = vmatprep.subr.mxu0 0.0
        %683 = vmatpush1.msra.mxu0 0.0
        %684 = vmatprep.subr.mxu0 0.0
        %685 = vmatpush1.msra.mxu0 0.0
        %686 = vmatprep.subr.mxu0 0.0
        %687 = vmatpush1.msra.mxu0 0.0
        %688 = vmatprep.subr.mxu0 0.0
        %689 = vmatpush1.msra.mxu0 0.0
        %690 = vmatprep.mubr.f32.mxu0 0.0
        %691 = vmatmul.mubr.f32.gmra.mrb[0].mxu0 %v508
        %v692 = vpop.f32.mrb[0].mxu0
        %v693 = vadd.f32 %v609, %v692
        %v694 = vpop.f32.mrb[0].mxu0
        %v695 = vadd.f32 %v613, %v694
        %696 = vmatprep.mubr.f32.mxu0 0.0
        %697 = vmatmul.mubr.f32.gmra.mrb[0].mxu0 %v509
        %v698 = vpop.f32.mrb[0].mxu0
        %v699 = vadd.f32 %v609, %v698
        %v700 = vpop.f32.mrb[0].mxu0
        %v701 = vadd.f32 %v613, %v700
        %702 = vmatprep.mubr.f32.mxu0 0.0
        %703 = vmatmul.mubr.f32.gmra.mrb[0].mxu0 %v510
        %v704 = vpop.f32.mrb[0].mxu0
        %v705 = vadd.f32 %v609, %v704
        %v706 = vpop.f32.mrb[0].mxu0
        %v707 = vadd.f32 %v613, %v706
        %708 = vmatprep.mubr.f32.mxu0 0.0
        %709 = vmatmul.mubr.f32.gmra.mrb[0].mxu0 %v511
        %v710 = vpop.f32.mrb[0].mxu0
        %v711 = vadd.f32 %v609, %v710
        %v712 = vpop.f32.mrb[0].mxu0
        %v713 = vadd.f32 %v613, %v712
        %714 = vmatprep.mubr.f32.mxu0 0.0
        %715 = vmatmul.mubr.f32.gmra.mrb[0].mxu0 %v512
        %v716 = vpop.f32.mrb[0].mxu0
        %v717 = vadd.f32 %v609, %v716
        %v718 = vpop.f32.mrb[0].mxu0
        %v719 = vadd.f32 %v613, %v718
        %720 = vmatprep.mubr.f32.mxu0 0.0
        %721 = vmatmul.mubr.f32.gmra.mrb[0].mxu0 %v513
        %v722 = vpop.f32.mrb[0].mxu0
        %v723 = vadd.f32 %v609, %v722
        %v724 = vpop.f32.mrb[0].mxu0
        %v725 = vadd.f32 %v613, %v724
        %726 = vmatprep.mubr.f32.mxu0 0.0
        %727 = vmatmul.mubr.f32.gmra.mrb[0].mxu0 %v514
        %v728 = vpop.f32.mrb[0].mxu0
        %v729 = vadd.f32 %v609, %v728
        %v730 = vpop.f32.mrb[0].mxu0
        %v731 = vadd.f32 %v613, %v730
        %732 = vmatprep.mubr.f32.mxu0 0.0
        %733 = vmatmul.mubr.f32.gmra.mrb[0].mxu0 %v515
        %v734 = vpop.f32.mrb[0].mxu0
        %v735 = vadd.f32 %v609, %v734
        %v736 = vpop.f32.mrb[0].mxu0
        %v737 = vadd.f32 %v613, %v736
        %738 = vmatprep.mubr.f32.mxu0 0.0
        %739 = vmatmul.mubr.f32.gmra.mrb[0].mxu0 %v516
        %v740 = vpop.f32.mrb[0].mxu0
        %v741 = vadd.f32 %v609, %v740
        %v742 = vpop.f32.mrb[0].mxu0
        %v743 = vadd.f32 %v613, %v742
        %744 = vmatprep.mubr.f32.mxu0 0.0
        %745 = vmatmul.mubr.f32.gmra.mrb[0].mxu0 %v517
        %v746 = vpop.f32.mrb[0].mxu0
        %v747 = vadd.f32 %v609, %v746
        %v748 = vpop.f32.mrb[0].mxu0
        %v749 = vadd.f32 %v613, %v748
        %750 = vmatprep.mubr.f32.mxu0 0.0
        %751 = vmatmul.mubr.f32.gmra.mrb[0].mxu0 %v518
        %v752 = vpop.f32.mrb[0].mxu0
        %v753 = vadd.f32 %v609, %v752
        %v754 = vpop.f32.mrb[0].mxu0
        %v755 = vadd.f32 %v613, %v754
        %756 = vmatprep.mubr.f32.mxu0 0.0
        %757 = vmatmul.mubr.f32.gmra.mrb[0].mxu0 %v519
        %v758 = vpop.f32.mrb[0].mxu0
        %v759 = vadd.f32 %v609, %v758
        %v760 = vpop.f32.mrb[0].mxu0
        %v761 = vadd.f32 %v613, %v760
        %762 = vmatprep.mubr.f32.mxu0 0.0
        %763 = vmatmul.mubr.f32.gmra.mrb[0].mxu0 %v520
        %v764 = vpop.f32.mrb[0].mxu0
        %v765 = vadd.f32 %v609, %v764
        %v766 = vpop.f32.mrb[0].mxu0
        %v767 = vadd.f32 %v613, %v766
        %768 = vmatprep.mubr.f32.mxu0 0.0
        %769 = vmatmul.mubr.f32.gmra.mrb[0].mxu0 %v521
        %v770 = vpop.f32.mrb[0].mxu0
        %v771 = vadd.f32 %v609, %v770
        %v772 = vpop.f32.mrb[0].mxu0
        %v773 = vadd.f32 %v613, %v772
        %774 = vmatprep.mubr.f32.mxu0 0.0
        %775 = vmatmul.mubr.f32.gmra.mrb[0].mxu0 %v522
        %v776 = vpop.f32.mrb[0].mxu0
        %v777 = vadd.f32 %v609, %v776
        %v778 = vpop.f32.mrb[0].mxu0
        %v779 = vadd.f32 %v613, %v778
        %780 = vmatprep.mubr.f32.mxu0 0.0
        %781 = vmatmul.mubr.f32.gmra.mrb[0].mxu0 %v523
        %v782 = vpop.f32.mrb[0].mxu0
        %v783 = vadd.f32 %v609, %v782
        %v784 = vpop.f32.mrb[0].mxu0
        %v785 = vadd.f32 %v613, %v784
        %786 = vmatprep.mubr.f32.mxu0 0.0
        %787 = vmatmul.mubr.f32.gmra.mrb[0].mxu0 %v524
        %v788 = vpop.f32.mrb[0].mxu0
        %v789 = vadd.f32 %v609, %v788
        %v790 = vpop.f32.mrb[0].mxu0
        %v791 = vadd.f32 %v613, %v790
        %792 = vmatprep.mubr.f32.mxu0 0.0
        %793 = vmatmul.mubr.f32.gmra.mrb[0].mxu0 %v525
        %v794 = vpop.f32.mrb[0].mxu0
        %v795 = vadd.f32 %v609, %v794
        %v796 = vpop.f32.mrb[0].mxu0
        %v797 = vadd.f32 %v613, %v796
        %798 = vmatprep.mubr.f32.mxu0 0.0
        %799 = vmatmul.mubr.f32.gmra.mrb[0].mxu0 %v526
        %v800 = vpop.f32.mrb[0].mxu0
        %v801 = vadd.f32 %v609, %v800
        %v802 = vpop.f32.mrb[0].mxu0
        %v803 = vadd.f32 %v613, %v802
        %804 = vmatprep.mubr.f32.mxu0 0.0
        %805 = vmatmul.mubr.f32.gmra.mrb[0].mxu0 %v527
        %v806 = vpop.f32.mrb[0].mxu0
        %v807 = vadd.f32 %v609, %v806
        %v808 = vpop.f32.mrb[0].mxu0
        %v809 = vadd.f32 %v613, %v808
        %810 = vmatprep.mubr.f32.mxu0 0.0
        %811 = vmatmul.mubr.f32.gmra.mrb[0].mxu0 %v528
        %v812 = vpop.f32.mrb[0].mxu0
        %v813 = vadd.f32 %v609, %v812
        %v814 = vpop.f32.mrb[0].mxu0
        %v815 = vadd.f32 %v613, %v814
        %816 = vmatprep.mubr.f32.mxu0 0.0
        %817 = vmatmul.mubr.f32.gmra.mrb[0].mxu0 %v529
        %v818 = vpop.f32.mrb[0].mxu0
        %v819 = vadd.f32 %v609, %v818
        %v820 = vpop.f32.mrb[0].mxu0
        %v821 = vadd.f32 %v613, %v820
        %822 = vmatprep.mubr.f32.mxu0 0.0
        %823 = vmatmul.mubr.f32.gmra.mrb[0].mxu0 %v530
        %v824 = vpop.f32.mrb[0].mxu0
        %v825 = vadd.f32 %v609, %v824
        %v826 = vpop.f32.mrb[0].mxu0
        %v827 = vadd.f32 %v613, %v826
        %828 = vmatprep.mubr.f32.mxu0 0.0
        %829 = vmatmul.mubr.f32.gmra.mrb[0].mxu0 %v531
        %v830 = vpop.f32.mrb[0].mxu0
        %v831 = vadd.f32 %v609, %v830
        %v832 = vpop.f32.mrb[0].mxu0
        %v833 = vadd.f32 %v613, %v832
        %834 = vmatprep.mubr.f32.mxu0 0.0
        %835 = vmatmul.mubr.f32.gmra.mrb[0].mxu0 %v532
        %v836 = vpop.f32.mrb[0].mxu0
        %v837 = vadd.f32 %v609, %v836
        %v838 = vpop.f32.mrb[0].mxu0
        %v839 = vadd.f32 %v613, %v838
        %840 = vmatprep.mubr.f32.mxu0 0.0
        %841 = vmatmul.mubr.f32.gmra.mrb[0].mxu0 %v533
        %v842 = vpop.f32.mrb[0].mxu0
        %v843 = vadd.f32 %v609, %v842
        %v844 = vpop.f32.mrb[0].mxu0
        %v845 = vadd.f32 %v613, %v844
        %846 = vmatprep.mubr.f32.mxu0 0.0
        %847 = vmatmul.mubr.f32.gmra.mrb[0].mxu0 %v534
        %v848 = vpop.f32.mrb[0].mxu0
        %v849 = vadd.f32 %v609, %v848
        %v850 = vpop.f32.mrb[0].mxu0
        %v851 = vadd.f32 %v613, %v850
        %852 = vmatprep.mubr.f32.mxu0 0.0
        %853 = vmatmul.mubr.f32.gmra.mrb[0].mxu0 %v535
        %v854 = vpop.f32.mrb[0].mxu0
        %v855 = vadd.f32 %v609, %v854
        %v856 = vpop.f32.mrb[0].mxu0
        %v857 = vadd.f32 %v613, %v856
        %858 = vmatprep.mubr.f32.mxu0 0.0
        %859 = vmatmul.mubr.f32.gmra.mrb[0].mxu0 %v536
        %v860 = vpop.f32.mrb[0].mxu0
        %v861 = vadd.f32 %v609, %v860
        %v862 = vpop.f32.mrb[0].mxu0
        %v863 = vadd.f32 %v613, %v862
        %864 = vmatprep.mubr.f32.mxu0 0.0
        %865 = vmatmul.mubr.f32.gmra.mrb[0].mxu0 %v537
        %v866 = vpop.f32.mrb[0].mxu0
        %v867 = vadd.f32 %v609, %v866
        %v868 = vpop.f32.mrb[0].mxu0
        %v869 = vadd.f32 %v613, %v868
        %870 = vmatprep.mubr.f32.mxu0 0.0
        %871 = vmatmul.mubr.f32.gmra.mrb[0].mxu0 %v538
        %v872 = vpop.f32.mrb[0].mxu0
        %v873 = vadd.f32 %v609, %v872
        %v874 = vpop.f32.mrb[0].mxu0
        %v875 = vadd.f32 %v613, %v874
        %876 = vmatprep.mubr.f32.mxu0 0.0
        %877 = vmatmul.mubr.f32.gmra.mrb[0].mxu0 %v539
        %v878 = vpop.f32.mrb[0].mxu0
        %v879 = vadd.f32 %v609, %v878
        %v880 = vpop.f32.mrb[0].mxu0
        %v881 = vadd.f32 %v613, %v880
        %882 = vdwg.mxu0
        %883 = vmatprep.subr.mxu0 %v543
        %884 = vmatpush1.msra.mxu0 %v542
        %885 = vmatprep.subr.mxu0 %v547
        %886 = vmatpush1.msra.mxu0 %v546
        %887 = vmatprep.subr.mxu0 %v551
        %888 = vmatpush1.msra.mxu0 %v550
        %889 = vmatprep.subr.mxu0 %v555
        %890 = vmatpush1.msra.mxu0 %v554
        %891 = vmatprep.subr.mxu0 %v559
        %892 = vmatpush1.msra.mxu0 %v558
        %893 = vmatprep.subr.mxu0 %v563
        %894 = vmatpush1.msra.mxu0 %v562
        %895 = vmatprep.subr.mxu0 %v567
        %896 = vmatpush1.msra.mxu0 %v566
        %897 = vmatprep.subr.mxu0 %v571
        %898 = vmatpush1.msra.mxu0 %v570
        %899 = vmatprep.subr.mxu0 %v575
        %900 = vmatpush1.msra.mxu0 %v574
        %901 = vmatprep.subr.mxu0 %v579
        %902 = vmatpush1.msra.mxu0 %v578
        %903 = vmatprep.subr.mxu0 %v583
        %904 = vmatpush1.msra.mxu0 %v582
        %905 = vmatprep.subr.mxu0 %v587
        %906 = vmatpush1.msra.mxu0 %v586
        %907 = vmatprep.subr.mxu0 %v591
        %908 = vmatpush1.msra.mxu0 %v590
        %909 = vmatprep.subr.mxu0 %v595
        %910 = vmatpush1.msra.mxu0 %v594
        %911 = vmatprep.subr.mxu0 %v599
        %912 = vmatpush1.msra.mxu0 %v598
        %913 = vmatprep.subr.mxu0 %v603
        %914 = vmatpush1.msra.mxu0 %v602
        %915 = vmatprep.subr.mxu0 0.0
        %916 = vmatpush1.msra.mxu0 0.0
        %917 = vmatprep.subr.mxu0 0.0
        %918 = vmatpush1.msra.mxu0 0.0
        %919 = vmatprep.subr.mxu0 0.0
        %920 = vmatpush1.msra.mxu0 0.0
        %921 = vmatprep.subr.mxu0 0.0
        %922 = vmatpush1.msra.mxu0 0.0
        %923 = vmatprep.subr.mxu0 0.0
        %924 = vmatpush1.msra.mxu0 0.0
        %925 = vmatprep.subr.mxu0 0.0
        %926 = vmatpush1.msra.mxu0 0.0
        %927 = vmatprep.subr.mxu0 0.0
        %928 = vmatpush1.msra.mxu0 0.0
        %929 = vmatprep.subr.mxu0 0.0
        %930 = vmatpush1.msra.mxu0 0.0
        %931 = vmatprep.subr.mxu0 0.0
        %932 = vmatpush1.msra.mxu0 0.0
        %933 = vmatprep.subr.mxu0 0.0
        %934 = vmatpush1.msra.mxu0 0.0
        %935 = vmatprep.subr.mxu0 0.0
        %936 = vmatpush1.msra.mxu0 0.0
        %937 = vmatprep.subr.mxu0 0.0
        %938 = vmatpush1.msra.mxu0 0.0
        %939 = vmatprep.subr.mxu0 0.0
        %940 = vmatpush1.msra.mxu0 0.0
        %941 = vmatprep.subr.mxu0 0.0
        %942 = vmatpush1.msra.mxu0 0.0
        %943 = vmatprep.subr.mxu0 0.0
        %944 = vmatpush1.msra.mxu0 0.0
        %945 = vmatprep.subr.mxu0 0.0
        %946 = vmatpush1.msra.mxu0 0.0
        %947 = vmatprep.mubr.f32.mxu0 0.0
        %948 = vmatmul.mubr.f32.gmra.mrb[0].mxu0 %v508
        %v949 = vpop.f32.mrb[0].mxu0
        %v950 = vadd.f32 %v617, %v949
        %v951 = vpop.f32.mrb[0].mxu0
        %v952 = vadd.f32 %v621, %v951
        %953 = vmatprep.mubr.f32.mxu0 0.0
        %954 = vmatmul.mubr.f32.gmra.mrb[0].mxu0 %v509
        %v955 = vpop.f32.mrb[0].mxu0
        %v956 = vadd.f32 %v617, %v955
        %v957 = vpop.f32.mrb[0].mxu0
        %v958 = vadd.f32 %v621, %v957
        %959 = vmatprep.mubr.f32.mxu0 0.0
        %960 = vmatmul.mubr.f32.gmra.mrb[0].mxu0 %v510
        %v961 = vpop.f32.mrb[0].mxu0
        %v962 = vadd.f32 %v617, %v961
        %v963 = vpop.f32.mrb[0].mxu0
        %v964 = vadd.f32 %v621, %v963
        %965 = vmatprep.mubr.f32.mxu0 0.0
        %966 = vmatmul.mubr.f32.gmra.mrb[0].mxu0 %v511
        %v967 = vpop.f32.mrb[0].mxu0
        %v968 = vadd.f32 %v617, %v967
        %v969 = vpop.f32.mrb[0].mxu0
        %v970 = vadd.f32 %v621, %v969
        %971 = vmatprep.mubr.f32.mxu0 0.0
        %972 = vmatmul.mubr.f32.gmra.mrb[0].mxu0 %v512
        %v973 = vpop.f32.mrb[0].mxu0
        %v974 = vadd.f32 %v617, %v973
        %v975 = vpop.f32.mrb[0].mxu0
        %v976 = vadd.f32 %v621, %v975
        %977 = vmatprep.mubr.f32.mxu0 0.0
        %978 = vmatmul.mubr.f32.gmra.mrb[0].mxu0 %v513
        %v979 = vpop.f32.mrb[0].mxu0
        %v980 = vadd.f32 %v617, %v979
        %v981 = vpop.f32.mrb[0].mxu0
        %v982 = vadd.f32 %v621, %v981
        %983 = vmatprep.mubr.f32.mxu0 0.0
        %984 = vmatmul.mubr.f32.gmra.mrb[0].mxu0 %v514
        %v985 = vpop.f32.mrb[0].mxu0
        %v986 = vadd.f32 %v617, %v985
        %v987 = vpop.f32.mrb[0].mxu0
        %v988 = vadd.f32 %v621, %v987
        %989 = vmatprep.mubr.f32.mxu0 0.0
        %990 = vmatmul.mubr.f32.gmra.mrb[0].mxu0 %v515
        %v991 = vpop.f32.mrb[0].mxu0
        %v992 = vadd.f32 %v617, %v991
        %v993 = vpop.f32.mrb[0].mxu0
        %v994 = vadd.f32 %v621, %v993
        %995 = vmatprep.mubr.f32.mxu0 0.0
        %996 = vmatmul.mubr.f32.gmra.mrb[0].mxu0 %v516
        %v997 = vpop.f32.mrb[0].mxu0
        %v998 = vadd.f32 %v617, %v997
        %v999 = vpop.f32.mrb[0].mxu0
        %v1000 = vadd.f32 %v621, %v999
        %1001 = vmatprep.mubr.f32.mxu0 0.0
        %1002 = vmatmul.mubr.f32.gmra.mrb[0].mxu0 %v517
        %v1003 = vpop.f32.mrb[0].mxu0
        %v1004 = vadd.f32 %v617, %v1003
        %v1005 = vpop.f32.mrb[0].mxu0
        %v1006 = vadd.f32 %v621, %v1005
        %1007 = vmatprep.mubr.f32.mxu0 0.0
        %1008 = vmatmul.mubr.f32.gmra.mrb[0].mxu0 %v518
        %v1009 = vpop.f32.mrb[0].mxu0
        %v1010 = vadd.f32 %v617, %v1009
        %v1011 = vpop.f32.mrb[0].mxu0
        %v1012 = vadd.f32 %v621, %v1011
        %1013 = vmatprep.mubr.f32.mxu0 0.0
        %1014 = vmatmul.mubr.f32.gmra.mrb[0].mxu0 %v519
        %v1015 = vpop.f32.mrb[0].mxu0
        %v1016 = vadd.f32 %v617, %v1015
        %v1017 = vpop.f32.mrb[0].mxu0
        %v1018 = vadd.f32 %v621, %v1017
        %1019 = vmatprep.mubr.f32.mxu0 0.0
        %1020 = vmatmul.mubr.f32.gmra.mrb[0].mxu0 %v520
        %v1021 = vpop.f32.mrb[0].mxu0
        %v1022 = vadd.f32 %v617, %v1021
        %v1023 = vpop.f32.mrb[0].mxu0
        %v1024 = vadd.f32 %v621, %v1023
        %1025 = vmatprep.mubr.f32.mxu0 0.0
        %1026 = vmatmul.mubr.f32.gmra.mrb[0].mxu0 %v521
        %v1027 = vpop.f32.mrb[0].mxu0
        %v1028 = vadd.f32 %v617, %v1027
        %v1029 = vpop.f32.mrb[0].mxu0
        %v1030 = vadd.f32 %v621, %v1029
        %1031 = vmatprep.mubr.f32.mxu0 0.0
        %1032 = vmatmul.mubr.f32.gmra.mrb[0].mxu0 %v522
        %v1033 = vpop.f32.mrb[0].mxu0
        %v1034 = vadd.f32 %v617, %v1033
        %v1035 = vpop.f32.mrb[0].mxu0
        %v1036 = vadd.f32 %v621, %v1035
        %1037 = vmatprep.mubr.f32.mxu0 0.0
        %1038 = vmatmul.mubr.f32.gmra.mrb[0].mxu0 %v523
        %v1039 = vpop.f32.mrb[0].mxu0
        %v1040 = vadd.f32 %v617, %v1039
        %v1041 = vpop.f32.mrb[0].mxu0
        %v1042 = vadd.f32 %v621, %v1041
        %1043 = vmatprep.mubr.f32.mxu0 0.0
        %1044 = vmatmul.mubr.f32.gmra.mrb[0].mxu0 %v524
        %v1045 = vpop.f32.mrb[0].mxu0
        %v1046 = vadd.f32 %v617, %v1045
        %v1047 = vpop.f32.mrb[0].mxu0
        %v1048 = vadd.f32 %v621, %v1047
        %1049 = vmatprep.mubr.f32.mxu0 0.0
        %1050 = vmatmul.mubr.f32.gmra.mrb[0].mxu0 %v525
        %v1051 = vpop.f32.mrb[0].mxu0
        %v1052 = vadd.f32 %v617, %v1051
        %v1053 = vpop.f32.mrb[0].mxu0
        %v1054 = vadd.f32 %v621, %v1053
        %1055 = vmatprep.mubr.f32.mxu0 0.0
        %1056 = vmatmul.mubr.f32.gmra.mrb[0].mxu0 %v526
        %v1057 = vpop.f32.mrb[0].mxu0
        %v1058 = vadd.f32 %v617, %v1057
        %v1059 = vpop.f32.mrb[0].mxu0
        %v1060 = vadd.f32 %v621, %v1059
        %1061 = vmatprep.mubr.f32.mxu0 0.0
        %1062 = vmatmul.mubr.f32.gmra.mrb[0].mxu0 %v527
        %v1063 = vpop.f32.mrb[0].mxu0
        %v1064 = vadd.f32 %v617, %v1063
        %v1065 = vpop.f32.mrb[0].mxu0
        %v1066 = vadd.f32 %v621, %v1065
        %1067 = vmatprep.mubr.f32.mxu0 0.0
        %1068 = vmatmul.mubr.f32.gmra.mrb[0].mxu0 %v528
        %v1069 = vpop.f32.mrb[0].mxu0
        %v1070 = vadd.f32 %v617, %v1069
        %v1071 = vpop.f32.mrb[0].mxu0
        %v1072 = vadd.f32 %v621, %v1071
        %1073 = vmatprep.mubr.f32.mxu0 0.0
        %1074 = vmatmul.mubr.f32.gmra.mrb[0].mxu0 %v529
        %v1075 = vpop.f32.mrb[0].mxu0
        %v1076 = vadd.f32 %v617, %v1075
        %v1077 = vpop.f32.mrb[0].mxu0
        %v1078 = vadd.f32 %v621, %v1077
        %1079 = vmatprep.mubr.f32.mxu0 0.0
        %1080 = vmatmul.mubr.f32.gmra.mrb[0].mxu0 %v530
        %v1081 = vpop.f32.mrb[0].mxu0
        %v1082 = vadd.f32 %v617, %v1081
        %v1083 = vpop.f32.mrb[0].mxu0
        %v1084 = vadd.f32 %v621, %v1083
        %1085 = vmatprep.mubr.f32.mxu0 0.0
        %1086 = vmatmul.mubr.f32.gmra.mrb[0].mxu0 %v531
        %v1087 = vpop.f32.mrb[0].mxu0
        %v1088 = vadd.f32 %v617, %v1087
        %v1089 = vpop.f32.mrb[0].mxu0
        %v1090 = vadd.f32 %v621, %v1089
        %1091 = vmatprep.mubr.f32.mxu0 0.0
        %1092 = vmatmul.mubr.f32.gmra.mrb[0].mxu0 %v532
        %v1093 = vpop.f32.mrb[0].mxu0
        %v1094 = vadd.f32 %v617, %v1093
        %v1095 = vpop.f32.mrb[0].mxu0
        %v1096 = vadd.f32 %v621, %v1095
        %1097 = vmatprep.mubr.f32.mxu0 0.0
        %1098 = vmatmul.mubr.f32.gmra.mrb[0].mxu0 %v533
        %v1099 = vpop.f32.mrb[0].mxu0
        %v1100 = vadd.f32 %v617, %v1099
        %v1101 = vpop.f32.mrb[0].mxu0
        %v1102 = vadd.f32 %v621, %v1101
        %1103 = vmatprep.mubr.f32.mxu0 0.0
        %1104 = vmatmul.mubr.f32.gmra.mrb[0].mxu0 %v534
        %v1105 = vpop.f32.mrb[0].mxu0
        %v1106 = vadd.f32 %v617, %v1105
        %v1107 = vpop.f32.mrb[0].mxu0
        %v1108 = vadd.f32 %v621, %v1107
        %1109 = vmatprep.mubr.f32.mxu0 0.0
        %1110 = vmatmul.mubr.f32.gmra.mrb[0].mxu0 %v535
        %v1111 = vpop.f32.mrb[0].mxu0
        %v1112 = vadd.f32 %v617, %v1111
        %v1113 = vpop.f32.mrb[0].mxu0
        %v1114 = vadd.f32 %v621, %v1113
        %1115 = vmatprep.mubr.f32.mxu0 0.0
        %1116 = vmatmul.mubr.f32.gmra.mrb[0].mxu0 %v536
        %v1117 = vpop.f32.mrb[0].mxu0
        %v1118 = vadd.f32 %v617, %v1117
        %v1119 = vpop.f32.mrb[0].mxu0
        %v1120 = vadd.f32 %v621, %v1119
        %1121 = vmatprep.mubr.f32.mxu0 0.0
        %1122 = vmatmul.mubr.f32.gmra.mrb[0].mxu0 %v537
        %v1123 = vpop.f32.mrb[0].mxu0
        %v1124 = vadd.f32 %v617, %v1123
        %v1125 = vpop.f32.mrb[0].mxu0
        %v1126 = vadd.f32 %v621, %v1125
        %1127 = vmatprep.mubr.f32.mxu0 0.0
        %1128 = vmatmul.mubr.f32.gmra.mrb[0].mxu0 %v538
        %v1129 = vpop.f32.mrb[0].mxu0
        %v1130 = vadd.f32 %v617, %v1129
        %v1131 = vpop.f32.mrb[0].mxu0
        %v1132 = vadd.f32 %v621, %v1131
        %1133 = vmatprep.mubr.f32.mxu0 0.0
        %1134 = vmatmul.mubr.f32.gmra.mrb[0].mxu0 %v539
        %v1135 = vpop.f32.mrb[0].mxu0
        %v1136 = vadd.f32 %v617, %v1135
        %v1137 = vpop.f32.mrb[0].mxu0
        %v1138 = vadd.f32 %v621, %v1137
        %1139 = vdwg.mxu0
        %v1140 = vmax.f32 %v693, 0.0
        %v1141 = vmax.f32 %v695, 0.0
        %v1142 = vmax.f32 %v950, 0.0
        %v1143 = vmax.f32 %v952, 0.0
        %v1144 = vmax.f32 %v699, 0.0
        %v1145 = vmax.f32 %v701, 0.0
        %v1146 = vmax.f32 %v956, 0.0
        %v1147 = vmax.f32 %v958, 0.0
        %v1148 = vmax.f32 %v705, 0.0
        %v1149 = vmax.f32 %v707, 0.0
        %v1150 = vmax.f32 %v962, 0.0
        %v1151 = vmax.f32 %v964, 0.0
        %v1152 = vmax.f32 %v711, 0.0
        %v1153 = vmax.f32 %v713, 0.0
        %v1154 = vmax.f32 %v968, 0.0
        %v1155 = vmax.f32 %v970, 0.0
        %v1156 = vmax.f32 %v717, 0.0
        %v1157 = vmax.f32 %v719, 0.0
        %v1158 = vmax.f32 %v974, 0.0
        %v1159 = vmax.f32 %v976, 0.0
        %v1160 = vmax.f32 %v723, 0.0
        %v1161 = vmax.f32 %v725, 0.0
        %v1162 = vmax.f32 %v980, 0.0
        %v1163 = vmax.f32 %v982, 0.0
        %v1164 = vmax.f32 %v729, 0.0
        %v1165 = vmax.f32 %v731, 0.0
        %v1166 = vmax.f32 %v986, 0.0
        %v1167 = vmax.f32 %v988, 0.0
        %v1168 = vmax.f32 %v735, 0.0
        %v1169 = vmax.f32 %v737, 0.0
        %v1170 = vmax.f32 %v992, 0.0
        %v1171 = vmax.f32 %v994, 0.0
        %v1172 = vmax.f32 %v741, 0.0
        %v1173 = vmax.f32 %v743, 0.0
        %v1174 = vmax.f32 %v998, 0.0
        %v1175 = vmax.f32 %v1000, 0.0
        %v1176 = vmax.f32 %v747, 0.0
        %v1177 = vmax.f32 %v749, 0.0
        %v1178 = vmax.f32 %v1004, 0.0
        %v1179 = vmax.f32 %v1006, 0.0
        %v1180 = vmax.f32 %v753, 0.0
        %v1181 = vmax.f32 %v755, 0.0
        %v1182 = vmax.f32 %v1010, 0.0
        %v1183 = vmax.f32 %v1012, 0.0
        %v1184 = vmax.f32 %v759, 0.0
        %v1185 = vmax.f32 %v761, 0.0
        %v1186 = vmax.f32 %v1016, 0.0
        %v1187 = vmax.f32 %v1018, 0.0
        %v1188 = vmax.f32 %v765, 0.0
        %v1189 = vmax.f32 %v767, 0.0
        %v1190 = vmax.f32 %v1022, 0.0
        %v1191 = vmax.f32 %v1024, 0.0
        %v1192 = vmax.f32 %v771, 0.0
        %v1193 = vmax.f32 %v773, 0.0
        %v1194 = vmax.f32 %v1028, 0.0
        %v1195 = vmax.f32 %v1030, 0.0
        %v1196 = vmax.f32 %v777, 0.0
        %v1197 = vmax.f32 %v779, 0.0
        %v1198 = vmax.f32 %v1034, 0.0
        %v1199 = vmax.f32 %v1036, 0.0
        %v1200 = vmax.f32 %v783, 0.0
        %v1201 = vmax.f32 %v785, 0.0
        %v1202 = vmax.f32 %v1040, 0.0
        %v1203 = vmax.f32 %v1042, 0.0
        %v1204 = vmax.f32 %v789, 0.0
        %v1205 = vmax.f32 %v791, 0.0
        %v1206 = vmax.f32 %v1046, 0.0
        %v1207 = vmax.f32 %v1048, 0.0
        %v1208 = vmax.f32 %v795, 0.0
        %v1209 = vmax.f32 %v797, 0.0
        %v1210 = vmax.f32 %v1052, 0.0
        %v1211 = vmax.f32 %v1054, 0.0
        %v1212 = vmax.f32 %v801, 0.0
        %v1213 = vmax.f32 %v803, 0.0
        %v1214 = vmax.f32 %v1058, 0.0
        %v1215 = vmax.f32 %v1060, 0.0
        %v1216 = vmax.f32 %v807, 0.0
        %v1217 = vmax.f32 %v809, 0.0
        %v1218 = vmax.f32 %v1064, 0.0
        %v1219 = vmax.f32 %v1066, 0.0
        %v1220 = vmax.f32 %v813, 0.0
        %v1221 = vmax.f32 %v815, 0.0
        %v1222 = vmax.f32 %v1070, 0.0
        %v1223 = vmax.f32 %v1072, 0.0
        %v1224 = vmax.f32 %v819, 0.0
        %v1225 = vmax.f32 %v821, 0.0
        %v1226 = vmax.f32 %v1076, 0.0
        %v1227 = vmax.f32 %v1078, 0.0
        %v1228 = vmax.f32 %v825, 0.0
        %v1229 = vmax.f32 %v827, 0.0
        %v1230 = vmax.f32 %v1082, 0.0
        %v1231 = vmax.f32 %v1084, 0.0
        %v1232 = vmax.f32 %v831, 0.0
        %v1233 = vmax.f32 %v833, 0.0
        %v1234 = vmax.f32 %v1088, 0.0
        %v1235 = vmax.f32 %v1090, 0.0
        %v1236 = vmax.f32 %v837, 0.0
        %v1237 = vmax.f32 %v839, 0.0
        %v1238 = vmax.f32 %v1094, 0.0
        %v1239 = vmax.f32 %v1096, 0.0
        %v1240 = vmax.f32 %v843, 0.0
        %v1241 = vmax.f32 %v845, 0.0
        %v1242 = vmax.f32 %v1100, 0.0
        %v1243 = vmax.f32 %v1102, 0.0
        %v1244 = vmax.f32 %v849, 0.0
        %v1245 = vmax.f32 %v851, 0.0
        %v1246 = vmax.f32 %v1106, 0.0
        %v1247 = vmax.f32 %v1108, 0.0
        %v1248 = vmax.f32 %v855, 0.0
        %v1249 = vmax.f32 %v857, 0.0
        %v1250 = vmax.f32 %v1112, 0.0
        %v1251 = vmax.f32 %v1114, 0.0
        %v1252 = vmax.f32 %v861, 0.0
        %v1253 = vmax.f32 %v863, 0.0
        %v1254 = vmax.f32 %v1118, 0.0
        %v1255 = vmax.f32 %v1120, 0.0
        %v1256 = vmax.f32 %v867, 0.0
        %v1257 = vmax.f32 %v869, 0.0
        %v1258 = vmax.f32 %v1124, 0.0
        %v1259 = vmax.f32 %v1126, 0.0
        %v1260 = vmax.f32 %v873, 0.0
        %v1261 = vmax.f32 %v875, 0.0
        %v1262 = vmax.f32 %v1130, 0.0
        %v1263 = vmax.f32 %v1132, 0.0
        %v1264 = vmax.f32 %v879, 0.0
        %v1265 = vmax.f32 %v881, 0.0
        %v1266 = vmax.f32 %v1136, 0.0
        %v1267 = vmax.f32 %v1138, 0.0
        %1268 = vst [vmem:[%s449] sm:$0xff] %v1140
        %1269 = vst [vmem:[%s449 + $0x8] sm:$0xff] %v1141
        %1270 = vst [vmem:[%s449 + $0x10] sm:$0xff] %v1142
        %1271 = vst [vmem:[%s449 + $0x18] sm:$0xff] %v1143
        %1272 = vst [vmem:[%s449 + $0x20] sm:$0xff] %v1144
        %1273 = vst [vmem:[%s449 + $0x28] sm:$0xff] %v1145
        %1274 = vst [vmem:[%s449 + $0x30] sm:$0xff] %v1146
        %1275 = vst [vmem:[%s449 + $0x38] sm:$0xff] %v1147
        %1276 = vst [vmem:[%s449 + $0x40] sm:$0xff] %v1148
        %1277 = vst [vmem:[%s449 + $0x48] sm:$0xff] %v1149
        %1278 = vst [vmem:[%s449 + $0x50] sm:$0xff] %v1150
        %1279 = vst [vmem:[%s449 + $0x58] sm:$0xff] %v1151
        %1280 = vst [vmem:[%s449 + $0x60] sm:$0xff] %v1152
        %1281 = vst [vmem:[%s449 + $0x68] sm:$0xff] %v1153
        %1282 = vst [vmem:[%s449 + $0x70] sm:$0xff] %v1154
        %1283 = vst [vmem:[%s449 + $0x78] sm:$0xff] %v1155
        %1284 = vst [vmem:[%s449 + $0x80] sm:$0xff] %v1156
        %1285 = vst [vmem:[%s449 + $0x88] sm:$0xff] %v1157
        %1286 = vst [vmem:[%s449 + $0x90] sm:$0xff] %v1158
        %1287 = vst [vmem:[%s449 + $0x98] sm:$0xff] %v1159
        %1288 = vst [vmem:[%s449 + $0xa0] sm:$0xff] %v1160
        %1289 = vst [vmem:[%s449 + $0xa8] sm:$0xff] %v1161
        %1290 = vst [vmem:[%s449 + $0xb0] sm:$0xff] %v1162
        %1291 = vst [vmem:[%s449 + $0xb8] sm:$0xff] %v1163
        %1292 = vst [vmem:[%s449 + $0xc0] sm:$0xff] %v1164
        %1293 = vst [vmem:[%s449 + $0xc8] sm:$0xff] %v1165
        %1294 = vst [vmem:[%s449 + $0xd0] sm:$0xff] %v1166
        %1295 = vst [vmem:[%s449 + $0xd8] sm:$0xff] %v1167
        %1296 = vst [vmem:[%s449 + $0xe0] sm:$0xff] %v1168
        %1297 = vst [vmem:[%s449 + $0xe8] sm:$0xff] %v1169
        %1298 = vst [vmem:[%s449 + $0xf0] sm:$0xff] %v1170
        %1299 = vst [vmem:[%s449 + $0xf8] sm:$0xff] %v1171
        %1300 = vst [vmem:[%s449 + $0x100] sm:$0xff] %v1172
        %1301 = vst [vmem:[%s449 + $0x108] sm:$0xff] %v1173
        %1302 = vst [vmem:[%s449 + $0x110] sm:$0xff] %v1174
        %1303 = vst [vmem:[%s449 + $0x118] sm:$0xff] %v1175
        %1304 = vst [vmem:[%s449 + $0x120] sm:$0xff] %v1176
        %1305 = vst [vmem:[%s449 + $0x128] sm:$0xff] %v1177
        %1306 = vst [vmem:[%s449 + $0x130] sm:$0xff] %v1178
        %1307 = vst [vmem:[%s449 + $0x138] sm:$0xff] %v1179
        %1308 = vst [vmem:[%s449 + $0x140] sm:$0xff] %v1180
        %1309 = vst [vmem:[%s449 + $0x148] sm:$0xff] %v1181
        %1310 = vst [vmem:[%s449 + $0x150] sm:$0xff] %v1182
        %1311 = vst [vmem:[%s449 + $0x158] sm:$0xff] %v1183
        %1312 = vst [vmem:[%s449 + $0x160] sm:$0xff] %v1184
        %1313 = vst [vmem:[%s449 + $0x168] sm:$0xff] %v1185
        %1314 = vst [vmem:[%s449 + $0x170] sm:$0xff] %v1186
        %1315 = vst [vmem:[%s449 + $0x178] sm:$0xff] %v1187
        %1316 = vst [vmem:[%s449 + $0x180] sm:$0xff] %v1188
        %1317 = vst [vmem:[%s449 + $0x188] sm:$0xff] %v1189
        %1318 = vst [vmem:[%s449 + $0x190] sm:$0xff] %v1190
        %1319 = vst [vmem:[%s449 + $0x198] sm:$0xff] %v1191
        %1320 = vst [vmem:[%s449 + $0x1a0] sm:$0xff] %v1192
        %1321 = vst [vmem:[%s449 + $0x1a8] sm:$0xff] %v1193
        %1322 = vst [vmem:[%s449 + $0x1b0] sm:$0xff] %v1194
        %1323 = vst [vmem:[%s449 + $0x1b8] sm:$0xff] %v1195
        %1324 = vst [vmem:[%s449 + $0x1c0] sm:$0xff] %v1196
        %1325 = vst [vmem:[%s449 + $0x1c8] sm:$0xff] %v1197
        %1326 = vst [vmem:[%s449 + $0x1d0] sm:$0xff] %v1198
        %1327 = vst [vmem:[%s449 + $0x1d8] sm:$0xff] %v1199
        %1328 = vst [vmem:[%s449 + $0x1e0] sm:$0xff] %v1200
        %1329 = vst [vmem:[%s449 + $0x1e8] sm:$0xff] %v1201
        %1330 = vst [vmem:[%s449 + $0x1f0] sm:$0xff] %v1202
        %1331 = vst [vmem:[%s449 + $0x1f8] sm:$0xff] %v1203
        %1332 = vst [vmem:[%s449 + $0x200] sm:$0xff] %v1204
        %1333 = vst [vmem:[%s449 + $0x208] sm:$0xff] %v1205
        %1334 = vst [vmem:[%s449 + $0x210] sm:$0xff] %v1206
        %1335 = vst [vmem:[%s449 + $0x218] sm:$0xff] %v1207
        %1336 = vst [vmem:[%s449 + $0x220] sm:$0xff] %v1208
        %1337 = vst [vmem:[%s449 + $0x228] sm:$0xff] %v1209
        %1338 = vst [vmem:[%s449 + $0x230] sm:$0xff] %v1210
        %1339 = vst [vmem:[%s449 + $0x238] sm:$0xff] %v1211
        %1340 = vst [vmem:[%s449 + $0x240] sm:$0xff] %v1212
        %1341 = vst [vmem:[%s449 + $0x248] sm:$0xff] %v1213
        %1342 = vst [vmem:[%s449 + $0x250] sm:$0xff] %v1214
        %1343 = vst [vmem:[%s449 + $0x258] sm:$0xff] %v1215
        %1344 = vst [vmem:[%s449 + $0x260] sm:$0xff] %v1216
        %1345 = vst [vmem:[%s449 + $0x268] sm:$0xff] %v1217
        %1346 = vst [vmem:[%s449 + $0x270] sm:$0xff] %v1218
        %1347 = vst [vmem:[%s449 + $0x278] sm:$0xff] %v1219
        %1348 = vst [vmem:[%s449 + $0x280] sm:$0xff] %v1220
        %1349 = vst [vmem:[%s449 + $0x288] sm:$0xff] %v1221
        %1350 = vst [vmem:[%s449 + $0x290] sm:$0xff] %v1222
        %1351 = vst [vmem:[%s449 + $0x298] sm:$0xff] %v1223
        %1352 = vst [vmem:[%s449 + $0x2a0] sm:$0xff] %v1224
        %1353 = vst [vmem:[%s449 + $0x2a8] sm:$0xff] %v1225
        %1354 = vst [vmem:[%s449 + $0x2b0] sm:$0xff] %v1226
        %1355 = vst [vmem:[%s449 + $0x2b8] sm:$0xff] %v1227
        %1356 = vst [vmem:[%s449 + $0x2c0] sm:$0xff] %v1228
        %1357 = vst [vmem:[%s449 + $0x2c8] sm:$0xff] %v1229
        %1358 = vst [vmem:[%s449 + $0x2d0] sm:$0xff] %v1230
        %1359 = vst [vmem:[%s449 + $0x2d8] sm:$0xff] %v1231
        %1360 = vst [vmem:[%s449 + $0x2e0] sm:$0xff] %v1232
        %1361 = vst [vmem:[%s449 + $0x2e8] sm:$0xff] %v1233
        %1362 = vst [vmem:[%s449 + $0x2f0] sm:$0xff] %v1234
        %1363 = vst [vmem:[%s449 + $0x2f8] sm:$0xff] %v1235
        %1364 = vst [vmem:[%s449 + $0x300] sm:$0xff] %v1236
        %1365 = vst [vmem:[%s449 + $0x308] sm:$0xff] %v1237
        %1366 = vst [vmem:[%s449 + $0x310] sm:$0xff] %v1238
        %1367 = vst [vmem:[%s449 + $0x318] sm:$0xff] %v1239
        %1368 = vst [vmem:[%s449 + $0x320] sm:$0xff] %v1240
        %1369 = vst [vmem:[%s449 + $0x328] sm:$0xff] %v1241
        %1370 = vst [vmem:[%s449 + $0x330] sm:$0xff] %v1242
        %1371 = vst [vmem:[%s449 + $0x338] sm:$0xff] %v1243
        %1372 = vst [vmem:[%s449 + $0x340] sm:$0xff] %v1244
        %1373 = vst [vmem:[%s449 + $0x348] sm:$0xff] %v1245
        %1374 = vst [vmem:[%s449 + $0x350] sm:$0xff] %v1246
        %1375 = vst [vmem:[%s449 + $0x358] sm:$0xff] %v1247
        %1376 = vst [vmem:[%s449 + $0x360] sm:$0xff] %v1248
        %1377 = vst [vmem:[%s449 + $0x368] sm:$0xff] %v1249
        %1378 = vst [vmem:[%s449 + $0x370] sm:$0xff] %v1250
        %1379 = vst [vmem:[%s449 + $0x378] sm:$0xff] %v1251
        %1380 = vst [vmem:[%s449 + $0x380] sm:$0xff] %v1252
        %1381 = vst [vmem:[%s449 + $0x388] sm:$0xff] %v1253
        %1382 = vst [vmem:[%s449 + $0x390] sm:$0xff] %v1254
        %1383 = vst [vmem:[%s449 + $0x398] sm:$0xff] %v1255
        %1384 = vst [vmem:[%s449 + $0x3a0] sm:$0xff] %v1256
        %1385 = vst [vmem:[%s449 + $0x3a8] sm:$0xff] %v1257
        %1386 = vst [vmem:[%s449 + $0x3b0] sm:$0xff] %v1258
        %1387 = vst [vmem:[%s449 + $0x3b8] sm:$0xff] %v1259
        %1388 = vst [vmem:[%s449 + $0x3c0] sm:$0xff] %v1260
        %1389 = vst [vmem:[%s449 + $0x3c8] sm:$0xff] %v1261
        %1390 = vst [vmem:[%s449 + $0x3d0] sm:$0xff] %v1262
        %1391 = vst [vmem:[%s449 + $0x3d8] sm:$0xff] %v1263
        %1392 = vst [vmem:[%s449 + $0x3e0] sm:$0xff] %v1264
        %1393 = vst [vmem:[%s449 + $0x3e8] sm:$0xff] %v1265
        %1394 = vst [vmem:[%s449 + $0x3f0] sm:$0xff] %v1266
        %1395 = vst [vmem:[%s449 + $0x3f8] sm:$0xff] %v1267
        %v1396 = vld [vmem:[#allocation2] sm:$0xff]
        %v1397 = vld [vmem:[#allocation2 + $0x8] sm:$0xff]
        %v1398 = vld [vmem:[#allocation2 + $0x10] sm:$0xff]
        %v1399 = vld [vmem:[#allocation2 + $0x18] sm:$0xff]
        %v1400 = vld [vmem:[#allocation2 + $0x20] sm:$0xff]
        %v1401 = vld [vmem:[#allocation2 + $0x28] sm:$0xff]
        %v1402 = vld [vmem:[#allocation2 + $0x30] sm:$0xff]
        %v1403 = vld [vmem:[#allocation2 + $0x38] sm:$0xff]
        %v1404 = vld [vmem:[#allocation2 + $0x40] sm:$0xff]
        %v1405 = vld [vmem:[#allocation2 + $0x48] sm:$0xff]
        %v1406 = vld [vmem:[#allocation2 + $0x50] sm:$0xff]
        %v1407 = vld [vmem:[#allocation2 + $0x58] sm:$0xff]
        %v1408 = vld [vmem:[#allocation2 + $0x60] sm:$0xff]
        %v1409 = vld [vmem:[#allocation2 + $0x68] sm:$0xff]
        %v1410 = vld [vmem:[#allocation2 + $0x70] sm:$0xff]
        %v1411 = vld [vmem:[#allocation2 + $0x78] sm:$0xff]
        %v1412 = vld [vmem:[#allocation2 + $0x80] sm:$0xff]
        %v1413 = vld [vmem:[#allocation2 + $0x88] sm:$0xff]
        %v1414 = vld [vmem:[#allocation2 + $0x90] sm:$0xff]
        %v1415 = vld [vmem:[#allocation2 + $0x98] sm:$0xff]
        %v1416 = vld [vmem:[#allocation2 + $0xa0] sm:$0xff]
        %v1417 = vld [vmem:[#allocation2 + $0xa8] sm:$0xff]
        %v1418 = vld [vmem:[#allocation2 + $0xb0] sm:$0xff]
        %v1419 = vld [vmem:[#allocation2 + $0xb8] sm:$0xff]
        %v1420 = vld [vmem:[#allocation2 + $0xc0] sm:$0xff]
        %v1421 = vld [vmem:[#allocation2 + $0xc8] sm:$0xff]
        %v1422 = vld [vmem:[#allocation2 + $0xd0] sm:$0xff]
        %v1423 = vld [vmem:[#allocation2 + $0xd8] sm:$0xff]
        %v1424 = vld [vmem:[#allocation2 + $0xe0] sm:$0xff]
        %v1425 = vld [vmem:[#allocation2 + $0xe8] sm:$0xff]
        %v1426 = vld [vmem:[#allocation2 + $0xf0] sm:$0xff]
        %v1427 = vld [vmem:[#allocation2 + $0xf8] sm:$0xff]
        %v1428 = vld [vmem:[%s403] sm:$0xff]
        %v1429 = vld [vmem:[%s403 + $0x8] sm:$0xff]
        %v1430 = vld [vmem:[%s403 + $0x10] sm:$0xff]
        %v1431 = vld [vmem:[%s403 + $0x18] sm:$0xff]
        %v1432 = vld [vmem:[%s403 + $0x20] sm:$0xff]
        %v1433 = vld [vmem:[%s403 + $0x28] sm:$0xff]
        %v1434 = vld [vmem:[%s403 + $0x30] sm:$0xff]
        %v1435 = vld [vmem:[%s403 + $0x38] sm:$0xff]
        %v1436 = vld [vmem:[%s403 + $0x40] sm:$0xff]
        %v1437 = vld [vmem:[%s403 + $0x48] sm:$0xff]
        %v1438 = vld [vmem:[%s403 + $0x50] sm:$0xff]
        %v1439 = vld [vmem:[%s403 + $0x58] sm:$0xff]
        %v1440 = vld [vmem:[%s403 + $0x60] sm:$0xff]
        %v1441 = vld [vmem:[%s403 + $0x68] sm:$0xff]
        %v1442 = vld [vmem:[%s403 + $0x70] sm:$0xff]
        %v1443 = vld [vmem:[%s403 + $0x78] sm:$0xff]
        %v1444 = vld [vmem:[%s403 + $0x80] sm:$0xff]
        %v1445 = vld [vmem:[%s403 + $0x88] sm:$0xff]
        %v1446 = vld [vmem:[%s403 + $0x90] sm:$0xff]
        %v1447 = vld [vmem:[%s403 + $0x98] sm:$0xff]
        %v1448 = vld [vmem:[%s403 + $0xa0] sm:$0xff]
        %v1449 = vld [vmem:[%s403 + $0xa8] sm:$0xff]
        %v1450 = vld [vmem:[%s403 + $0xb0] sm:$0xff]
        %v1451 = vld [vmem:[%s403 + $0xb8] sm:$0xff]
        %v1452 = vld [vmem:[%s403 + $0xc0] sm:$0xff]
        %v1453 = vld [vmem:[%s403 + $0xc8] sm:$0xff]
        %v1454 = vld [vmem:[%s403 + $0xd0] sm:$0xff]
        %v1455 = vld [vmem:[%s403 + $0xd8] sm:$0xff]
        %v1456 = vld [vmem:[%s403 + $0xe0] sm:$0xff]
        %v1457 = vld [vmem:[%s403 + $0xe8] sm:$0xff]
        %v1458 = vld [vmem:[%s403 + $0xf0] sm:$0xff]
        %v1459 = vld [vmem:[%s403 + $0xf8] sm:$0xff]
        %v1460 = vld [vmem:[%s403 + $0x100] sm:$0xff]
        %v1461 = vld [vmem:[%s403 + $0x108] sm:$0xff]
        %v1462 = vld [vmem:[%s403 + $0x110] sm:$0xff]
        %v1463 = vld [vmem:[%s403 + $0x118] sm:$0xff]
        %v1464 = vld [vmem:[%s403 + $0x120] sm:$0xff]
        %v1465 = vld [vmem:[%s403 + $0x128] sm:$0xff]
        %v1466 = vld [vmem:[%s403 + $0x130] sm:$0xff]
        %v1467 = vld [vmem:[%s403 + $0x138] sm:$0xff]
        %v1468 = vld [vmem:[%s403 + $0x140] sm:$0xff]
        %v1469 = vld [vmem:[%s403 + $0x148] sm:$0xff]
        %v1470 = vld [vmem:[%s403 + $0x150] sm:$0xff]
        %v1471 = vld [vmem:[%s403 + $0x158] sm:$0xff]
        %v1472 = vld [vmem:[%s403 + $0x160] sm:$0xff]
        %v1473 = vld [vmem:[%s403 + $0x168] sm:$0xff]
        %v1474 = vld [vmem:[%s403 + $0x170] sm:$0xff]
        %v1475 = vld [vmem:[%s403 + $0x178] sm:$0xff]
        %v1476 = vld [vmem:[%s403 + $0x180] sm:$0xff]
        %v1477 = vld [vmem:[%s403 + $0x188] sm:$0xff]
        %v1478 = vld [vmem:[%s403 + $0x190] sm:$0xff]
        %v1479 = vld [vmem:[%s403 + $0x198] sm:$0xff]
        %v1480 = vld [vmem:[%s403 + $0x1a0] sm:$0xff]
        %v1481 = vld [vmem:[%s403 + $0x1a8] sm:$0xff]
        %v1482 = vld [vmem:[%s403 + $0x1b0] sm:$0xff]
        %v1483 = vld [vmem:[%s403 + $0x1b8] sm:$0xff]
        %v1484 = vld [vmem:[%s403 + $0x1c0] sm:$0xff]
        %v1485 = vld [vmem:[%s403 + $0x1c8] sm:$0xff]
        %v1486 = vld [vmem:[%s403 + $0x1d0] sm:$0xff]
        %v1487 = vld [vmem:[%s403 + $0x1d8] sm:$0xff]
        %v1488 = vld [vmem:[%s403 + $0x1e0] sm:$0xff]
        %v1489 = vld [vmem:[%s403 + $0x1e8] sm:$0xff]
        %v1490 = vld [vmem:[%s403 + $0x1f0] sm:$0xff]
        %v1491 = vld [vmem:[%s403 + $0x1f8] sm:$0xff]
        %1492 = vmatprep.subr.mxu0 0.0
        %1493 = vmatpush1.msra.mxu0 %v1428
        %1494 = vmatprep.subr.mxu0 0.0
        %1495 = vmatpush1.msra.mxu0 %v1429
        %1496 = vmatprep.subr.mxu0 0.0
        %1497 = vmatpush1.msra.mxu0 %v1430
        %1498 = vmatprep.subr.mxu0 0.0
        %1499 = vmatpush1.msra.mxu0 %v1431
        %1500 = vmatprep.subr.mxu0 0.0
        %1501 = vmatpush1.msra.mxu0 %v1432
        %1502 = vmatprep.subr.mxu0 0.0
        %1503 = vmatpush1.msra.mxu0 %v1433
        %1504 = vmatprep.subr.mxu0 0.0
        %1505 = vmatpush1.msra.mxu0 %v1434
        %1506 = vmatprep.subr.mxu0 0.0
        %1507 = vmatpush1.msra.mxu0 %v1435
        %1508 = vmatprep.subr.mxu0 0.0
        %1509 = vmatpush1.msra.mxu0 %v1436
        %1510 = vmatprep.subr.mxu0 0.0
        %1511 = vmatpush1.msra.mxu0 %v1437
        %1512 = vmatprep.subr.mxu0 0.0
        %1513 = vmatpush1.msra.mxu0 %v1438
        %1514 = vmatprep.subr.mxu0 0.0
        %1515 = vmatpush1.msra.mxu0 %v1439
        %1516 = vmatprep.subr.mxu0 0.0
        %1517 = vmatpush1.msra.mxu0 %v1440
        %1518 = vmatprep.subr.mxu0 0.0
        %1519 = vmatpush1.msra.mxu0 %v1441
        %1520 = vmatprep.subr.mxu0 0.0
        %1521 = vmatpush1.msra.mxu0 %v1442
        %1522 = vmatprep.subr.mxu0 0.0
        %1523 = vmatpush1.msra.mxu0 %v1443
        %1524 = vmatprep.subr.mxu0 0.0
        %1525 = vmatpush1.msra.mxu0 %v1444
        %1526 = vmatprep.subr.mxu0 0.0
        %1527 = vmatpush1.msra.mxu0 %v1445
        %1528 = vmatprep.subr.mxu0 0.0
        %1529 = vmatpush1.msra.mxu0 %v1446
        %1530 = vmatprep.subr.mxu0 0.0
        %1531 = vmatpush1.msra.mxu0 %v1447
        %1532 = vmatprep.subr.mxu0 0.0
        %1533 = vmatpush1.msra.mxu0 %v1448
        %1534 = vmatprep.subr.mxu0 0.0
        %1535 = vmatpush1.msra.mxu0 %v1449
        %1536 = vmatprep.subr.mxu0 0.0
        %1537 = vmatpush1.msra.mxu0 %v1450
        %1538 = vmatprep.subr.mxu0 0.0
        %1539 = vmatpush1.msra.mxu0 %v1451
        %1540 = vmatprep.subr.mxu0 0.0
        %1541 = vmatpush1.msra.mxu0 %v1452
        %1542 = vmatprep.subr.mxu0 0.0
        %1543 = vmatpush1.msra.mxu0 %v1453
        %1544 = vmatprep.subr.mxu0 0.0
        %1545 = vmatpush1.msra.mxu0 %v1454
        %1546 = vmatprep.subr.mxu0 0.0
        %1547 = vmatpush1.msra.mxu0 %v1455
        %1548 = vmatprep.subr.mxu0 0.0
        %1549 = vmatpush1.msra.mxu0 %v1456
        %1550 = vmatprep.subr.mxu0 0.0
        %1551 = vmatpush1.msra.mxu0 %v1457
        %1552 = vmatprep.subr.mxu0 0.0
        %1553 = vmatpush1.msra.mxu0 %v1458
        %1554 = vmatprep.subr.mxu0 0.0
        %1555 = vmatpush1.msra.mxu0 %v1459
        %1556 = vmatprep.mubr.f32.mxu0 %v1141
        %1557 = vmatmul.mubr.f32.gmra.mrb[0].mxu0 %v1140
        %v1558 = vpop.f32.mrb[0].mxu0
        %v1559 = vadd.f32 0.0, %v1558
        %v1560 = vpop.f32.mrb[0].mxu0
        %1561 = vmatprep.mubr.f32.mxu0 %v1145
        %1562 = vmatmul.mubr.f32.gmra.mrb[0].mxu0 %v1144
        %v1563 = vpop.f32.mrb[0].mxu0
        %v1564 = vadd.f32 0.0, %v1563
        %v1565 = vpop.f32.mrb[0].mxu0
        %1566 = vmatprep.mubr.f32.mxu0 %v1149
        %1567 = vmatmul.mubr.f32.gmra.mrb[0].mxu0 %v1148
        %v1568 = vpop.f32.mrb[0].mxu0
        %v1569 = vadd.f32 0.0, %v1568
        %v1570 = vpop.f32.mrb[0].mxu0
        %1571 = vmatprep.mubr.f32.mxu0 %v1153
        %1572 = vmatmul.mubr.f32.gmra.mrb[0].mxu0 %v1152
        %v1573 = vpop.f32.mrb[0].mxu0
        %v1574 = vadd.f32 0.0, %v1573
        %v1575 = vpop.f32.mrb[0].mxu0
        %1576 = vmatprep.mubr.f32.mxu0 %v1157
        %1577 = vmatmul.mubr.f32.gmra.mrb[0].mxu0 %v1156
        %v1578 = vpop.f32.mrb[0].mxu0
        %v1579 = vadd.f32 0.0, %v1578
        %v1580 = vpop.f32.mrb[0].mxu0
        %1581 = vmatprep.mubr.f32.mxu0 %v1161
        %1582 = vmatmul.mubr.f32.gmra.mrb[0].mxu0 %v1160
        %v1583 = vpop.f32.mrb[0].mxu0
        %v1584 = vadd.f32 0.0, %v1583
        %v1585 = vpop.f32.mrb[0].mxu0
        %1586 = vmatprep.mubr.f32.mxu0 %v1165
        %1587 = vmatmul.mubr.f32.gmra.mrb[0].mxu0 %v1164
        %v1588 = vpop.f32.mrb[0].mxu0
        %v1589 = vadd.f32 0.0, %v1588
        %v1590 = vpop.f32.mrb[0].mxu0
        %1591 = vmatprep.mubr.f32.mxu0 %v1169
        %1592 = vmatmul.mubr.f32.gmra.mrb[0].mxu0 %v1168
        %v1593 = vpop.f32.mrb[0].mxu0
        %v1594 = vadd.f32 0.0, %v1593
        %v1595 = vpop.f32.mrb[0].mxu0
        %1596 = vmatprep.mubr.f32.mxu0 %v1173
        %1597 = vmatmul.mubr.f32.gmra.mrb[0].mxu0 %v1172
        %v1598 = vpop.f32.mrb[0].mxu0
        %v1599 = vadd.f32 0.0, %v1598
        %v1600 = vpop.f32.mrb[0].mxu0
        %1601 = vmatprep.mubr.f32.mxu0 %v1177
        %1602 = vmatmul.mubr.f32.gmra.mrb[0].mxu0 %v1176
        %v1603 = vpop.f32.mrb[0].mxu0
        %v1604 = vadd.f32 0.0, %v1603
        %v1605 = vpop.f32.mrb[0].mxu0
        %1606 = vmatprep.mubr.f32.mxu0 %v1181
        %1607 = vmatmul.mubr.f32.gmra.mrb[0].mxu0 %v1180
        %v1608 = vpop.f32.mrb[0].mxu0
        %v1609 = vadd.f32 0.0, %v1608
        %v1610 = vpop.f32.mrb[0].mxu0
        %1611 = vmatprep.mubr.f32.mxu0 %v1185
        %1612 = vmatmul.mubr.f32.gmra.mrb[0].mxu0 %v1184
        %v1613 = vpop.f32.mrb[0].mxu0
        %v1614 = vadd.f32 0.0, %v1613
        %v1615 = vpop.f32.mrb[0].mxu0
        %1616 = vmatprep.mubr.f32.mxu0 %v1189
        %1617 = vmatmul.mubr.f32.gmra.mrb[0].mxu0 %v1188
        %v1618 = vpop.f32.mrb[0].mxu0
        %v1619 = vadd.f32 0.0, %v1618
        %v1620 = vpop.f32.mrb[0].mxu0
        %1621 = vmatprep.mubr.f32.mxu0 %v1193
        %1622 = vmatmul.mubr.f32.gmra.mrb[0].mxu0 %v1192
        %v1623 = vpop.f32.mrb[0].mxu0
        %v1624 = vadd.f32 0.0, %v1623
        %v1625 = vpop.f32.mrb[0].mxu0
        %1626 = vmatprep.mubr.f32.mxu0 %v1197
        %1627 = vmatmul.mubr.f32.gmra.mrb[0].mxu0 %v1196
        %v1628 = vpop.f32.mrb[0].mxu0
        %v1629 = vadd.f32 0.0, %v1628
        %v1630 = vpop.f32.mrb[0].mxu0
        %1631 = vmatprep.mubr.f32.mxu0 %v1201
        %1632 = vmatmul.mubr.f32.gmra.mrb[0].mxu0 %v1200
        %v1633 = vpop.f32.mrb[0].mxu0
        %v1634 = vadd.f32 0.0, %v1633
        %v1635 = vpop.f32.mrb[0].mxu0
        %1636 = vmatprep.mubr.f32.mxu0 %v1205
        %1637 = vmatmul.mubr.f32.gmra.mrb[0].mxu0 %v1204
        %v1638 = vpop.f32.mrb[0].mxu0
        %v1639 = vadd.f32 0.0, %v1638
        %v1640 = vpop.f32.mrb[0].mxu0
        %1641 = vmatprep.mubr.f32.mxu0 %v1209
        %1642 = vmatmul.mubr.f32.gmra.mrb[0].mxu0 %v1208
        %v1643 = vpop.f32.mrb[0].mxu0
        %v1644 = vadd.f32 0.0, %v1643
        %v1645 = vpop.f32.mrb[0].mxu0
        %1646 = vmatprep.mubr.f32.mxu0 %v1213
        %1647 = vmatmul.mubr.f32.gmra.mrb[0].mxu0 %v1212
        %v1648 = vpop.f32.mrb[0].mxu0
        %v1649 = vadd.f32 0.0, %v1648
        %v1650 = vpop.f32.mrb[0].mxu0
        %1651 = vmatprep.mubr.f32.mxu0 %v1217
        %1652 = vmatmul.mubr.f32.gmra.mrb[0].mxu0 %v1216
        %v1653 = vpop.f32.mrb[0].mxu0
        %v1654 = vadd.f32 0.0, %v1653
        %v1655 = vpop.f32.mrb[0].mxu0
        %1656 = vmatprep.mubr.f32.mxu0 %v1221
        %1657 = vmatmul.mubr.f32.gmra.mrb[0].mxu0 %v1220
        %v1658 = vpop.f32.mrb[0].mxu0
        %v1659 = vadd.f32 0.0, %v1658
        %v1660 = vpop.f32.mrb[0].mxu0
        %1661 = vmatprep.mubr.f32.mxu0 %v1225
        %1662 = vmatmul.mubr.f32.gmra.mrb[0].mxu0 %v1224
        %v1663 = vpop.f32.mrb[0].mxu0
        %v1664 = vadd.f32 0.0, %v1663
        %v1665 = vpop.f32.mrb[0].mxu0
        %1666 = vmatprep.mubr.f32.mxu0 %v1229
        %1667 = vmatmul.mubr.f32.gmra.mrb[0].mxu0 %v1228
        %v1668 = vpop.f32.mrb[0].mxu0
        %v1669 = vadd.f32 0.0, %v1668
        %v1670 = vpop.f32.mrb[0].mxu0
        %1671 = vmatprep.mubr.f32.mxu0 %v1233
        %1672 = vmatmul.mubr.f32.gmra.mrb[0].mxu0 %v1232
        %v1673 = vpop.f32.mrb[0].mxu0
        %v1674 = vadd.f32 0.0, %v1673
        %v1675 = vpop.f32.mrb[0].mxu0
        %1676 = vmatprep.mubr.f32.mxu0 %v1237
        %1677 = vmatmul.mubr.f32.gmra.mrb[0].mxu0 %v1236
        %v1678 = vpop.f32.mrb[0].mxu0
        %v1679 = vadd.f32 0.0, %v1678
        %v1680 = vpop.f32.mrb[0].mxu0
        %1681 = vmatprep.mubr.f32.mxu0 %v1241
        %1682 = vmatmul.mubr.f32.gmra.mrb[0].mxu0 %v1240
        %v1683 = vpop.f32.mrb[0].mxu0
        %v1684 = vadd.f32 0.0, %v1683
        %v1685 = vpop.f32.mrb[0].mxu0
        %1686 = vmatprep.mubr.f32.mxu0 %v1245
        %1687 = vmatmul.mubr.f32.gmra.mrb[0].mxu0 %v1244
        %v1688 = vpop.f32.mrb[0].mxu0
        %v1689 = vadd.f32 0.0, %v1688
        %v1690 = vpop.f32.mrb[0].mxu0
        %1691 = vmatprep.mubr.f32.mxu0 %v1249
        %1692 = vmatmul.mubr.f32.gmra.mrb[0].mxu0 %v1248
        %v1693 = vpop.f32.mrb[0].mxu0
        %v1694 = vadd.f32 0.0, %v1693
        %v1695 = vpop.f32.mrb[0].mxu0
        %1696 = vmatprep.mubr.f32.mxu0 %v1253
        %1697 = vmatmul.mubr.f32.gmra.mrb[0].mxu0 %v1252
        %v1698 = vpop.f32.mrb[0].mxu0
        %v1699 = vadd.f32 0.0, %v1698
        %v1700 = vpop.f32.mrb[0].mxu0
        %1701 = vmatprep.mubr.f32.mxu0 %v1257
        %1702 = vmatmul.mubr.f32.gmra.mrb[0].mxu0 %v1256
        %v1703 = vpop.f32.mrb[0].mxu0
        %v1704 = vadd.f32 0.0, %v1703
        %v1705 = vpop.f32.mrb[0].mxu0
        %1706 = vmatprep.mubr.f32.mxu0 %v1261
        %1707 = vmatmul.mubr.f32.gmra.mrb[0].mxu0 %v1260
        %v1708 = vpop.f32.mrb[0].mxu0
        %v1709 = vadd.f32 0.0, %v1708
        %v1710 = vpop.f32.mrb[0].mxu0
        %1711 = vmatprep.mubr.f32.mxu0 %v1265
        %1712 = vmatmul.mubr.f32.gmra.mrb[0].mxu0 %v1264
        %v1713 = vpop.f32.mrb[0].mxu0
        %v1714 = vadd.f32 0.0, %v1713
        %v1715 = vpop.f32.mrb[0].mxu0
        %1716 = vdwg.mxu0
        %1717 = vmatprep.subr.mxu0 0.0
        %1718 = vmatpush1.msra.mxu0 %v1460
        %1719 = vmatprep.subr.mxu0 0.0
        %1720 = vmatpush1.msra.mxu0 %v1461
        %1721 = vmatprep.subr.mxu0 0.0
        %1722 = vmatpush1.msra.mxu0 %v1462
        %1723 = vmatprep.subr.mxu0 0.0
        %1724 = vmatpush1.msra.mxu0 %v1463
        %1725 = vmatprep.subr.mxu0 0.0
        %1726 = vmatpush1.msra.mxu0 %v1464
        %1727 = vmatprep.subr.mxu0 0.0
        %1728 = vmatpush1.msra.mxu0 %v1465
        %1729 = vmatprep.subr.mxu0 0.0
        %1730 = vmatpush1.msra.mxu0 %v1466
        %1731 = vmatprep.subr.mxu0 0.0
        %1732 = vmatpush1.msra.mxu0 %v1467
        %1733 = vmatprep.subr.mxu0 0.0
        %1734 = vmatpush1.msra.mxu0 %v1468
        %1735 = vmatprep.subr.mxu0 0.0
        %1736 = vmatpush1.msra.mxu0 %v1469
        %1737 = vmatprep.subr.mxu0 0.0
        %1738 = vmatpush1.msra.mxu0 %v1470
        %1739 = vmatprep.subr.mxu0 0.0
        %1740 = vmatpush1.msra.mxu0 %v1471
        %1741 = vmatprep.subr.mxu0 0.0
        %1742 = vmatpush1.msra.mxu0 %v1472
        %1743 = vmatprep.subr.mxu0 0.0
        %1744 = vmatpush1.msra.mxu0 %v1473
        %1745 = vmatprep.subr.mxu0 0.0
        %1746 = vmatpush1.msra.mxu0 %v1474
        %1747 = vmatprep.subr.mxu0 0.0
        %1748 = vmatpush1.msra.mxu0 %v1475
        %1749 = vmatprep.subr.mxu0 0.0
        %1750 = vmatpush1.msra.mxu0 %v1476
        %1751 = vmatprep.subr.mxu0 0.0
        %1752 = vmatpush1.msra.mxu0 %v1477
        %1753 = vmatprep.subr.mxu0 0.0
        %1754 = vmatpush1.msra.mxu0 %v1478
        %1755 = vmatprep.subr.mxu0 0.0
        %1756 = vmatpush1.msra.mxu0 %v1479
        %1757 = vmatprep.subr.mxu0 0.0
        %1758 = vmatpush1.msra.mxu0 %v1480
        %1759 = vmatprep.subr.mxu0 0.0
        %1760 = vmatpush1.msra.mxu0 %v1481
        %1761 = vmatprep.subr.mxu0 0.0
        %1762 = vmatpush1.msra.mxu0 %v1482
        %1763 = vmatprep.subr.mxu0 0.0
        %1764 = vmatpush1.msra.mxu0 %v1483
        %1765 = vmatprep.subr.mxu0 0.0
        %1766 = vmatpush1.msra.mxu0 %v1484
        %1767 = vmatprep.subr.mxu0 0.0
        %1768 = vmatpush1.msra.mxu0 %v1485
        %1769 = vmatprep.subr.mxu0 0.0
        %1770 = vmatpush1.msra.mxu0 %v1486
        %1771 = vmatprep.subr.mxu0 0.0
        %1772 = vmatpush1.msra.mxu0 %v1487
        %1773 = vmatprep.subr.mxu0 0.0
        %1774 = vmatpush1.msra.mxu0 %v1488
        %1775 = vmatprep.subr.mxu0 0.0
        %1776 = vmatpush1.msra.mxu0 %v1489
        %1777 = vmatprep.subr.mxu0 0.0
        %1778 = vmatpush1.msra.mxu0 %v1490
        %1779 = vmatprep.subr.mxu0 0.0
        %1780 = vmatpush1.msra.mxu0 %v1491
        %1781 = vmatprep.mubr.f32.mxu0 %v1143
        %1782 = vmatmul.mubr.f32.gmra.mrb[0].mxu0 %v1142
        %v1783 = vpop.f32.mrb[0].mxu0
        %v1784 = vadd.f32 %v1559, %v1783
        %v1785 = vpop.f32.mrb[0].mxu0
        %1786 = vmatprep.mubr.f32.mxu0 %v1147
        %1787 = vmatmul.mubr.f32.gmra.mrb[0].mxu0 %v1146
        %v1788 = vpop.f32.mrb[0].mxu0
        %v1789 = vadd.f32 %v1564, %v1788
        %v1790 = vpop.f32.mrb[0].mxu0
        %1791 = vmatprep.mubr.f32.mxu0 %v1151
        %1792 = vmatmul.mubr.f32.gmra.mrb[0].mxu0 %v1150
        %v1793 = vpop.f32.mrb[0].mxu0
        %v1794 = vadd.f32 %v1569, %v1793
        %v1795 = vpop.f32.mrb[0].mxu0
        %1796 = vmatprep.mubr.f32.mxu0 %v1155
        %1797 = vmatmul.mubr.f32.gmra.mrb[0].mxu0 %v1154
        %v1798 = vpop.f32.mrb[0].mxu0
        %v1799 = vadd.f32 %v1574, %v1798
        %v1800 = vpop.f32.mrb[0].mxu0
        %1801 = vmatprep.mubr.f32.mxu0 %v1159
        %1802 = vmatmul.mubr.f32.gmra.mrb[0].mxu0 %v1158
        %v1803 = vpop.f32.mrb[0].mxu0
        %v1804 = vadd.f32 %v1579, %v1803
        %v1805 = vpop.f32.mrb[0].mxu0
        %1806 = vmatprep.mubr.f32.mxu0 %v1163
        %1807 = vmatmul.mubr.f32.gmra.mrb[0].mxu0 %v1162
        %v1808 = vpop.f32.mrb[0].mxu0
        %v1809 = vadd.f32 %v1584, %v1808
        %v1810 = vpop.f32.mrb[0].mxu0
        %1811 = vmatprep.mubr.f32.mxu0 %v1167
        %1812 = vmatmul.mubr.f32.gmra.mrb[0].mxu0 %v1166
        %v1813 = vpop.f32.mrb[0].mxu0
        %v1814 = vadd.f32 %v1589, %v1813
        %v1815 = vpop.f32.mrb[0].mxu0
        %1816 = vmatprep.mubr.f32.mxu0 %v1171
        %1817 = vmatmul.mubr.f32.gmra.mrb[0].mxu0 %v1170
        %v1818 = vpop.f32.mrb[0].mxu0
        %v1819 = vadd.f32 %v1594, %v1818
        %v1820 = vpop.f32.mrb[0].mxu0
        %1821 = vmatprep.mubr.f32.mxu0 %v1175
        %1822 = vmatmul.mubr.f32.gmra.mrb[0].mxu0 %v1174
        %v1823 = vpop.f32.mrb[0].mxu0
        %v1824 = vadd.f32 %v1599, %v1823
        %v1825 = vpop.f32.mrb[0].mxu0
        %1826 = vmatprep.mubr.f32.mxu0 %v1179
        %1827 = vmatmul.mubr.f32.gmra.mrb[0].mxu0 %v1178
        %v1828 = vpop.f32.mrb[0].mxu0
        %v1829 = vadd.f32 %v1604, %v1828
        %v1830 = vpop.f32.mrb[0].mxu0
        %1831 = vmatprep.mubr.f32.mxu0 %v1183
        %1832 = vmatmul.mubr.f32.gmra.mrb[0].mxu0 %v1182
        %v1833 = vpop.f32.mrb[0].mxu0
        %v1834 = vadd.f32 %v1609, %v1833
        %v1835 = vpop.f32.mrb[0].mxu0
        %1836 = vmatprep.mubr.f32.mxu0 %v1187
        %1837 = vmatmul.mubr.f32.gmra.mrb[0].mxu0 %v1186
        %v1838 = vpop.f32.mrb[0].mxu0
        %v1839 = vadd.f32 %v1614, %v1838
        %v1840 = vpop.f32.mrb[0].mxu0
        %1841 = vmatprep.mubr.f32.mxu0 %v1191
        %1842 = vmatmul.mubr.f32.gmra.mrb[0].mxu0 %v1190
        %v1843 = vpop.f32.mrb[0].mxu0
        %v1844 = vadd.f32 %v1619, %v1843
        %v1845 = vpop.f32.mrb[0].mxu0
        %1846 = vmatprep.mubr.f32.mxu0 %v1195
        %1847 = vmatmul.mubr.f32.gmra.mrb[0].mxu0 %v1194
        %v1848 = vpop.f32.mrb[0].mxu0
        %v1849 = vadd.f32 %v1624, %v1848
        %v1850 = vpop.f32.mrb[0].mxu0
        %1851 = vmatprep.mubr.f32.mxu0 %v1199
        %1852 = vmatmul.mubr.f32.gmra.mrb[0].mxu0 %v1198
        %v1853 = vpop.f32.mrb[0].mxu0
        %v1854 = vadd.f32 %v1629, %v1853
        %v1855 = vpop.f32.mrb[0].mxu0
        %1856 = vmatprep.mubr.f32.mxu0 %v1203
        %1857 = vmatmul.mubr.f32.gmra.mrb[0].mxu0 %v1202
        %v1858 = vpop.f32.mrb[0].mxu0
        %v1859 = vadd.f32 %v1634, %v1858
        %v1860 = vpop.f32.mrb[0].mxu0
        %1861 = vmatprep.mubr.f32.mxu0 %v1207
        %1862 = vmatmul.mubr.f32.gmra.mrb[0].mxu0 %v1206
        %v1863 = vpop.f32.mrb[0].mxu0
        %v1864 = vadd.f32 %v1639, %v1863
        %v1865 = vpop.f32.mrb[0].mxu0
        %1866 = vmatprep.mubr.f32.mxu0 %v1211
        %1867 = vmatmul.mubr.f32.gmra.mrb[0].mxu0 %v1210
        %v1868 = vpop.f32.mrb[0].mxu0
        %v1869 = vadd.f32 %v1644, %v1868
        %v1870 = vpop.f32.mrb[0].mxu0
        %1871 = vmatprep.mubr.f32.mxu0 %v1215
        %1872 = vmatmul.mubr.f32.gmra.mrb[0].mxu0 %v1214
        %v1873 = vpop.f32.mrb[0].mxu0
        %v1874 = vadd.f32 %v1649, %v1873
        %v1875 = vpop.f32.mrb[0].mxu0
        %1876 = vmatprep.mubr.f32.mxu0 %v1219
        %1877 = vmatmul.mubr.f32.gmra.mrb[0].mxu0 %v1218
        %v1878 = vpop.f32.mrb[0].mxu0
        %v1879 = vadd.f32 %v1654, %v1878
        %v1880 = vpop.f32.mrb[0].mxu0
        %1881 = vmatprep.mubr.f32.mxu0 %v1223
        %1882 = vmatmul.mubr.f32.gmra.mrb[0].mxu0 %v1222
        %v1883 = vpop.f32.mrb[0].mxu0
        %v1884 = vadd.f32 %v1659, %v1883
        %v1885 = vpop.f32.mrb[0].mxu0
        %1886 = vmatprep.mubr.f32.mxu0 %v1227
        %1887 = vmatmul.mubr.f32.gmra.mrb[0].mxu0 %v1226
        %v1888 = vpop.f32.mrb[0].mxu0
        %v1889 = vadd.f32 %v1664, %v1888
        %v1890 = vpop.f32.mrb[0].mxu0
        %1891 = vmatprep.mubr.f32.mxu0 %v1231
        %1892 = vmatmul.mubr.f32.gmra.mrb[0].mxu0 %v1230
        %v1893 = vpop.f32.mrb[0].mxu0
        %v1894 = vadd.f32 %v1669, %v1893
        %v1895 = vpop.f32.mrb[0].mxu0
        %1896 = vmatprep.mubr.f32.mxu0 %v1235
        %1897 = vmatmul.mubr.f32.gmra.mrb[0].mxu0 %v1234
        %v1898 = vpop.f32.mrb[0].mxu0
        %v1899 = vadd.f32 %v1674, %v1898
        %v1900 = vpop.f32.mrb[0].mxu0
        %1901 = vmatprep.mubr.f32.mxu0 %v1239
        %1902 = vmatmul.mubr.f32.gmra.mrb[0].mxu0 %v1238
        %v1903 = vpop.f32.mrb[0].mxu0
        %v1904 = vadd.f32 %v1679, %v1903
        %v1905 = vpop.f32.mrb[0].mxu0
        %1906 = vmatprep.mubr.f32.mxu0 %v1243
        %1907 = vmatmul.mubr.f32.gmra.mrb[0].mxu0 %v1242
        %v1908 = vpop.f32.mrb[0].mxu0
        %v1909 = vadd.f32 %v1684, %v1908
        %v1910 = vpop.f32.mrb[0].mxu0
        %1911 = vmatprep.mubr.f32.mxu0 %v1247
        %1912 = vmatmul.mubr.f32.gmra.mrb[0].mxu0 %v1246
        %v1913 = vpop.f32.mrb[0].mxu0
        %v1914 = vadd.f32 %v1689, %v1913
        %v1915 = vpop.f32.mrb[0].mxu0
        %1916 = vmatprep.mubr.f32.mxu0 %v1251
        %1917 = vmatmul.mubr.f32.gmra.mrb[0].mxu0 %v1250
        %v1918 = vpop.f32.mrb[0].mxu0
        %v1919 = vadd.f32 %v1694, %v1918
        %v1920 = vpop.f32.mrb[0].mxu0
        %1921 = vmatprep.mubr.f32.mxu0 %v1255
        %1922 = vmatmul.mubr.f32.gmra.mrb[0].mxu0 %v1254
        %v1923 = vpop.f32.mrb[0].mxu0
        %v1924 = vadd.f32 %v1699, %v1923
        %v1925 = vpop.f32.mrb[0].mxu0
        %1926 = vmatprep.mubr.f32.mxu0 %v1259
        %1927 = vmatmul.mubr.f32.gmra.mrb[0].mxu0 %v1258
        %v1928 = vpop.f32.mrb[0].mxu0
        %v1929 = vadd.f32 %v1704, %v1928
        %v1930 = vpop.f32.mrb[0].mxu0
        %1931 = vmatprep.mubr.f32.mxu0 %v1263
        %1932 = vmatmul.mubr.f32.gmra.mrb[0].mxu0 %v1262
        %v1933 = vpop.f32.mrb[0].mxu0
        %v1934 = vadd.f32 %v1709, %v1933
        %v1935 = vpop.f32.mrb[0].mxu0
        %1936 = vmatprep.mubr.f32.mxu0 %v1267
        %1937 = vmatmul.mubr.f32.gmra.mrb[0].mxu0 %v1266
        %v1938 = vpop.f32.mrb[0].mxu0
        %v1939 = vadd.f32 %v1714, %v1938
        %v1940 = vpop.f32.mrb[0].mxu0
        %1941 = vdwg.mxu0
        %v1942 = vadd.f32 %v1396, %v1784
        %v1943 = vadd.f32 %v1397, %v1789
        %v1944 = vadd.f32 %v1398, %v1794
        %v1945 = vadd.f32 %v1399, %v1799
        %v1946 = vadd.f32 %v1400, %v1804
        %v1947 = vadd.f32 %v1401, %v1809
        %v1948 = vadd.f32 %v1402, %v1814
        %v1949 = vadd.f32 %v1403, %v1819
        %v1950 = vadd.f32 %v1404, %v1824
        %v1951 = vadd.f32 %v1405, %v1829
        %v1952 = vadd.f32 %v1406, %v1834
        %v1953 = vadd.f32 %v1407, %v1839
        %v1954 = vadd.f32 %v1408, %v1844
        %v1955 = vadd.f32 %v1409, %v1849
        %v1956 = vadd.f32 %v1410, %v1854
        %v1957 = vadd.f32 %v1411, %v1859
        %v1958 = vadd.f32 %v1412, %v1864
        %v1959 = vadd.f32 %v1413, %v1869
        %v1960 = vadd.f32 %v1414, %v1874
        %v1961 = vadd.f32 %v1415, %v1879
        %v1962 = vadd.f32 %v1416, %v1884
        %v1963 = vadd.f32 %v1417, %v1889
        %v1964 = vadd.f32 %v1418, %v1894
        %v1965 = vadd.f32 %v1419, %v1899
        %v1966 = vadd.f32 %v1420, %v1904
        %v1967 = vadd.f32 %v1421, %v1909
        %v1968 = vadd.f32 %v1422, %v1914
        %v1969 = vadd.f32 %v1423, %v1919
        %v1970 = vadd.f32 %v1424, %v1924
        %v1971 = vadd.f32 %v1425, %v1929
        %v1972 = vadd.f32 %v1426, %v1934
        %v1973 = vadd.f32 %v1427, %v1939
        %1974 = vst [vmem:[#allocation2] sm:$0xff] %v1942
        %1975 = vst [vmem:[#allocation2 + $0x8] sm:$0xff] %v1943
        %1976 = vst [vmem:[#allocation2 + $0x10] sm:$0xff] %v1944
        %1977 = vst [vmem:[#allocation2 + $0x18] sm:$0xff] %v1945
        %1978 = vst [vmem:[#allocation2 + $0x20] sm:$0xff] %v1946
        %1979 = vst [vmem:[#allocation2 + $0x28] sm:$0xff] %v1947
        %1980 = vst [vmem:[#allocation2 + $0x30] sm:$0xff] %v1948
        %1981 = vst [vmem:[#allocation2 + $0x38] sm:$0xff] %v1949
        %1982 = vst [vmem:[#allocation2 + $0x40] sm:$0xff] %v1950
        %1983 = vst [vmem:[#allocation2 + $0x48] sm:$0xff] %v1951
        %1984 = vst [vmem:[#allocation2 + $0x50] sm:$0xff] %v1952
        %1985 = vst [vmem:[#allocation2 + $0x58] sm:$0xff] %v1953
        %1986 = vst [vmem:[#allocation2 + $0x60] sm:$0xff] %v1954
        %1987 = vst [vmem:[#allocation2 + $0x68] sm:$0xff] %v1955
        %1988 = vst [vmem:[#allocation2 + $0x70] sm:$0xff] %v1956
        %1989 = vst [vmem:[#allocation2 + $0x78] sm:$0xff] %v1957
        %1990 = vst [vmem:[#allocation2 + $0x80] sm:$0xff] %v1958
        %1991 = vst [vmem:[#allocation2 + $0x88] sm:$0xff] %v1959
        %1992 = vst [vmem:[#allocation2 + $0x90] sm:$0xff] %v1960
        %1993 = vst [vmem:[#allocation2 + $0x98] sm:$0xff] %v1961
        %1994 = vst [vmem:[#allocation2 + $0xa0] sm:$0xff] %v1962
        %1995 = vst [vmem:[#allocation2 + $0xa8] sm:$0xff] %v1963
        %1996 = vst [vmem:[#allocation2 + $0xb0] sm:$0xff] %v1964
        %1997 = vst [vmem:[#allocation2 + $0xb8] sm:$0xff] %v1965
        %1998 = vst [vmem:[#allocation2 + $0xc0] sm:$0xff] %v1966
        %1999 = vst [vmem:[#allocation2 + $0xc8] sm:$0xff] %v1967
        %2000 = vst [vmem:[#allocation2 + $0xd0] sm:$0xff] %v1968
        %2001 = vst [vmem:[#allocation2 + $0xd8] sm:$0xff] %v1969
        %2002 = vst [vmem:[#allocation2 + $0xe0] sm:$0xff] %v1970
        %2003 = vst [vmem:[#allocation2 + $0xe8] sm:$0xff] %v1971
        %2004 = vst [vmem:[#allocation2 + $0xf0] sm:$0xff] %v1972
        %2005 = vst [vmem:[#allocation2 + $0xf8] sm:$0xff] %v1973
        %v2006 = vld [vmem:[#allocation4] sm:$0x1]
        %v2007 = vadd.f32 %v1140, %v1141
        %v2008 = vadd.f32 %v2007, %v1142
        %v2009 = vadd.f32 %v2008, %v1143
        %v2010 = vadd.f32 %v2009, %v1144
        %v2011 = vadd.f32 %v2010, %v1145
        %v2012 = vadd.f32 %v2011, %v1146
        %v2013 = vadd.f32 %v2012, %v1147
        %v2014 = vadd.f32 %v2013, %v1148
        %v2015 = vadd.f32 %v2014, %v1149
        %v2016 = vadd.f32 %v2015, %v1150
        %v2017 = vadd.f32 %v2016, %v1151
        %v2018 = vadd.f32 %v2017, %v1152
        %v2019 = vadd.f32 %v2018, %v1153
        %v2020 = vadd.f32 %v2019, %v1154
        %v2021 = vadd.f32 %v2020, %v1155
        %v2022 = vadd.f32 %v2021, %v1156
        %v2023 = vadd.f32 %v2022, %v1157
        %v2024 = vadd.f32 %v2023, %v1158
        %v2025 = vadd.f32 %v2024, %v1159
        %v2026 = vadd.f32 %v2025, %v1160
        %v2027 = vadd.f32 %v2026, %v1161
        %v2028 = vadd.f32 %v2027, %v1162
        %v2029 = vadd.f32 %v2028, %v1163
        %v2030 = vadd.f32 %v2029, %v1164
        %v2031 = vadd.f32 %v2030, %v1165
        %v2032 = vadd.f32 %v2031, %v1166
        %v2033 = vadd.f32 %v2032, %v1167
        %v2034 = vadd.f32 %v2033, %v1168
        %v2035 = vadd.f32 %v2034, %v1169
        %v2036 = vadd.f32 %v2035, %v1170
        %v2037 = vadd.f32 %v2036, %v1171
        %v2038 = vadd.f32 %v2037, %v1172
        %v2039 = vadd.f32 %v2038, %v1173
        %v2040 = vadd.f32 %v2039, %v1174
        %v2041 = vadd.f32 %v2040, %v1175
        %v2042 = vadd.f32 %v2041, %v1176
        %v2043 = vadd.f32 %v2042, %v1177
        %v2044 = vadd.f32 %v2043, %v1178
        %v2045 = vadd.f32 %v2044, %v1179
        %v2046 = vadd.f32 %v2045, %v1180
        %v2047 = vadd.f32 %v2046, %v1181
        %v2048 = vadd.f32 %v2047, %v1182
        %v2049 = vadd.f32 %v2048, %v1183
        %v2050 = vadd.f32 %v2049, %v1184
        %v2051 = vadd.f32 %v2050, %v1185
        %v2052 = vadd.f32 %v2051, %v1186
        %v2053 = vadd.f32 %v2052, %v1187
        %v2054 = vadd.f32 %v2053, %v1188
        %v2055 = vadd.f32 %v2054, %v1189
        %v2056 = vadd.f32 %v2055, %v1190
        %v2057 = vadd.f32 %v2056, %v1191
        %v2058 = vadd.f32 %v2057, %v1192
        %v2059 = vadd.f32 %v2058, %v1193
        %v2060 = vadd.f32 %v2059, %v1194
        %v2061 = vadd.f32 %v2060, %v1195
        %v2062 = vadd.f32 %v2061, %v1196
        %v2063 = vadd.f32 %v2062, %v1197
        %v2064 = vadd.f32 %v2063, %v1198
        %v2065 = vadd.f32 %v2064, %v1199
        %v2066 = vadd.f32 %v2065, %v1200
        %v2067 = vadd.f32 %v2066, %v1201
        %v2068 = vadd.f32 %v2067, %v1202
        %v2069 = vadd.f32 %v2068, %v1203
        %v2070 = vadd.f32 %v2069, %v1204
        %v2071 = vadd.f32 %v2070, %v1205
        %v2072 = vadd.f32 %v2071, %v1206
        %v2073 = vadd.f32 %v2072, %v1207
        %v2074 = vadd.f32 %v2073, %v1208
        %v2075 = vadd.f32 %v2074, %v1209
        %v2076 = vadd.f32 %v2075, %v1210
        %v2077 = vadd.f32 %v2076, %v1211
        %v2078 = vadd.f32 %v2077, %v1212
        %v2079 = vadd.f32 %v2078, %v1213
        %v2080 = vadd.f32 %v2079, %v1214
        %v2081 = vadd.f32 %v2080, %v1215
        %v2082 = vadd.f32 %v2081, %v1216
        %v2083 = vadd.f32 %v2082, %v1217
        %v2084 = vadd.f32 %v2083, %v1218
        %v2085 = vadd.f32 %v2084, %v1219
        %v2086 = vadd.f32 %v2085, %v1220
        %v2087 = vadd.f32 %v2086, %v1221
        %v2088 = vadd.f32 %v2087, %v1222
        %v2089 = vadd.f32 %v2088, %v1223
        %v2090 = vadd.f32 %v2089, %v1224
        %v2091 = vadd.f32 %v2090, %v1225
        %v2092 = vadd.f32 %v2091, %v1226
        %v2093 = vadd.f32 %v2092, %v1227
        %v2094 = vadd.f32 %v2093, %v1228
        %v2095 = vadd.f32 %v2094, %v1229
        %v2096 = vadd.f32 %v2095, %v1230
        %v2097 = vadd.f32 %v2096, %v1231
        %v2098 = vadd.f32 %v2097, %v1232
        %v2099 = vadd.f32 %v2098, %v1233
        %v2100 = vadd.f32 %v2099, %v1234
        %v2101 = vadd.f32 %v2100, %v1235
        %v2102 = vadd.f32 %v2101, %v1236
        %v2103 = vadd.f32 %v2102, %v1237
        %v2104 = vadd.f32 %v2103, %v1238
        %v2105 = vadd.f32 %v2104, %v1239
        %v2106 = vadd.f32 %v2105, %v1240
        %v2107 = vadd.f32 %v2106, %v1241
        %v2108 = vadd.f32 %v2107, %v1242
        %v2109 = vadd.f32 %v2108, %v1243
        %v2110 = vadd.f32 %v2109, %v1244
        %v2111 = vadd.f32 %v2110, %v1245
        %v2112 = vadd.f32 %v2111, %v1246
        %v2113 = vadd.f32 %v2112, %v1247
        %v2114 = vadd.f32 %v2113, %v1248
        %v2115 = vadd.f32 %v2114, %v1249
        %v2116 = vadd.f32 %v2115, %v1250
        %v2117 = vadd.f32 %v2116, %v1251
        %v2118 = vadd.f32 %v2117, %v1252
        %v2119 = vadd.f32 %v2118, %v1253
        %v2120 = vadd.f32 %v2119, %v1254
        %v2121 = vadd.f32 %v2120, %v1255
        %v2122 = vadd.f32 %v2121, %v1256
        %v2123 = vadd.f32 %v2122, %v1257
        %v2124 = vadd.f32 %v2123, %v1258
        %v2125 = vadd.f32 %v2124, %v1259
        %v2126 = vadd.f32 %v2125, %v1260
        %v2127 = vadd.f32 %v2126, %v1261
        %v2128 = vadd.f32 %v2127, %v1262
        %v2129 = vadd.f32 %v2128, %v1263
        %v2130 = vadd.f32 %v2129, %v1264
        %v2131 = vadd.f32 %v2130, %v1265
        %v2132 = vadd.f32 %v2131, %v1266
        %v2133 = vadd.f32 %v2132, %v1267
        %2134 = vadd.xlane.f32.xlu0 %v2133
        %v2135 = vpop.xlane.xlu0 %2134
        %v2136 = vrot.slane %v2135, 4
        %v2137 = vadd.f32 %v2135, %v2136
        %v2138 = vrot.slane %v2137, 2
        %v2139 = vadd.f32 %v2137, %v2138
        %v2140 = vrot.slane %v2139, 1
        %v2141 = vadd.f32 %v2139, %v2140
        %s2142 = vtos %v2141
        %v2143 = vstv %s2142
        %v2144 = vadd.f32 %v2006, %v2143
        %vm2145 = vcmask 0
        %2146 = vst.msk [vmem:[#allocation4] sm:$0x1] %vm2145, %v2144
        %v2147 = vld [vmem:[#allocation5] sm:$0x1]
        %vm2148 = vcmp.ne.f32.partialorder %v1140, 0.0
        %vm2149 = vcmp.ne.f32.partialorder %v1141, 0.0
        %vm2150 = vcmp.ne.f32.partialorder %v1142, 0.0
        %vm2151 = vcmp.ne.f32.partialorder %v1143, 0.0
        %vm2152 = vcmp.ne.f32.partialorder %v1144, 0.0
        %vm2153 = vcmp.ne.f32.partialorder %v1145, 0.0
        %vm2154 = vcmp.ne.f32.partialorder %v1146, 0.0
        %vm2155 = vcmp.ne.f32.partialorder %v1147, 0.0
        %vm2156 = vcmp.ne.f32.partialorder %v1148, 0.0
        %vm2157 = vcmp.ne.f32.partialorder %v1149, 0.0
        %vm2158 = vcmp.ne.f32.partialorder %v1150, 0.0
        %vm2159 = vcmp.ne.f32.partialorder %v1151, 0.0
        %vm2160 = vcmp.ne.f32.partialorder %v1152, 0.0
        %vm2161 = vcmp.ne.f32.partialorder %v1153, 0.0
        %vm2162 = vcmp.ne.f32.partialorder %v1154, 0.0
        %vm2163 = vcmp.ne.f32.partialorder %v1155, 0.0
        %vm2164 = vcmp.ne.f32.partialorder %v1156, 0.0
        %vm2165 = vcmp.ne.f32.partialorder %v1157, 0.0
        %vm2166 = vcmp.ne.f32.partialorder %v1158, 0.0
        %vm2167 = vcmp.ne.f32.partialorder %v1159, 0.0
        %vm2168 = vcmp.ne.f32.partialorder %v1160, 0.0
        %vm2169 = vcmp.ne.f32.partialorder %v1161, 0.0
        %vm2170 = vcmp.ne.f32.partialorder %v1162, 0.0
        %vm2171 = vcmp.ne.f32.partialorder %v1163, 0.0
        %vm2172 = vcmp.ne.f32.partialorder %v1164, 0.0
        %vm2173 = vcmp.ne.f32.partialorder %v1165, 0.0
        %vm2174 = vcmp.ne.f32.partialorder %v1166, 0.0
        %vm2175 = vcmp.ne.f32.partialorder %v1167, 0.0
        %vm2176 = vcmp.ne.f32.partialorder %v1168, 0.0
        %vm2177 = vcmp.ne.f32.partialorder %v1169, 0.0
        %vm2178 = vcmp.ne.f32.partialorder %v1170, 0.0
        %vm2179 = vcmp.ne.f32.partialorder %v1171, 0.0
        %vm2180 = vcmp.ne.f32.partialorder %v1172, 0.0
        %vm2181 = vcmp.ne.f32.partialorder %v1173, 0.0
        %vm2182 = vcmp.ne.f32.partialorder %v1174, 0.0
        %vm2183 = vcmp.ne.f32.partialorder %v1175, 0.0
        %vm2184 = vcmp.ne.f32.partialorder %v1176, 0.0
        %vm2185 = vcmp.ne.f32.partialorder %v1177, 0.0
        %vm2186 = vcmp.ne.f32.partialorder %v1178, 0.0
        %vm2187 = vcmp.ne.f32.partialorder %v1179, 0.0
        %vm2188 = vcmp.ne.f32.partialorder %v1180, 0.0
        %vm2189 = vcmp.ne.f32.partialorder %v1181, 0.0
        %vm2190 = vcmp.ne.f32.partialorder %v1182, 0.0
        %vm2191 = vcmp.ne.f32.partialorder %v1183, 0.0
        %vm2192 = vcmp.ne.f32.partialorder %v1184, 0.0
        %vm2193 = vcmp.ne.f32.partialorder %v1185, 0.0
        %vm2194 = vcmp.ne.f32.partialorder %v1186, 0.0
        %vm2195 = vcmp.ne.f32.partialorder %v1187, 0.0
        %vm2196 = vcmp.ne.f32.partialorder %v1188, 0.0
        %vm2197 = vcmp.ne.f32.partialorder %v1189, 0.0
        %vm2198 = vcmp.ne.f32.partialorder %v1190, 0.0
        %vm2199 = vcmp.ne.f32.partialorder %v1191, 0.0
        %vm2200 = vcmp.ne.f32.partialorder %v1192, 0.0
        %vm2201 = vcmp.ne.f32.partialorder %v1193, 0.0
        %vm2202 = vcmp.ne.f32.partialorder %v1194, 0.0
        %vm2203 = vcmp.ne.f32.partialorder %v1195, 0.0
        %vm2204 = vcmp.ne.f32.partialorder %v1196, 0.0
        %vm2205 = vcmp.ne.f32.partialorder %v1197, 0.0
        %vm2206 = vcmp.ne.f32.partialorder %v1198, 0.0
        %vm2207 = vcmp.ne.f32.partialorder %v1199, 0.0
        %vm2208 = vcmp.ne.f32.partialorder %v1200, 0.0
        %vm2209 = vcmp.ne.f32.partialorder %v1201, 0.0
        %vm2210 = vcmp.ne.f32.partialorder %v1202, 0.0
        %vm2211 = vcmp.ne.f32.partialorder %v1203, 0.0
        %vm2212 = vcmp.ne.f32.partialorder %v1204, 0.0
        %vm2213 = vcmp.ne.f32.partialorder %v1205, 0.0
        %vm2214 = vcmp.ne.f32.partialorder %v1206, 0.0
        %vm2215 = vcmp.ne.f32.partialorder %v1207, 0.0
        %vm2216 = vcmp.ne.f32.partialorder %v1208, 0.0
        %vm2217 = vcmp.ne.f32.partialorder %v1209, 0.0
        %vm2218 = vcmp.ne.f32.partialorder %v1210, 0.0
        %vm2219 = vcmp.ne.f32.partialorder %v1211, 0.0
        %vm2220 = vcmp.ne.f32.partialorder %v1212, 0.0
        %vm2221 = vcmp.ne.f32.partialorder %v1213, 0.0
        %vm2222 = vcmp.ne.f32.partialorder %v1214, 0.0
        %vm2223 = vcmp.ne.f32.partialorder %v1215, 0.0
        %vm2224 = vcmp.ne.f32.partialorder %v1216, 0.0
        %vm2225 = vcmp.ne.f32.partialorder %v1217, 0.0
        %vm2226 = vcmp.ne.f32.partialorder %v1218, 0.0
        %vm2227 = vcmp.ne.f32.partialorder %v1219, 0.0
        %vm2228 = vcmp.ne.f32.partialorder %v1220, 0.0
        %vm2229 = vcmp.ne.f32.partialorder %v1221, 0.0
        %vm2230 = vcmp.ne.f32.partialorder %v1222, 0.0
        %vm2231 = vcmp.ne.f32.partialorder %v1223, 0.0
        %vm2232 = vcmp.ne.f32.partialorder %v1224, 0.0
        %vm2233 = vcmp.ne.f32.partialorder %v1225, 0.0
        %vm2234 = vcmp.ne.f32.partialorder %v1226, 0.0
        %vm2235 = vcmp.ne.f32.partialorder %v1227, 0.0
        %vm2236 = vcmp.ne.f32.partialorder %v1228, 0.0
        %vm2237 = vcmp.ne.f32.partialorder %v1229, 0.0
        %vm2238 = vcmp.ne.f32.partialorder %v1230, 0.0
        %vm2239 = vcmp.ne.f32.partialorder %v1231, 0.0
        %vm2240 = vcmp.ne.f32.partialorder %v1232, 0.0
        %vm2241 = vcmp.ne.f32.partialorder %v1233, 0.0
        %vm2242 = vcmp.ne.f32.partialorder %v1234, 0.0
        %vm2243 = vcmp.ne.f32.partialorder %v1235, 0.0
        %vm2244 = vcmp.ne.f32.partialorder %v1236, 0.0
        %vm2245 = vcmp.ne.f32.partialorder %v1237, 0.0
        %vm2246 = vcmp.ne.f32.partialorder %v1238, 0.0
        %vm2247 = vcmp.ne.f32.partialorder %v1239, 0.0
        %vm2248 = vcmp.ne.f32.partialorder %v1240, 0.0
        %vm2249 = vcmp.ne.f32.partialorder %v1241, 0.0
        %vm2250 = vcmp.ne.f32.partialorder %v1242, 0.0
        %vm2251 = vcmp.ne.f32.partialorder %v1243, 0.0
        %vm2252 = vcmp.ne.f32.partialorder %v1244, 0.0
        %vm2253 = vcmp.ne.f32.partialorder %v1245, 0.0
        %vm2254 = vcmp.ne.f32.partialorder %v1246, 0.0
        %vm2255 = vcmp.ne.f32.partialorder %v1247, 0.0
        %vm2256 = vcmp.ne.f32.partialorder %v1248, 0.0
        %vm2257 = vcmp.ne.f32.partialorder %v1249, 0.0
        %vm2258 = vcmp.ne.f32.partialorder %v1250, 0.0
        %vm2259 = vcmp.ne.f32.partialorder %v1251, 0.0
        %vm2260 = vcmp.ne.f32.partialorder %v1252, 0.0
        %vm2261 = vcmp.ne.f32.partialorder %v1253, 0.0
        %vm2262 = vcmp.ne.f32.partialorder %v1254, 0.0
        %vm2263 = vcmp.ne.f32.partialorder %v1255, 0.0
        %vm2264 = vcmp.ne.f32.partialorder %v1256, 0.0
        %vm2265 = vcmp.ne.f32.partialorder %v1257, 0.0
        %vm2266 = vcmp.ne.f32.partialorder %v1258, 0.0
        %vm2267 = vcmp.ne.f32.partialorder %v1259, 0.0
        %vm2268 = vcmp.ne.f32.partialorder %v1260, 0.0
        %vm2269 = vcmp.ne.f32.partialorder %v1261, 0.0
        %vm2270 = vcmp.ne.f32.partialorder %v1262, 0.0
        %vm2271 = vcmp.ne.f32.partialorder %v1263, 0.0
        %vm2272 = vcmp.ne.f32.partialorder %v1264, 0.0
        %vm2273 = vcmp.ne.f32.partialorder %v1265, 0.0
        %vm2274 = vcmp.ne.f32.partialorder %v1266, 0.0
        %vm2275 = vcmp.ne.f32.partialorder %v1267, 0.0
        %v2276 = vsel %vm2148, 1, 0
        %v2277 = vsel %vm2149, 1, 0
        %v2278 = vsel %vm2150, 1, 0
        %v2279 = vsel %vm2151, 1, 0
        %v2280 = vsel %vm2152, 1, 0
        %v2281 = vsel %vm2153, 1, 0
        %v2282 = vsel %vm2154, 1, 0
        %v2283 = vsel %vm2155, 1, 0
        %v2284 = vsel %vm2156, 1, 0
        %v2285 = vsel %vm2157, 1, 0
        %v2286 = vsel %vm2158, 1, 0
        %v2287 = vsel %vm2159, 1, 0
        %v2288 = vsel %vm2160, 1, 0
        %v2289 = vsel %vm2161, 1, 0
        %v2290 = vsel %vm2162, 1, 0
        %v2291 = vsel %vm2163, 1, 0
        %v2292 = vsel %vm2164, 1, 0
        %v2293 = vsel %vm2165, 1, 0
        %v2294 = vsel %vm2166, 1, 0
        %v2295 = vsel %vm2167, 1, 0
        %v2296 = vsel %vm2168, 1, 0
        %v2297 = vsel %vm2169, 1, 0
        %v2298 = vsel %vm2170, 1, 0
        %v2299 = vsel %vm2171, 1, 0
        %v2300 = vsel %vm2172, 1, 0
        %v2301 = vsel %vm2173, 1, 0
        %v2302 = vsel %vm2174, 1, 0
        %v2303 = vsel %vm2175, 1, 0
        %v2304 = vsel %vm2176, 1, 0
        %v2305 = vsel %vm2177, 1, 0
        %v2306 = vsel %vm2178, 1, 0
        %v2307 = vsel %vm2179, 1, 0
        %v2308 = vsel %vm2180, 1, 0
        %v2309 = vsel %vm2181, 1, 0
        %v2310 = vsel %vm2182, 1, 0
        %v2311 = vsel %vm2183, 1, 0
        %v2312 = vsel %vm2184, 1, 0
        %v2313 = vsel %vm2185, 1, 0
        %v2314 = vsel %vm2186, 1, 0
        %v2315 = vsel %vm2187, 1, 0
        %v2316 = vsel %vm2188, 1, 0
        %v2317 = vsel %vm2189, 1, 0
        %v2318 = vsel %vm2190, 1, 0
        %v2319 = vsel %vm2191, 1, 0
        %v2320 = vsel %vm2192, 1, 0
        %v2321 = vsel %vm2193, 1, 0
        %v2322 = vsel %vm2194, 1, 0
        %v2323 = vsel %vm2195, 1, 0
        %v2324 = vsel %vm2196, 1, 0
        %v2325 = vsel %vm2197, 1, 0
        %v2326 = vsel %vm2198, 1, 0
        %v2327 = vsel %vm2199, 1, 0
        %v2328 = vsel %vm2200, 1, 0
        %v2329 = vsel %vm2201, 1, 0
        %v2330 = vsel %vm2202, 1, 0
        %v2331 = vsel %vm2203, 1, 0
        %v2332 = vsel %vm2204, 1, 0
        %v2333 = vsel %vm2205, 1, 0
        %v2334 = vsel %vm2206, 1, 0
        %v2335 = vsel %vm2207, 1, 0
        %v2336 = vsel %vm2208, 1, 0
        %v2337 = vsel %vm2209, 1, 0
        %v2338 = vsel %vm2210, 1, 0
        %v2339 = vsel %vm2211, 1, 0
        %v2340 = vsel %vm2212, 1, 0
        %v2341 = vsel %vm2213, 1, 0
        %v2342 = vsel %vm2214, 1, 0
        %v2343 = vsel %vm2215, 1, 0
        %v2344 = vsel %vm2216, 1, 0
        %v2345 = vsel %vm2217, 1, 0
        %v2346 = vsel %vm2218, 1, 0
        %v2347 = vsel %vm2219, 1, 0
        %v2348 = vsel %vm2220, 1, 0
        %v2349 = vsel %vm2221, 1, 0
        %v2350 = vsel %vm2222, 1, 0
        %v2351 = vsel %vm2223, 1, 0
        %v2352 = vsel %vm2224, 1, 0
        %v2353 = vsel %vm2225, 1, 0
        %v2354 = vsel %vm2226, 1, 0
        %v2355 = vsel %vm2227, 1, 0
        %v2356 = vsel %vm2228, 1, 0
        %v2357 = vsel %vm2229, 1, 0
        %v2358 = vsel %vm2230, 1, 0
        %v2359 = vsel %vm2231, 1, 0
        %v2360 = vsel %vm2232, 1, 0
        %v2361 = vsel %vm2233, 1, 0
        %v2362 = vsel %vm2234, 1, 0
        %v2363 = vsel %vm2235, 1, 0
        %v2364 = vsel %vm2236, 1, 0
        %v2365 = vsel %vm2237, 1, 0
        %v2366 = vsel %vm2238, 1, 0
        %v2367 = vsel %vm2239, 1, 0
        %v2368 = vsel %vm2240, 1, 0
        %v2369 = vsel %vm2241, 1, 0
        %v2370 = vsel %vm2242, 1, 0
        %v2371 = vsel %vm2243, 1, 0
        %v2372 = vsel %vm2244, 1, 0
        %v2373 = vsel %vm2245, 1, 0
        %v2374 = vsel %vm2246, 1, 0
        %v2375 = vsel %vm2247, 1, 0
        %v2376 = vsel %vm2248, 1, 0
        %v2377 = vsel %vm2249, 1, 0
        %v2378 = vsel %vm2250, 1, 0
        %v2379 = vsel %vm2251, 1, 0
        %v2380 = vsel %vm2252, 1, 0
        %v2381 = vsel %vm2253, 1, 0
        %v2382 = vsel %vm2254, 1, 0
        %v2383 = vsel %vm2255, 1, 0
        %v2384 = vsel %vm2256, 1, 0
        %v2385 = vsel %vm2257, 1, 0
        %v2386 = vsel %vm2258, 1, 0
        %v2387 = vsel %vm2259, 1, 0
        %v2388 = vsel %vm2260, 1, 0
        %v2389 = vsel %vm2261, 1, 0
        %v2390 = vsel %vm2262, 1, 0
        %v2391 = vsel %vm2263, 1, 0
        %v2392 = vsel %vm2264, 1, 0
        %v2393 = vsel %vm2265, 1, 0
        %v2394 = vsel %vm2266, 1, 0
        %v2395 = vsel %vm2267, 1, 0
        %v2396 = vsel %vm2268, 1, 0
        %v2397 = vsel %vm2269, 1, 0
        %v2398 = vsel %vm2270, 1, 0
        %v2399 = vsel %vm2271, 1, 0
        %v2400 = vsel %vm2272, 1, 0
        %v2401 = vsel %vm2273, 1, 0
        %v2402 = vsel %vm2274, 1, 0
        %v2403 = vsel %vm2275, 1, 0
        %v2404 = vcvt.s32.f32 %v2276
        %v2405 = vcvt.s32.f32 %v2277
        %v2406 = vcvt.s32.f32 %v2278
        %v2407 = vcvt.s32.f32 %v2279
        %v2408 = vcvt.s32.f32 %v2280
        %v2409 = vcvt.s32.f32 %v2281
        %v2410 = vcvt.s32.f32 %v2282
        %v2411 = vcvt.s32.f32 %v2283
        %v2412 = vcvt.s32.f32 %v2284
        %v2413 = vcvt.s32.f32 %v2285
        %v2414 = vcvt.s32.f32 %v2286
        %v2415 = vcvt.s32.f32 %v2287
        %v2416 = vcvt.s32.f32 %v2288
        %v2417 = vcvt.s32.f32 %v2289
        %v2418 = vcvt.s32.f32 %v2290
        %v2419 = vcvt.s32.f32 %v2291
        %v2420 = vcvt.s32.f32 %v2292
        %v2421 = vcvt.s32.f32 %v2293
        %v2422 = vcvt.s32.f32 %v2294
        %v2423 = vcvt.s32.f32 %v2295
        %v2424 = vcvt.s32.f32 %v2296
        %v2425 = vcvt.s32.f32 %v2297
        %v2426 = vcvt.s32.f32 %v2298
        %v2427 = vcvt.s32.f32 %v2299
        %v2428 = vcvt.s32.f32 %v2300
        %v2429 = vcvt.s32.f32 %v2301
        %v2430 = vcvt.s32.f32 %v2302
        %v2431 = vcvt.s32.f32 %v2303
        %v2432 = vcvt.s32.f32 %v2304
        %v2433 = vcvt.s32.f32 %v2305
        %v2434 = vcvt.s32.f32 %v2306
        %v2435 = vcvt.s32.f32 %v2307
        %v2436 = vcvt.s32.f32 %v2308
        %v2437 = vcvt.s32.f32 %v2309
        %v2438 = vcvt.s32.f32 %v2310
        %v2439 = vcvt.s32.f32 %v2311
        %v2440 = vcvt.s32.f32 %v2312
        %v2441 = vcvt.s32.f32 %v2313
        %v2442 = vcvt.s32.f32 %v2314
        %v2443 = vcvt.s32.f32 %v2315
        %v2444 = vcvt.s32.f32 %v2316
        %v2445 = vcvt.s32.f32 %v2317
        %v2446 = vcvt.s32.f32 %v2318
        %v2447 = vcvt.s32.f32 %v2319
        %v2448 = vcvt.s32.f32 %v2320
        %v2449 = vcvt.s32.f32 %v2321
        %v2450 = vcvt.s32.f32 %v2322
        %v2451 = vcvt.s32.f32 %v2323
        %v2452 = vcvt.s32.f32 %v2324
        %v2453 = vcvt.s32.f32 %v2325
        %v2454 = vcvt.s32.f32 %v2326
        %v2455 = vcvt.s32.f32 %v2327
        %v2456 = vcvt.s32.f32 %v2328
        %v2457 = vcvt.s32.f32 %v2329
        %v2458 = vcvt.s32.f32 %v2330
        %v2459 = vcvt.s32.f32 %v2331
        %v2460 = vcvt.s32.f32 %v2332
        %v2461 = vcvt.s32.f32 %v2333
        %v2462 = vcvt.s32.f32 %v2334
        %v2463 = vcvt.s32.f32 %v2335
        %v2464 = vcvt.s32.f32 %v2336
        %v2465 = vcvt.s32.f32 %v2337
        %v2466 = vcvt.s32.f32 %v2338
        %v2467 = vcvt.s32.f32 %v2339
        %v2468 = vcvt.s32.f32 %v2340
        %v2469 = vcvt.s32.f32 %v2341
        %v2470 = vcvt.s32.f32 %v2342
        %v2471 = vcvt.s32.f32 %v2343
        %v2472 = vcvt.s32.f32 %v2344
        %v2473 = vcvt.s32.f32 %v2345
        %v2474 = vcvt.s32.f32 %v2346
        %v2475 = vcvt.s32.f32 %v2347
        %v2476 = vcvt.s32.f32 %v2348
        %v2477 = vcvt.s32.f32 %v2349
        %v2478 = vcvt.s32.f32 %v2350
        %v2479 = vcvt.s32.f32 %v2351
        %v2480 = vcvt.s32.f32 %v2352
        %v2481 = vcvt.s32.f32 %v2353
        %v2482 = vcvt.s32.f32 %v2354
        %v2483 = vcvt.s32.f32 %v2355
        %v2484 = vcvt.s32.f32 %v2356
        %v2485 = vcvt.s32.f32 %v2357
        %v2486 = vcvt.s32.f32 %v2358
        %v2487 = vcvt.s32.f32 %v2359
        %v2488 = vcvt.s32.f32 %v2360
        %v2489 = vcvt.s32.f32 %v2361
        %v2490 = vcvt.s32.f32 %v2362
        %v2491 = vcvt.s32.f32 %v2363
        %v2492 = vcvt.s32.f32 %v2364
        %v2493 = vcvt.s32.f32 %v2365
        %v2494 = vcvt.s32.f32 %v2366
        %v2495 = vcvt.s32.f32 %v2367
        %v2496 = vcvt.s32.f32 %v2368
        %v2497 = vcvt.s32.f32 %v2369
        %v2498 = vcvt.s32.f32 %v2370
        %v2499 = vcvt.s32.f32 %v2371
        %v2500 = vcvt.s32.f32 %v2372
        %v2501 = vcvt.s32.f32 %v2373
        %v2502 = vcvt.s32.f32 %v2374
        %v2503 = vcvt.s32.f32 %v2375
        %v2504 = vcvt.s32.f32 %v2376
        %v2505 = vcvt.s32.f32 %v2377
        %v2506 = vcvt.s32.f32 %v2378
        %v2507 = vcvt.s32.f32 %v2379
        %v2508 = vcvt.s32.f32 %v2380
        %v2509 = vcvt.s32.f32 %v2381
        %v2510 = vcvt.s32.f32 %v2382
        %v2511 = vcvt.s32.f32 %v2383
        %v2512 = vcvt.s32.f32 %v2384
        %v2513 = vcvt.s32.f32 %v2385
        %v2514 = vcvt.s32.f32 %v2386
        %v2515 = vcvt.s32.f32 %v2387
        %v2516 = vcvt.s32.f32 %v2388
        %v2517 = vcvt.s32.f32 %v2389
        %v2518 = vcvt.s32.f32 %v2390
        %v2519 = vcvt.s32.f32 %v2391
        %v2520 = vcvt.s32.f32 %v2392
        %v2521 = vcvt.s32.f32 %v2393
        %v2522 = vcvt.s32.f32 %v2394
        %v2523 = vcvt.s32.f32 %v2395
        %v2524 = vcvt.s32.f32 %v2396
        %v2525 = vcvt.s32.f32 %v2397
        %v2526 = vcvt.s32.f32 %v2398
        %v2527 = vcvt.s32.f32 %v2399
        %v2528 = vcvt.s32.f32 %v2400
        %v2529 = vcvt.s32.f32 %v2401
        %v2530 = vcvt.s32.f32 %v2402
        %v2531 = vcvt.s32.f32 %v2403
        %v2532 = vadd.f32 %v2404, %v2405
        %v2533 = vadd.f32 %v2532, %v2406
        %v2534 = vadd.f32 %v2533, %v2407
        %v2535 = vadd.f32 %v2534, %v2408
        %v2536 = vadd.f32 %v2535, %v2409
        %v2537 = vadd.f32 %v2536, %v2410
        %v2538 = vadd.f32 %v2537, %v2411
        %v2539 = vadd.f32 %v2538, %v2412
        %v2540 = vadd.f32 %v2539, %v2413
        %v2541 = vadd.f32 %v2540, %v2414
        %v2542 = vadd.f32 %v2541, %v2415
        %v2543 = vadd.f32 %v2542, %v2416
        %v2544 = vadd.f32 %v2543, %v2417
        %v2545 = vadd.f32 %v2544, %v2418
        %v2546 = vadd.f32 %v2545, %v2419
        %v2547 = vadd.f32 %v2546, %v2420
        %v2548 = vadd.f32 %v2547, %v2421
        %v2549 = vadd.f32 %v2548, %v2422
        %v2550 = vadd.f32 %v2549, %v2423
        %v2551 = vadd.f32 %v2550, %v2424
        %v2552 = vadd.f32 %v2551, %v2425
        %v2553 = vadd.f32 %v2552, %v2426
        %v2554 = vadd.f32 %v2553, %v2427
        %v2555 = vadd.f32 %v2554, %v2428
        %v2556 = vadd.f32 %v2555, %v2429
        %v2557 = vadd.f32 %v2556, %v2430
        %v2558 = vadd.f32 %v2557, %v2431
        %v2559 = vadd.f32 %v2558, %v2432
        %v2560 = vadd.f32 %v2559, %v2433
        %v2561 = vadd.f32 %v2560, %v2434
        %v2562 = vadd.f32 %v2561, %v2435
        %v2563 = vadd.f32 %v2562, %v2436
        %v2564 = vadd.f32 %v2563, %v2437
        %v2565 = vadd.f32 %v2564, %v2438
        %v2566 = vadd.f32 %v2565, %v2439
        %v2567 = vadd.f32 %v2566, %v2440
        %v2568 = vadd.f32 %v2567, %v2441
        %v2569 = vadd.f32 %v2568, %v2442
        %v2570 = vadd.f32 %v2569, %v2443
        %v2571 = vadd.f32 %v2570, %v2444
        %v2572 = vadd.f32 %v2571, %v2445
        %v2573 = vadd.f32 %v2572, %v2446
        %v2574 = vadd.f32 %v2573, %v2447
        %v2575 = vadd.f32 %v2574, %v2448
        %v2576 = vadd.f32 %v2575, %v2449
        %v2577 = vadd.f32 %v2576, %v2450
        %v2578 = vadd.f32 %v2577, %v2451
        %v2579 = vadd.f32 %v2578, %v2452
        %v2580 = vadd.f32 %v2579, %v2453
        %v2581 = vadd.f32 %v2580, %v2454
        %v2582 = vadd.f32 %v2581, %v2455
        %v2583 = vadd.f32 %v2582, %v2456
        %v2584 = vadd.f32 %v2583, %v2457
        %v2585 = vadd.f32 %v2584, %v2458
        %v2586 = vadd.f32 %v2585, %v2459
        %v2587 = vadd.f32 %v2586, %v2460
        %v2588 = vadd.f32 %v2587, %v2461
        %v2589 = vadd.f32 %v2588, %v2462
        %v2590 = vadd.f32 %v2589, %v2463
        %v2591 = vadd.f32 %v2590, %v2464
        %v2592 = vadd.f32 %v2591, %v2465
        %v2593 = vadd.f32 %v2592, %v2466
        %v2594 = vadd.f32 %v2593, %v2467
        %v2595 = vadd.f32 %v2594, %v2468
        %v2596 = vadd.f32 %v2595, %v2469
        %v2597 = vadd.f32 %v2596, %v2470
        %v2598 = vadd.f32 %v2597, %v2471
        %v2599 = vadd.f32 %v2598, %v2472
        %v2600 = vadd.f32 %v2599, %v2473
        %v2601 = vadd.f32 %v2600, %v2474
        %v2602 = vadd.f32 %v2601, %v2475
        %v2603 = vadd.f32 %v2602, %v2476
        %v2604 = vadd.f32 %v2603, %v2477
        %v2605 = vadd.f32 %v2604, %v2478
        %v2606 = vadd.f32 %v2605, %v2479
        %v2607 = vadd.f32 %v2606, %v2480
        %v2608 = vadd.f32 %v2607, %v2481
        %v2609 = vadd.f32 %v2608, %v2482
        %v2610 = vadd.f32 %v2609, %v2483
        %v2611 = vadd.f32 %v2610, %v2484
        %v2612 = vadd.f32 %v2611, %v2485
        %v2613 = vadd.f32 %v2612, %v2486
        %v2614 = vadd.f32 %v2613, %v2487
        %v2615 = vadd.f32 %v2614, %v2488
        %v2616 = vadd.f32 %v2615, %v2489
        %v2617 = vadd.f32 %v2616, %v2490
        %v2618 = vadd.f32 %v2617, %v2491
        %v2619 = vadd.f32 %v2618, %v2492
        %v2620 = vadd.f32 %v2619, %v2493
        %v2621 = vadd.f32 %v2620, %v2494
        %v2622 = vadd.f32 %v2621, %v2495
        %v2623 = vadd.f32 %v2622, %v2496
        %v2624 = vadd.f32 %v2623, %v2497
        %v2625 = vadd.f32 %v2624, %v2498
        %v2626 = vadd.f32 %v2625, %v2499
        %v2627 = vadd.f32 %v2626, %v2500
        %v2628 = vadd.f32 %v2627, %v2501
        %v2629 = vadd.f32 %v2628, %v2502
        %v2630 = vadd.f32 %v2629, %v2503
        %v2631 = vadd.f32 %v2630, %v2504
        %v2632 = vadd.f32 %v2631, %v2505
        %v2633 = vadd.f32 %v2632, %v2506
        %v2634 = vadd.f32 %v2633, %v2507
        %v2635 = vadd.f32 %v2634, %v2508
        %v2636 = vadd.f32 %v2635, %v2509
        %v2637 = vadd.f32 %v2636, %v2510
        %v2638 = vadd.f32 %v2637, %v2511
        %v2639 = vadd.f32 %v2638, %v2512
        %v2640 = vadd.f32 %v2639, %v2513
        %v2641 = vadd.f32 %v2640, %v2514
        %v2642 = vadd.f32 %v2641, %v2515
        %v2643 = vadd.f32 %v2642, %v2516
        %v2644 = vadd.f32 %v2643, %v2517
        %v2645 = vadd.f32 %v2644, %v2518
        %v2646 = vadd.f32 %v2645, %v2519
        %v2647 = vadd.f32 %v2646, %v2520
        %v2648 = vadd.f32 %v2647, %v2521
        %v2649 = vadd.f32 %v2648, %v2522
        %v2650 = vadd.f32 %v2649, %v2523
        %v2651 = vadd.f32 %v2650, %v2524
        %v2652 = vadd.f32 %v2651, %v2525
        %v2653 = vadd.f32 %v2652, %v2526
        %v2654 = vadd.f32 %v2653, %v2527
        %v2655 = vadd.f32 %v2654, %v2528
        %v2656 = vadd.f32 %v2655, %v2529
        %v2657 = vadd.f32 %v2656, %v2530
        %v2658 = vadd.f32 %v2657, %v2531
        %2659 = vadd.xlane.f32.xlu0 %v2658
        %v2660 = vpop.xlane.xlu0 %2659
        %v2661 = vrot.slane %v2660, 4
        %v2662 = vadd.f32 %v2660, %v2661
        %v2663 = vrot.slane %v2662, 2
        %v2664 = vadd.f32 %v2662, %v2663
        %v2665 = vrot.slane %v2664, 1
        %v2666 = vadd.f32 %v2664, %v2665
        %s2667 = vtos %v2666
        %v2668 = vstv %s2667
        %v2669 = vadd.f32 %v2147, %v2668
        %2670 = vst.msk [vmem:[#allocation5] sm:$0x1] %vm2145, %v2669
        %p2671 = scmp.eq.s32.totalorder %s41, 1
        // Predicated region
        $region61: #{tpu_custom_call.1} parent=35 // pred_check
          %p2672 = pneg %p2671
        $region62: #{tpu_custom_call.1} parent=35 // pred_check_branch
          %2674 = sbr.rel (%p2672) target = $region64
        $region63: #{tpu_custom_call.1} parent=35 // pred_region
          %v2675 = vld [vmem:[#allocation2] sm:$0xff]
          %v2676 = vld [vmem:[#allocation2 + $0x8] sm:$0xff]
          %v2677 = vld [vmem:[#allocation2 + $0x10] sm:$0xff]
          %v2678 = vld [vmem:[#allocation2 + $0x18] sm:$0xff]
          %v2679 = vld [vmem:[#allocation2 + $0x20] sm:$0xff]
          %v2680 = vld [vmem:[#allocation2 + $0x28] sm:$0xff]
          %v2681 = vld [vmem:[#allocation2 + $0x30] sm:$0xff]
          %v2682 = vld [vmem:[#allocation2 + $0x38] sm:$0xff]
          %v2683 = vld [vmem:[#allocation2 + $0x40] sm:$0xff]
          %v2684 = vld [vmem:[#allocation2 + $0x48] sm:$0xff]
          %v2685 = vld [vmem:[#allocation2 + $0x50] sm:$0xff]
          %v2686 = vld [vmem:[#allocation2 + $0x58] sm:$0xff]
          %v2687 = vld [vmem:[#allocation2 + $0x60] sm:$0xff]
          %v2688 = vld [vmem:[#allocation2 + $0x68] sm:$0xff]
          %v2689 = vld [vmem:[#allocation2 + $0x70] sm:$0xff]
          %v2690 = vld [vmem:[#allocation2 + $0x78] sm:$0xff]
          %v2691 = vld [vmem:[#allocation2 + $0x80] sm:$0xff]
          %v2692 = vld [vmem:[#allocation2 + $0x88] sm:$0xff]
          %v2693 = vld [vmem:[#allocation2 + $0x90] sm:$0xff]
          %v2694 = vld [vmem:[#allocation2 + $0x98] sm:$0xff]
          %v2695 = vld [vmem:[#allocation2 + $0xa0] sm:$0xff]
          %v2696 = vld [vmem:[#allocation2 + $0xa8] sm:$0xff]
          %v2697 = vld [vmem:[#allocation2 + $0xb0] sm:$0xff]
          %v2698 = vld [vmem:[#allocation2 + $0xb8] sm:$0xff]
          %v2699 = vld [vmem:[#allocation2 + $0xc0] sm:$0xff]
          %v2700 = vld [vmem:[#allocation2 + $0xc8] sm:$0xff]
          %v2701 = vld [vmem:[#allocation2 + $0xd0] sm:$0xff]
          %v2702 = vld [vmem:[#allocation2 + $0xd8] sm:$0xff]
          %v2703 = vld [vmem:[#allocation2 + $0xe0] sm:$0xff]
          %v2704 = vld [vmem:[#allocation2 + $0xe8] sm:$0xff]
          %v2705 = vld [vmem:[#allocation2 + $0xf0] sm:$0xff]
          %v2706 = vld [vmem:[#allocation2 + $0xf8] sm:$0xff]
          %2707 = vst [vmem:[%s442] sm:$0xff] %v2675
          %2708 = vst [vmem:[%s442 + $0x8] sm:$0xff] %v2676
          %2709 = vst [vmem:[%s442 + $0x10] sm:$0xff] %v2677
          %2710 = vst [vmem:[%s442 + $0x18] sm:$0xff] %v2678
          %2711 = vst [vmem:[%s442 + $0x20] sm:$0xff] %v2679
          %2712 = vst [vmem:[%s442 + $0x28] sm:$0xff] %v2680
          %2713 = vst [vmem:[%s442 + $0x30] sm:$0xff] %v2681
          %2714 = vst [vmem:[%s442 + $0x38] sm:$0xff] %v2682
          %2715 = vst [vmem:[%s442 + $0x40] sm:$0xff] %v2683
          %2716 = vst [vmem:[%s442 + $0x48] sm:$0xff] %v2684
          %2717 = vst [vmem:[%s442 + $0x50] sm:$0xff] %v2685
          %2718 = vst [vmem:[%s442 + $0x58] sm:$0xff] %v2686
          %2719 = vst [vmem:[%s442 + $0x60] sm:$0xff] %v2687
          %2720 = vst [vmem:[%s442 + $0x68] sm:$0xff] %v2688
          %2721 = vst [vmem:[%s442 + $0x70] sm:$0xff] %v2689
          %2722 = vst [vmem:[%s442 + $0x78] sm:$0xff] %v2690
          %2723 = vst [vmem:[%s442 + $0x80] sm:$0xff] %v2691
          %2724 = vst [vmem:[%s442 + $0x88] sm:$0xff] %v2692
          %2725 = vst [vmem:[%s442 + $0x90] sm:$0xff] %v2693
          %2726 = vst [vmem:[%s442 + $0x98] sm:$0xff] %v2694
          %2727 = vst [vmem:[%s442 + $0xa0] sm:$0xff] %v2695
          %2728 = vst [vmem:[%s442 + $0xa8] sm:$0xff] %v2696
          %2729 = vst [vmem:[%s442 + $0xb0] sm:$0xff] %v2697
          %2730 = vst [vmem:[%s442 + $0xb8] sm:$0xff] %v2698
          %2731 = vst [vmem:[%s442 + $0xc0] sm:$0xff] %v2699
          %2732 = vst [vmem:[%s442 + $0xc8] sm:$0xff] %v2700
          %2733 = vst [vmem:[%s442 + $0xd0] sm:$0xff] %v2701
          %2734 = vst [vmem:[%s442 + $0xd8] sm:$0xff] %v2702
          %2735 = vst [vmem:[%s442 + $0xe0] sm:$0xff] %v2703
          %2736 = vst [vmem:[%s442 + $0xe8] sm:$0xff] %v2704
          %2737 = vst [vmem:[%s442 + $0xf0] sm:$0xff] %v2705
          %2738 = vst [vmem:[%s442 + $0xf8] sm:$0xff] %v2706
          %v2739 = vsub.f32 %v508, %v2675
          %v2740 = vsub.f32 %v509, %v2676
          %v2741 = vsub.f32 %v510, %v2677
          %v2742 = vsub.f32 %v511, %v2678
          %v2743 = vsub.f32 %v512, %v2679
          %v2744 = vsub.f32 %v513, %v2680
          %v2745 = vsub.f32 %v514, %v2681
          %v2746 = vsub.f32 %v515, %v2682
          %v2747 = vsub.f32 %v516, %v2683
          %v2748 = vsub.f32 %v517, %v2684
          %v2749 = vsub.f32 %v518, %v2685
          %v2750 = vsub.f32 %v519, %v2686
          %v2751 = vsub.f32 %v520, %v2687
          %v2752 = vsub.f32 %v521, %v2688
          %v2753 = vsub.f32 %v522, %v2689
          %v2754 = vsub.f32 %v523, %v2690
          %v2755 = vsub.f32 %v524, %v2691
          %v2756 = vsub.f32 %v525, %v2692
          %v2757 = vsub.f32 %v526, %v2693
          %v2758 = vsub.f32 %v527, %v2694
          %v2759 = vsub.f32 %v528, %v2695
          %v2760 = vsub.f32 %v529, %v2696
          %v2761 = vsub.f32 %v530, %v2697
          %v2762 = vsub.f32 %v531, %v2698
          %v2763 = vsub.f32 %v532, %v2699
          %v2764 = vsub.f32 %v533, %v2700
          %v2765 = vsub.f32 %v534, %v2701
          %v2766 = vsub.f32 %v535, %v2702
          %v2767 = vsub.f32 %v536, %v2703
          %v2768 = vsub.f32 %v537, %v2704
          %v2769 = vsub.f32 %v538, %v2705
          %v2770 = vsub.f32 %v539, %v2706
          %v2771 = vld [vmem:[#allocation3] sm:$0x1]
          %v2772 = vmul.f32 %v2739, %v2739
          %v2773 = vmul.f32 %v2740, %v2740
          %v2774 = vmul.f32 %v2741, %v2741
          %v2775 = vmul.f32 %v2742, %v2742
          %v2776 = vmul.f32 %v2743, %v2743
          %v2777 = vmul.f32 %v2744, %v2744
          %v2778 = vmul.f32 %v2745, %v2745
          %v2779 = vmul.f32 %v2746, %v2746
          %v2780 = vmul.f32 %v2747, %v2747
          %v2781 = vmul.f32 %v2748, %v2748
          %v2782 = vmul.f32 %v2749, %v2749
          %v2783 = vmul.f32 %v2750, %v2750
          %v2784 = vmul.f32 %v2751, %v2751
          %v2785 = vmul.f32 %v2752, %v2752
          %v2786 = vmul.f32 %v2753, %v2753
          %v2787 = vmul.f32 %v2754, %v2754
          %v2788 = vmul.f32 %v2755, %v2755
          %v2789 = vmul.f32 %v2756, %v2756
          %v2790 = vmul.f32 %v2757, %v2757
          %v2791 = vmul.f32 %v2758, %v2758
          %v2792 = vmul.f32 %v2759, %v2759
          %v2793 = vmul.f32 %v2760, %v2760
          %v2794 = vmul.f32 %v2761, %v2761
          %v2795 = vmul.f32 %v2762, %v2762
          %v2796 = vmul.f32 %v2763, %v2763
          %v2797 = vmul.f32 %v2764, %v2764
          %v2798 = vmul.f32 %v2765, %v2765
          %v2799 = vmul.f32 %v2766, %v2766
          %v2800 = vmul.f32 %v2767, %v2767
          %v2801 = vmul.f32 %v2768, %v2768
          %v2802 = vmul.f32 %v2769, %v2769
          %v2803 = vmul.f32 %v2770, %v2770
          %v2804 = vadd.f32 %v2772, %v2773
          %v2805 = vadd.f32 %v2804, %v2774
          %v2806 = vadd.f32 %v2805, %v2775
          %v2807 = vadd.f32 %v2806, %v2776
          %v2808 = vadd.f32 %v2807, %v2777
          %v2809 = vadd.f32 %v2808, %v2778
          %v2810 = vadd.f32 %v2809, %v2779
          %v2811 = vadd.f32 %v2810, %v2780
          %v2812 = vadd.f32 %v2811, %v2781
          %v2813 = vadd.f32 %v2812, %v2782
          %v2814 = vadd.f32 %v2813, %v2783
          %v2815 = vadd.f32 %v2814, %v2784
          %v2816 = vadd.f32 %v2815, %v2785
          %v2817 = vadd.f32 %v2816, %v2786
          %v2818 = vadd.f32 %v2817, %v2787
          %v2819 = vadd.f32 %v2818, %v2788
          %v2820 = vadd.f32 %v2819, %v2789
          %v2821 = vadd.f32 %v2820, %v2790
          %v2822 = vadd.f32 %v2821, %v2791
          %v2823 = vadd.f32 %v2822, %v2792
          %v2824 = vadd.f32 %v2823, %v2793
          %v2825 = vadd.f32 %v2824, %v2794
          %v2826 = vadd.f32 %v2825, %v2795
          %v2827 = vadd.f32 %v2826, %v2796
          %v2828 = vadd.f32 %v2827, %v2797
          %v2829 = vadd.f32 %v2828, %v2798
          %v2830 = vadd.f32 %v2829, %v2799
          %v2831 = vadd.f32 %v2830, %v2800
          %v2832 = vadd.f32 %v2831, %v2801
          %v2833 = vadd.f32 %v2832, %v2802
          %v2834 = vadd.f32 %v2833, %v2803
          %2835 = vadd.xlane.f32.xlu0 %v2834
          %v2836 = vpop.xlane.xlu0 %2835
          %v2837 = vrot.slane %v2836, 4
          %v2838 = vadd.f32 %v2836, %v2837
          %v2839 = vrot.slane %v2838, 2
          %v2840 = vadd.f32 %v2838, %v2839
          %v2841 = vrot.slane %v2840, 1
          %v2842 = vadd.f32 %v2840, %v2841
          %s2843 = vtos %v2842
          %v2844 = vstv %s2843
          %v2845 = vadd.f32 %v2771, %v2844
          %2846 = vst.msk [vmem:[#allocation3] sm:$0x1] %vm2145, %v2845
        $region64: #{tpu_custom_call.1} parent=35 // pred_fallthru
          _
        %p2847 = scmp.eq.s32.totalorder %s40, 1
        %p2848 = pnand %p2847, %p2671
        %p2849 = pneg %p2848
        // Predicated region
        $region65: #{tpu_custom_call.1} parent=35 // pred_check
          _
        $region66: #{tpu_custom_call.1} parent=35 // pred_check_branch
          %2851 = sbr.rel (%p2848) target = $region68
        $region67: #{tpu_custom_call.1} parent=35 // pred_region
          %v2852 = vld [vmem:[#allocation3] sm:$0x1]
          %v2853 = vmul.f32 %v2852, 1.5258789e-05
          %v2854 = vld [vmem:[#allocation4] sm:$0x1]
          %v2855 = vmul.f32 %v2854, 1.9073486e-06
          %v2856 = vld [vmem:[#allocation5] sm:$0x1]
          %v2857 = vmul.f32 %v2856, 1.9073486e-06
          %v2858 = vadd.f32 %v2853, %v2855
          %2859 = vst.msk [vmem:[#allocation17] sm:$0x1] %vm2145, %v2858
          %2860 = vst.msk [vmem:[#allocation18] sm:$0x1] %vm2145, %v2855
          %2861 = vst.msk [vmem:[#allocation20] sm:$0x1] %vm2145, %v2857
        $region68: #{tpu_custom_call.1} parent=35 // pred_fallthru
          _
        %s2862 = sand.u32 %s160, 1
        %s2863 = scalar_lea.sflag [#allocation8], %s2862
        %s2864 = sand.u32 %s160, 1
        %s2865 = smul.addr %s2864, 256
        %s2866 = scalar_lea.vmem [#allocation14], %s2865
        %s2867 = sand.u32 %s36, 1
        %s2868 = scalar_lea.sflag [#allocation16], %s2867
        %s2869 = sand.u32 %s188, 1
        %s2870 = smul.addr %s2869, 1024
        %s2871 = scalar_lea.vmem [#allocation15], %s2870
        // Predicated region
        $region69: #{tpu_custom_call.1} parent=35 // pred_check
          %p2872 = pneg %p170
        $region70: #{tpu_custom_call.1} parent=35 // pred_check_branch
          %2874 = sbr.rel (%p2872) target = $region72
        $region71: #{tpu_custom_call.1} parent=35 // pred_region
          %s2875 = smul.u32 32, %s40
          %s2877 = ssub.s32 4096, 4096
          %2878 = vsyncadd %s2863, %s2877
          %s2879 = smul.addr %s2875, 128
          %s2880 = scalar_lea.hbm %s4, %s2879
          %s2881 = sshll.u32 %s2866, 4
          %s2882 = int_to_ptr.vmem [resolvable:$true] %s2881
          %2887 = dma.vmem_to_hbm [thread:$0]  %s2882, 4096, %s2880, %s2863, 128, 128, 8
        $region72: #{tpu_custom_call.1} parent=35 // pred_fallthru
          _
        // Predicated region
        $region73: #{tpu_custom_call.1} parent=35 // pred_check
          %p2888 = pneg %p198
        $region74: #{tpu_custom_call.1} parent=35 // pred_check_branch
          %2890 = sbr.rel (%p2888) target = $region76
        $region75: #{tpu_custom_call.1} parent=35 // pred_region
          %s2891 = smul.u32 32, %s40
          %s2892 = smul.u32 4, %s41
          %s2894 = ssub.s32 16384, 16384
          %2895 = vsyncadd %s2868, %s2894
          %s2896 = smul.addr %s2891, 8
          %s2897 = sadd.s32 %s2892, %s2896
          %s2898 = smul.addr %s2897, 128
          %s2899 = scalar_lea.hbm %s5, %s2898
          %s2900 = sshll.u32 %s2871, 4
          %s2901 = int_to_ptr.vmem [resolvable:$true] %s2900
          %2906 = dma.vmem_to_hbm [thread:$0]  %s2901, 16384, %s2899, %s2868, 512, 1024, 32
        $region76: #{tpu_custom_call.1} parent=35 // pred_fallthru
          _
        // Predicated region
        $region77: #{tpu_custom_call.1} parent=35 // pred_check
          %p2907 = pneg %p219
        $region78: #{tpu_custom_call.1} parent=35 // pred_check_branch
          %2909 = sbr.rel (%p2907) target = $region80
        $region79: #{tpu_custom_call.1} parent=35 // pred_region
          %s2911 = ssub.s32 16, 16
          %2912 = vsyncadd [#allocation16], %s2911
          %s2914 = sshll.u32 [#allocation17], 4
          %s2915 = int_to_ptr.vmem [resolvable:$true] %s2914
          %2917 = dma.vmem_to_hbm [thread:$0]  %s2915, 16, %s6, [#allocation16]
        $region80: #{tpu_custom_call.1} parent=35 // pred_fallthru
          _
        // Predicated region
        $region81: #{tpu_custom_call.1} parent=35 // pred_check
          %p2918 = pneg %p240
        $region82: #{tpu_custom_call.1} parent=35 // pred_check_branch
          %2920 = sbr.rel (%p2918) target = $region84
        $region83: #{tpu_custom_call.1} parent=35 // pred_region
          %s2922 = ssub.s32 16, 16
          %2923 = vsyncadd [#allocation19], %s2922
          %s2925 = sshll.u32 [#allocation18], 4
          %s2926 = int_to_ptr.vmem [resolvable:$true] %s2925
          %2928 = dma.vmem_to_hbm [thread:$0]  %s2926, 16, %s7, [#allocation19]
        $region84: #{tpu_custom_call.1} parent=35 // pred_fallthru
          _
        // Predicated region
        $region85: #{tpu_custom_call.1} parent=35 // pred_check
          %p2929 = pneg %p261
        $region86: #{tpu_custom_call.1} parent=35 // pred_check_branch
          %2931 = sbr.rel (%p2929) target = $region88
        $region87: #{tpu_custom_call.1} parent=35 // pred_region
          %s2933 = ssub.s32 16, 16
          %2934 = vsyncadd [#allocation19], %s2933
          %s2936 = sshll.u32 [#allocation20], 4
          %s2937 = int_to_ptr.vmem [resolvable:$true] %s2936
          %2939 = dma.vmem_to_hbm [thread:$0]  %s2937, 16, %s8, [#allocation19]
        $region88: #{tpu_custom_call.1} parent=35 // pred_fallthru
          _
        // Predicated region
        $region89: #{tpu_custom_call.1} parent=35 // pred_check
          %p2940 = pneg %p219
        $region90: #{tpu_custom_call.1} parent=35 // pred_check_branch
          %2942 = sbr.rel (%p2940) target = $region92
        $region91: #{tpu_custom_call.1} parent=35 // pred_region
          %2943 = dma.done [#allocation16], 16
        $region92: #{tpu_custom_call.1} parent=35 // pred_fallthru
          _
        // Predicated region
        $region93: #{tpu_custom_call.1} parent=35 // pred_check
          %p2944 = pneg %p240
        $region94: #{tpu_custom_call.1} parent=35 // pred_check_branch
          %2946 = sbr.rel (%p2944) target = $region96
        $region95: #{tpu_custom_call.1} parent=35 // pred_region
          %2947 = dma.done [#allocation19], 16
        $region96: #{tpu_custom_call.1} parent=35 // pred_fallthru
          _
        // Predicated region
        $region97: #{tpu_custom_call.1} parent=35 // pred_check
          %p2948 = pneg %p261
        $region98: #{tpu_custom_call.1} parent=35 // pred_check_branch
          %2950 = sbr.rel (%p2948) target = $region100
        $region99: #{tpu_custom_call.1} parent=35 // pred_region
          %2951 = dma.done [#allocation19], 16
        $region100: #{tpu_custom_call.1} parent=35 // pred_fallthru
          _
      $region36: #{tpu_custom_call.1} parent=5 // pred_fallthru
        _
      %p2952 = scmp.le.s32.totalorder 2, %s31
      // Predicated region
      $region101: #{tpu_custom_call.1} parent=5 // pred_check
        %p2953 = pneg %p2952
      $region102: #{tpu_custom_call.1} parent=5 // pred_check_branch
        %2955 = sbr.rel (%p2953) target = $region104
      $region103: #{tpu_custom_call.1} parent=5 // pred_region
        %s2956 = ssub.s32 %s31, 2
        // Predicated region
        $region105: #{tpu_custom_call.1} parent=103 // pred_check
          %p2957 = pneg %p176
        $region106: #{tpu_custom_call.1} parent=103 // pred_check_branch
          %2959 = sbr.rel (%p2957) target = $region108
        $region107: #{tpu_custom_call.1} parent=103 // pred_region
          %s2960 = sand.u32 %s161, 1
          %s2961 = scalar_lea.sflag [#allocation8], %s2960
          %s2962 = sand.u32 %s161, 1
          %s2963 = smul.addr %s2962, 256
          %s2964 = scalar_lea.vmem [#allocation14], %s2963
          %2965 = dma.done %s2961, 4096
        $region108: #{tpu_custom_call.1} parent=103 // pred_fallthru
          _
        // Predicated region
        $region109: #{tpu_custom_call.1} parent=103 // pred_check
          %p2966 = pneg %p204
        $region110: #{tpu_custom_call.1} parent=103 // pred_check_branch
          %2968 = sbr.rel (%p2966) target = $region112
        $region111: #{tpu_custom_call.1} parent=103 // pred_region
          %s2969 = sand.u32 %s37, 1
          %s2970 = scalar_lea.sflag [#allocation16], %s2969
          %s2971 = sand.u32 %s189, 1
          %s2972 = smul.addr %s2971, 1024
          %s2973 = scalar_lea.vmem [#allocation15], %s2972
          %2974 = dma.done %s2970, 16384
        $region112: #{tpu_custom_call.1} parent=103 // pred_fallthru
          _
      $region104: #{tpu_custom_call.1} parent=5 // pred_fallthru
        _
    $region6: #{tpu_custom_call.1} parent=1 // loop_footer
      %s35 = sadd.s32 1, %s31
    $region7: #{tpu_custom_call.1} parent=1 // loop_footer_branch
      %30 = sbr.rel target = $region3
    $region8: #{tpu_custom_call.1} parent=1 // loop_exit
      _
    %2975 = vsyncpa [#allocation7], 1
    %s2976 = scalar_lea.sflag [#allocation7], 1
    %2977 = vsyncpa %s2976, 1
    %2978 = vsyncpa [#allocation10], 1
    %s2979 = scalar_lea.sflag [#allocation10], 1
    %2980 = vsyncpa %s2979, 1
    %2981 = vsyncpa [#allocation13], 1
    %s2982 = scalar_lea.sflag [#allocation13], 1
    %2983 = vsyncpa %s2982, 1
    %2984 = vsyncpa [#allocation8], 1
    %s2985 = scalar_lea.sflag [#allocation8], 1
    %2986 = vsyncpa %s2985, 1
    %2987 = vsyncpa [#allocation16], 1
    %s2988 = scalar_lea.sflag [#allocation16], 1
    %2989 = vsyncpa %s2988, 1
    %2990 = vsyncpa [#allocation19], 1

</llo_original>
